<compile_context>
chip_gen: v7x
topology: tpu7x:2x2x1
jax: 0.10.0
libtpu: 0.0.40
codegen_flags: <defaults>
</compile_context>

<pallas_src>
import jax
import jax.numpy as jnp
from jax import lax
from jax.experimental import pallas as pl
from jax.experimental.pallas import tpu as pltpu


# ----------------------------------------------------------------------------
# Fused kernel: 3x3 conv (pad=1) + bias + ReLU + 2x2 max-pool, batch-minor tile
# ----------------------------------------------------------------------------
def _fused_conv_relu_pool_kernel(w_ref, b_ref, x_ref, o_ref):
    # w_ref : SMEM f32[Cout*Cin*9]          flattened OIHW conv weight
    # b_ref : SMEM f32[Cout]
    # x_ref : VMEM f32[4*Cin, Hh, Wh, Nb]   parity-split, batch-minor input:
    #         x_ref[(2*ph+pw)*Cin + c, i, j, n] = xpad[n, c, 2*i+ph, 2*j+pw]
    # o_ref : VMEM f32[Cout, H2, W2, Nb]
    cout_n, H2, W2, Nb = o_ref.shape
    cin_n = x_ref.shape[0] // 4

    pool_pos = ((0, 0), (0, 1), (1, 0), (1, 1))   # (dh_p, dw_p) of the 2x2 pool

    def per_cout(cout, carry):
        # Only the 4 pooled accumulators + the current slab + the current
        # weight splat are live; slabs are re-read from VMEM in the tap loop.
        accs = [jnp.zeros((H2, W2, Nb), jnp.float32) for _ in range(4)]
        for cin in range(cin_n):
            for dh in range(3):
                for dw in range(3):
                    # one scalar read / splat per tap, reused 4x back-to-back
                    w = w_ref[((cout * cin_n + cin) * 3 + dh) * 3 + dw]
                    for q, (dh_p, dw_p) in enumerate(pool_pos):
                        a = dh_p + dh            # 0..3 -> (row parity, +0/+1)
                        b = dw_p + dw            # 0..3 -> (col parity, +0/+1)
                        p = (a % 2) * 2 + (b % 2)
                        ro = a // 2
                        co = b // 2
                        # static slices on major/sublane dims; lane axis (batch)
                        # is untouched -> no lane-relayout copies.
                        slab = x_ref[p * cin_n + cin,
                                     ro:ro + H2, co:co + W2, :]
                        accs[q] = accs[q] + w * slab
        pooled = jnp.maximum(jnp.maximum(accs[0], accs[1]),
                             jnp.maximum(accs[2], accs[3]))
        # bias + ReLU commute with the max (same bias on all four positions).
        o_ref[cout] = jnp.maximum(pooled + b_ref[cout], 0.0)
        return carry

    lax.fori_loop(0, cout_n, per_cout, 0)


# ----------------------------------------------------------------------------
# Wrapper reproducing st_extract.forward with features_s = Conv+ReLU+MaxPool
# ----------------------------------------------------------------------------
def st_extract_forward(x_nchw, conv_w, conv_b, *, batch_tile=128):
    N, Cin, H, W = x_nchw.shape
    Cout, Cin_w, kh, kw = conv_w.shape
    assert (kh, kw) == (3, 3) and Cin_w == Cin
    # TODO(synk): PyTorch MaxPool2d(2) floors odd spatial dims; even H, W only.
    assert H % 2 == 0 and W % 2 == 0, "MaxPool2d(2) path requires even H, W"

    H2, W2 = H // 2, W // 2
    Hh, Wh = H2 + 1, W2 + 1

    # Batch tiling: the batch is the lane axis, so aim for Nb = 128 per grid
    # step (full lanes, unmasked stores).  Small batches run as a single tile.
    if N >= batch_tile:
        Nb = batch_tile
        N_pad = ((N + Nb - 1) // Nb) * Nb
    else:
        Nb = N
        N_pad = N

    x = x_nchw.astype(jnp.float32)
    if N_pad != N:
        x = jnp.pad(x, ((0, N_pad - N), (0, 0), (0, 0), (0, 0)))

    # ---- host glue: one pad/transpose/parity-split pass over x --------------
    # batch-minor layout [Cin, H+2, W+2, N]; parity split makes every 3x3 tap
    # at pooled resolution a static slice and the 2x2 pool an elementwise max.
    xp = jnp.pad(jnp.transpose(x, (1, 2, 3, 0)),
                 ((0, 0), (1, 1), (1, 1), (0, 0)))
    xpar = jnp.stack([xp[:, 0::2, 0::2, :],      # (row even, col even)
                      xp[:, 0::2, 1::2, :],      # (row even, col odd)
                      xp[:, 1::2, 0::2, :],      # (row odd,  col even)
                      xp[:, 1::2, 1::2, :]],     # (row odd,  col odd)
                     axis=0)                     # [4, Cin, Hh, Wh, N_pad]
    xpar = xpar.reshape(4 * Cin, Hh, Wh, N_pad)  # single stacked input (1 DMA)

    w_flat = conv_w.reshape(-1).astype(jnp.float32)   # [Cout*Cin*9]
    b_vec = conv_b.reshape(-1).astype(jnp.float32)    # [Cout]

    smem_spec = pl.BlockSpec(memory_space=pltpu.MemorySpace.SMEM)
    x_spec = pl.BlockSpec((4 * Cin, Hh, Wh, Nb), lambda n: (0, 0, 0, n))
    o_spec = pl.BlockSpec((Cout, H2, W2, Nb), lambda n: (0, 0, 0, n))

    # Raise scoped VMEM above the 16/32 MiB defaults for larger blocks, but
    # stay under v7x's 64 MiB physical VMEM.
    block_bytes = 4 * Nb * (4 * Cin * Hh * Wh + Cout * H2 * W2)
    vmem_limit = int(min(56 * 1024 * 1024,
                         max(32 * 1024 * 1024, 3 * block_bytes)))

    out_bm = pl.pallas_call(
        _fused_conv_relu_pool_kernel,
        out_shape=jax.ShapeDtypeStruct((Cout, H2, W2, N_pad), jnp.float32),
        grid=(N_pad // Nb,),
        in_specs=[smem_spec, smem_spec, x_spec],
        out_specs=o_spec,
        compiler_params=pltpu.CompilerParams(
            dimension_semantics=("parallel",),     # batch tiles are independent
            vmem_limit_bytes=vmem_limit),
    )(w_flat, b_vec, xpar)

    # back to NCHW (what the PyTorch module hands downstream), drop batch pad.
    return jnp.transpose(out_bm, (3, 0, 1, 2))[:N]


# ----------------------------------------------------------------------------
# Pure-JAX reference for correctness checking
# ----------------------------------------------------------------------------
def _reference(x, w, b):
    y = lax.conv_general_dilated(
        x, w, window_strides=(1, 1), padding=((1, 1), (1, 1)),
        dimension_numbers=("NCHW", "OIHW", "NCHW"))
    y = jnp.maximum(y + b[None, :, None, None], 0.0)
    N, C, H, W = y.shape
    return y.reshape(N, C, H // 2, 2, W // 2, 2).max(axis=(3, 5))


if __name__ == "__main__":
    key = jax.random.PRNGKey(0)
    k_x, k_w, k_b = jax.random.split(key, 3)

    N, Cin, H, W = 2, 4, 16, 16
    Cout = 8

    x = jax.random.normal(k_x, (N, Cin, H, W), dtype=jnp.float32)
    # deterministic synthetic conv parameters (PyTorch Conv2d shapes)
    conv_w = jax.random.normal(k_w, (Cout, Cin, 3, 3), dtype=jnp.float32) * 0.1
    conv_b = jax.random.normal(k_b, (Cout,), dtype=jnp.float32) * 0.1

    fwd = jax.jit(st_extract_forward)
    out = jax.block_until_ready(fwd(x, conv_w, conv_b))

    ref = _reference(x, conv_w, conv_b)
    assert out.shape == (N, Cout, H // 2, W // 2), out.shape
    assert jnp.allclose(out, ref, atol=1e-4, rtol=1e-4), "mismatch vs reference"

    print("KERNEL_OK")
</pallas_src>

<mosaic_0001>
module attributes {stable_mosaic.version = 11 : i64} {
  func.func @_fused_conv_relu_pool_kernel(%arg0: i32, %arg1: memref<288xf32, #tpu.memory_space<smem>>, %arg2: memref<8xf32, #tpu.memory_space<smem>>, %arg3: memref<16x9x9x2xf32, #tpu.memory_space<vmem>>, %arg4: memref<8x8x8x2xf32, #tpu.memory_space<vmem>>) attributes {dimension_semantics = [#tpu.dimension_semantics<parallel>], iteration_bounds = array<i64: 1>, scalar_prefetch = 0 : i64, scratch_operands = 0 : i64, tpu.core_type = #tpu.core_type<tc>, window_params = [{transform_indices = @transform_0, window_bounds = array<i64: 288>}, {transform_indices = @transform_1, window_bounds = array<i64: 8>}, {transform_indices = @transform_2, window_bounds = array<i64: 16, 9, 9, 2>}, {transform_indices = @transform_3, window_bounds = array<i64: 8, 8, 8, 2>}]} {
    %c0_i32 = arith.constant 0 : i32
    %c8_i32 = arith.constant 8 : i32
    %0 = arith.addi %c0_i32, %c8_i32 : i32
    %c1_i32 = arith.constant 1 : i32
    scf.for %arg5 = %c0_i32 to %0 step %c1_i32  : i32 {
      %cst = arith.constant 0.000000e+00 : f32
      %1 = vector.broadcast %cst : f32 to vector<8x8x2xf32>
      %cst_1 = arith.constant 0.000000e+00 : f32
      %2 = vector.broadcast %cst_1 : f32 to vector<8x8x2xf32>
      %cst_2 = arith.constant 0.000000e+00 : f32
      %3 = vector.broadcast %cst_2 : f32 to vector<8x8x2xf32>
      %cst_3 = arith.constant 0.000000e+00 : f32
      %4 = vector.broadcast %cst_3 : f32 to vector<8x8x2xf32>
      %c4_i32 = arith.constant 4 : i32
      %5 = arith.muli %arg5, %c4_i32 : i32
      %c0_i32_4 = arith.constant 0 : i32
      %6 = arith.addi %5, %c0_i32_4 : i32
      %c3_i32 = arith.constant 3 : i32
      %7 = arith.muli %6, %c3_i32 : i32
      %c0_i32_5 = arith.constant 0 : i32
      %8 = arith.addi %7, %c0_i32_5 : i32
      %c3_i32_6 = arith.constant 3 : i32
      %9 = arith.muli %8, %c3_i32_6 : i32
      %c0_i32_7 = arith.constant 0 : i32
      %10 = arith.addi %9, %c0_i32_7 : i32
      %11 = arith.index_cast %10 : i32 to index
      %12 = memref.load %arg1[%11] : memref<288xf32, #tpu.memory_space<smem>>
      %c0 = arith.constant 0 : index
      %c0_8 = arith.constant 0 : index
      %c0_9 = arith.constant 0 : index
      %c0_10 = arith.constant 0 : index
      %13 = vector.load %arg3[%c0, %c0_8, %c0_9, %c0_10] : memref<16x9x9x2xf32, #tpu.memory_space<vmem>>, vector<1x8x8x2xf32>
      %14 = vector.shape_cast %13 : vector<1x8x8x2xf32> to vector<8x8x2xf32>
      %15 = vector.broadcast %12 : f32 to vector<8x8x2xf32>
      %16 = arith.mulf %15, %14 : vector<8x8x2xf32>
      %17 = arith.addf %1, %16 : vector<8x8x2xf32>
      %c4 = arith.constant 4 : index
      %c0_11 = arith.constant 0 : index
      %c0_12 = arith.constant 0 : index
      %c0_13 = arith.constant 0 : index
      %18 = vector.load %arg3[%c4, %c0_11, %c0_12, %c0_13] : memref<16x9x9x2xf32, #tpu.memory_space<vmem>>, vector<1x8x8x2xf32>
      %19 = vector.shape_cast %18 : vector<1x8x8x2xf32> to vector<8x8x2xf32>
      %20 = vector.broadcast %12 : f32 to vector<8x8x2xf32>
      %21 = arith.mulf %20, %19 : vector<8x8x2xf32>
      %22 = arith.addf %2, %21 : vector<8x8x2xf32>
      %c8 = arith.constant 8 : index
      %c0_14 = arith.constant 0 : index
      %c0_15 = arith.constant 0 : index
      %c0_16 = arith.constant 0 : index
      %23 = vector.load %arg3[%c8, %c0_14, %c0_15, %c0_16] : memref<16x9x9x2xf32, #tpu.memory_space<vmem>>, vector<1x8x8x2xf32>
      %24 = vector.shape_cast %23 : vector<1x8x8x2xf32> to vector<8x8x2xf32>
      %25 = vector.broadcast %12 : f32 to vector<8x8x2xf32>
      %26 = arith.mulf %25, %24 : vector<8x8x2xf32>
      %27 = arith.addf %3, %26 : vector<8x8x2xf32>
      %c12 = arith.constant 12 : index
      %c0_17 = arith.constant 0 : index
      %c0_18 = arith.constant 0 : index
      %c0_19 = arith.constant 0 : index
      %28 = vector.load %arg3[%c12, %c0_17, %c0_18, %c0_19] : memref<16x9x9x2xf32, #tpu.memory_space<vmem>>, vector<1x8x8x2xf32>
      %29 = vector.shape_cast %28 : vector<1x8x8x2xf32> to vector<8x8x2xf32>
      %30 = vector.broadcast %12 : f32 to vector<8x8x2xf32>
      %31 = arith.mulf %30, %29 : vector<8x8x2xf32>
      %32 = arith.addf %4, %31 : vector<8x8x2xf32>
      %c4_i32_20 = arith.constant 4 : i32
      %33 = arith.muli %arg5, %c4_i32_20 : i32
      %c0_i32_21 = arith.constant 0 : i32
      %34 = arith.addi %33, %c0_i32_21 : i32
      %c3_i32_22 = arith.constant 3 : i32
      %35 = arith.muli %34, %c3_i32_22 : i32
      %c0_i32_23 = arith.constant 0 : i32
      %36 = arith.addi %35, %c0_i32_23 : i32
      %c3_i32_24 = arith.constant 3 : i32
      %37 = arith.muli %36, %c3_i32_24 : i32
      %c1_i32_25 = arith.constant 1 : i32
      %38 = arith.addi %37, %c1_i32_25 : i32
      %39 = arith.index_cast %38 : i32 to index
      %40 = memref.load %arg1[%39] : memref<288xf32, #tpu.memory_space<smem>>
      %c4_26 = arith.constant 4 : index
      %c0_27 = arith.constant 0 : index
      %c0_28 = arith.constant 0 : index
      %c0_29 = arith.constant 0 : index
      %41 = vector.load %arg3[%c4_26, %c0_27, %c0_28, %c0_29] : memref<16x9x9x2xf32, #tpu.memory_space<vmem>>, vector<1x8x8x2xf32>
      %42 = vector.shape_cast %41 : vector<1x8x8x2xf32> to vector<8x8x2xf32>
      %43 = vector.broadcast %40 : f32 to vector<8x8x2xf32>
      %44 = arith.mulf %43, %42 : vector<8x8x2xf32>
      %45 = arith.addf %17, %44 : vector<8x8x2xf32>
      %c0_30 = arith.constant 0 : index
      %c0_31 = arith.constant 0 : index
      %c1 = arith.constant 1 : index
      %c0_32 = arith.constant 0 : index
      %46 = vector.load %arg3[%c0_30, %c0_31, %c1, %c0_32] : memref<16x9x9x2xf32, #tpu.memory_space<vmem>>, vector<1x8x8x2xf32>
      %47 = vector.shape_cast %46 : vector<1x8x8x2xf32> to vector<8x8x2xf32>
      %48 = vector.broadcast %40 : f32 to vector<8x8x2xf32>
      %49 = arith.mulf %48, %47 : vector<8x8x2xf32>
      %50 = arith.addf %22, %49 : vector<8x8x2xf32>
      %c12_33 = arith.constant 12 : index
      %c0_34 = arith.constant 0 : index
      %c0_35 = arith.constant 0 : index
      %c0_36 = arith.constant 0 : index
      %51 = vector.load %arg3[%c12_33, %c0_34, %c0_35, %c0_36] : memref<16x9x9x2xf32, #tpu.memory_space<vmem>>, vector<1x8x8x2xf32>
      %52 = vector.shape_cast %51 : vector<1x8x8x2xf32> to vector<8x8x2xf32>
      %53 = vector.broadcast %40 : f32 to vector<8x8x2xf32>
      %54 = arith.mulf %53, %52 : vector<8x8x2xf32>
      %55 = arith.addf %27, %54 : vector<8x8x2xf32>
      %c8_37 = arith.constant 8 : index
      %c0_38 = arith.constant 0 : index
      %c1_39 = arith.constant 1 : index
      %c0_40 = arith.constant 0 : index
      %56 = vector.load %arg3[%c8_37, %c0_38, %c1_39, %c0_40] : memref<16x9x9x2xf32, #tpu.memory_space<vmem>>, vector<1x8x8x2xf32>
      %57 = vector.shape_cast %56 : vector<1x8x8x2xf32> to vector<8x8x2xf32>
      %58 = vector.broadcast %40 : f32 to vector<8x8x2xf32>
      %59 = arith.mulf %58, %57 : vector<8x8x2xf32>
      %60 = arith.addf %32, %59 : vector<8x8x2xf32>
      %c4_i32_41 = arith.constant 4 : i32
      %61 = arith.muli %arg5, %c4_i32_41 : i32
      %c0_i32_42 = arith.constant 0 : i32
      %62 = arith.addi %61, %c0_i32_42 : i32
      %c3_i32_43 = arith.constant 3 : i32
      %63 = arith.muli %62, %c3_i32_43 : i32
      %c0_i32_44 = arith.constant 0 : i32
      %64 = arith.addi %63, %c0_i32_44 : i32
      %c3_i32_45 = arith.constant 3 : i32
      %65 = arith.muli %64, %c3_i32_45 : i32
      %c2_i32 = arith.constant 2 : i32
      %66 = arith.addi %65, %c2_i32 : i32
      %67 = arith.index_cast %66 : i32 to index
      %68 = memref.load %arg1[%67] : memref<288xf32, #tpu.memory_space<smem>>
      %c0_46 = arith.constant 0 : index
      %c0_47 = arith.constant 0 : index
      %c1_48 = arith.constant 1 : index
      %c0_49 = arith.constant 0 : index
      %69 = vector.load %arg3[%c0_46, %c0_47, %c1_48, %c0_49] : memref<16x9x9x2xf32, #tpu.memory_space<vmem>>, vector<1x8x8x2xf32>
      %70 = vector.shape_cast %69 : vector<1x8x8x2xf32> to vector<8x8x2xf32>
      %71 = vector.broadcast %68 : f32 to vector<8x8x2xf32>
      %72 = arith.mulf %71, %70 : vector<8x8x2xf32>
      %73 = arith.addf %45, %72 : vector<8x8x2xf32>
      %c4_50 = arith.constant 4 : index
      %c0_51 = arith.constant 0 : index
      %c1_52 = arith.constant 1 : index
      %c0_53 = arith.constant 0 : index
      %74 = vector.load %arg3[%c4_50, %c0_51, %c1_52, %c0_53] : memref<16x9x9x2xf32, #tpu.memory_space<vmem>>, vector<1x8x8x2xf32>
      %75 = vector.shape_cast %74 : vector<1x8x8x2xf32> to vector<8x8x2xf32>
      %76 = vector.broadcast %68 : f32 to vector<8x8x2xf32>
      %77 = arith.mulf %76, %75 : vector<8x8x2xf32>
      %78 = arith.addf %50, %77 : vector<8x8x2xf32>
      %c8_54 = arith.constant 8 : index
      %c0_55 = arith.constant 0 : index
      %c1_56 = arith.constant 1 : index
      %c0_57 = arith.constant 0 : index
      %79 = vector.load %arg3[%c8_54, %c0_55, %c1_56, %c0_57] : memref<16x9x9x2xf32, #tpu.memory_space<vmem>>, vector<1x8x8x2xf32>
      %80 = vector.shape_cast %79 : vector<1x8x8x2xf32> to vector<8x8x2xf32>
      %81 = vector.broadcast %68 : f32 to vector<8x8x2xf32>
      %82 = arith.mulf %81, %80 : vector<8x8x2xf32>
      %83 = arith.addf %55, %82 : vector<8x8x2xf32>
      %c12_58 = arith.constant 12 : index
      %c0_59 = arith.constant 0 : index
      %c1_60 = arith.constant 1 : index
      %c0_61 = arith.constant 0 : index
      %84 = vector.load %arg3[%c12_58, %c0_59, %c1_60, %c0_61] : memref<16x9x9x2xf32, #tpu.memory_space<vmem>>, vector<1x8x8x2xf32>
      %85 = vector.shape_cast %84 : vector<1x8x8x2xf32> to vector<8x8x2xf32>
      %86 = vector.broadcast %68 : f32 to vector<8x8x2xf32>
      %87 = arith.mulf %86, %85 : vector<8x8x2xf32>
      %88 = arith.addf %60, %87 : vector<8x8x2xf32>
      %c4_i32_62 = arith.constant 4 : i32
      %89 = arith.muli %arg5, %c4_i32_62 : i32
      %c0_i32_63 = arith.constant 0 : i32
      %90 = arith.addi %89, %c0_i32_63 : i32
      %c3_i32_64 = arith.constant 3 : i32
      %91 = arith.muli %90, %c3_i32_64 : i32
      %c1_i32_65 = arith.constant 1 : i32
      %92 = arith.addi %91, %c1_i32_65 : i32
      %c3_i32_66 = arith.constant 3 : i32
      %93 = arith.muli %92, %c3_i32_66 : i32
      %c0_i32_67 = arith.constant 0 : i32
      %94 = arith.addi %93, %c0_i32_67 : i32
      %95 = arith.index_cast %94 : i32 to index
      %96 = memref.load %arg1[%95] : memref<288xf32, #tpu.memory_space<smem>>
      %c8_68 = arith.constant 8 : index
      %c0_69 = arith.constant 0 : index
      %c0_70 = arith.constant 0 : index
      %c0_71 = arith.constant 0 : index
      %97 = vector.load %arg3[%c8_68, %c0_69, %c0_70, %c0_71] : memref<16x9x9x2xf32, #tpu.memory_space<vmem>>, vector<1x8x8x2xf32>
      %98 = vector.shape_cast %97 : vector<1x8x8x2xf32> to vector<8x8x2xf32>
      %99 = vector.broadcast %96 : f32 to vector<8x8x2xf32>
      %100 = arith.mulf %99, %98 : vector<8x8x2xf32>
      %101 = arith.addf %73, %100 : vector<8x8x2xf32>
      %c12_72 = arith.constant 12 : index
      %c0_73 = arith.constant 0 : index
      %c0_74 = arith.constant 0 : index
      %c0_75 = arith.constant 0 : index
      %102 = vector.load %arg3[%c12_72, %c0_73, %c0_74, %c0_75] : memref<16x9x9x2xf32, #tpu.memory_space<vmem>>, vector<1x8x8x2xf32>
      %103 = vector.shape_cast %102 : vector<1x8x8x2xf32> to vector<8x8x2xf32>
      %104 = vector.broadcast %96 : f32 to vector<8x8x2xf32>
      %105 = arith.mulf %104, %103 : vector<8x8x2xf32>
      %106 = arith.addf %78, %105 : vector<8x8x2xf32>
      %c0_76 = arith.constant 0 : index
      %c1_77 = arith.constant 1 : index
      %c0_78 = arith.constant 0 : index
      %c0_79 = arith.constant 0 : index
      %107 = vector.load %arg3[%c0_76, %c1_77, %c0_78, %c0_79] : memref<16x9x9x2xf32, #tpu.memory_space<vmem>>, vector<1x8x8x2xf32>
      %108 = vector.shape_cast %107 : vector<1x8x8x2xf32> to vector<8x8x2xf32>
      %109 = vector.broadcast %96 : f32 to vector<8x8x2xf32>
      %110 = arith.mulf %109, %108 : vector<8x8x2xf32>
      %111 = arith.addf %83, %110 : vector<8x8x2xf32>
      %c4_80 = arith.constant 4 : index
      %c1_81 = arith.constant 1 : index
      %c0_82 = arith.constant 0 : index
      %c0_83 = arith.constant 0 : index
      %112 = vector.load %arg3[%c4_80, %c1_81, %c0_82, %c0_83] : memref<16x9x9x2xf32, #tpu.memory_space<vmem>>, vector<1x8x8x2xf32>
      %113 = vector.shape_cast %112 : vector<1x8x8x2xf32> to vector<8x8x2xf32>
      %114 = vector.broadcast %96 : f32 to vector<8x8x2xf32>
      %115 = arith.mulf %114, %113 : vector<8x8x2xf32>
      %116 = arith.addf %88, %115 : vector<8x8x2xf32>
      %c4_i32_84 = arith.constant 4 : i32
      %117 = arith.muli %arg5, %c4_i32_84 : i32
      %c0_i32_85 = arith.constant 0 : i32
      %118 = arith.addi %117, %c0_i32_85 : i32
      %c3_i32_86 = arith.constant 3 : i32
      %119 = arith.muli %118, %c3_i32_86 : i32
      %c1_i32_87 = arith.constant 1 : i32
      %120 = arith.addi %119, %c1_i32_87 : i32
      %c3_i32_88 = arith.constant 3 : i32
      %121 = arith.muli %120, %c3_i32_88 : i32
      %c1_i32_89 = arith.constant 1 : i32
      %122 = arith.addi %121, %c1_i32_89 : i32
      %123 = arith.index_cast %122 : i32 to index
      %124 = memref.load %arg1[%123] : memref<288xf32, #tpu.memory_space<smem>>
      %c12_90 = arith.constant 12 : index
      %c0_91 = arith.constant 0 : index
      %c0_92 = arith.constant 0 : index
      %c0_93 = arith.constant 0 : index
      %125 = vector.load %arg3[%c12_90, %c0_91, %c0_92, %c0_93] : memref<16x9x9x2xf32, #tpu.memory_space<vmem>>, vector<1x8x8x2xf32>
      %126 = vector.shape_cast %125 : vector<1x8x8x2xf32> to vector<8x8x2xf32>
      %127 = vector.broadcast %124 : f32 to vector<8x8x2xf32>
      %128 = arith.mulf %127, %126 : vector<8x8x2xf32>
      %129 = arith.addf %101, %128 : vector<8x8x2xf32>
      %c8_94 = arith.constant 8 : index
      %c0_95 = arith.constant 0 : index
      %c1_96 = arith.constant 1 : index
      %c0_97 = arith.constant 0 : index
      %130 = vector.load %arg3[%c8_94, %c0_95, %c1_96, %c0_97] : memref<16x9x9x2xf32, #tpu.memory_space<vmem>>, vector<1x8x8x2xf32>
      %131 = vector.shape_cast %130 : vector<1x8x8x2xf32> to vector<8x8x2xf32>
      %132 = vector.broadcast %124 : f32 to vector<8x8x2xf32>
      %133 = arith.mulf %132, %131 : vector<8x8x2xf32>
      %134 = arith.addf %106, %133 : vector<8x8x2xf32>
      %c4_98 = arith.constant 4 : index
      %c1_99 = arith.constant 1 : index
      %c0_100 = arith.constant 0 : index
      %c0_101 = arith.constant 0 : index
      %135 = vector.load %arg3[%c4_98, %c1_99, %c0_100, %c0_101] : memref<16x9x9x2xf32, #tpu.memory_space<vmem>>, vector<1x8x8x2xf32>
      %136 = vector.shape_cast %135 : vector<1x8x8x2xf32> to vector<8x8x2xf32>
      %137 = vector.broadcast %124 : f32 to vector<8x8x2xf32>
      %138 = arith.mulf %137, %136 : vector<8x8x2xf32>
      %139 = arith.addf %111, %138 : vector<8x8x2xf32>
      %c0_102 = arith.constant 0 : index
      %c1_103 = arith.constant 1 : index
      %c1_104 = arith.constant 1 : index
      %c0_105 = arith.constant 0 : index
      %140 = vector.load %arg3[%c0_102, %c1_103, %c1_104, %c0_105] : memref<16x9x9x2xf32, #tpu.memory_space<vmem>>, vector<1x8x8x2xf32>
      %141 = vector.shape_cast %140 : vector<1x8x8x2xf32> to vector<8x8x2xf32>
      %142 = vector.broadcast %124 : f32 to vector<8x8x2xf32>
      %143 = arith.mulf %142, %141 : vector<8x8x2xf32>
      %144 = arith.addf %116, %143 : vector<8x8x2xf32>
      %c4_i32_106 = arith.constant 4 : i32
      %145 = arith.muli %arg5, %c4_i32_106 : i32
      %c0_i32_107 = arith.constant 0 : i32
      %146 = arith.addi %145, %c0_i32_107 : i32
      %c3_i32_108 = arith.constant 3 : i32
      %147 = arith.muli %146, %c3_i32_108 : i32
      %c1_i32_109 = arith.constant 1 : i32
      %148 = arith.addi %147, %c1_i32_109 : i32
      %c3_i32_110 = arith.constant 3 : i32
      %149 = arith.muli %148, %c3_i32_110 : i32
      %c2_i32_111 = arith.constant 2 : i32
      %150 = arith.addi %149, %c2_i32_111 : i32
      %151 = arith.index_cast %150 : i32 to index
      %152 = memref.load %arg1[%151] : memref<288xf32, #tpu.memory_space<smem>>
      %c8_112 = arith.constant 8 : index
      %c0_113 = arith.constant 0 : index
      %c1_114 = arith.constant 1 : index
      %c0_115 = arith.constant 0 : index
      %153 = vector.load %arg3[%c8_112, %c0_113, %c1_114, %c0_115] : memref<16x9x9x2xf32, #tpu.memory_space<vmem>>, vector<1x8x8x2xf32>
      %154 = vector.shape_cast %153 : vector<1x8x8x2xf32> to vector<8x8x2xf32>
      %155 = vector.broadcast %152 : f32 to vector<8x8x2xf32>
      %156 = arith.mulf %155, %154 : vector<8x8x2xf32>
      %157 = arith.addf %129, %156 : vector<8x8x2xf32>
      %c12_116 = arith.constant 12 : index
      %c0_117 = arith.constant 0 : index
      %c1_118 = arith.constant 1 : index
      %c0_119 = arith.constant 0 : index
      %158 = vector.load %arg3[%c12_116, %c0_117, %c1_118, %c0_119] : memref<16x9x9x2xf32, #tpu.memory_space<vmem>>, vector<1x8x8x2xf32>
      %159 = vector.shape_cast %158 : vector<1x8x8x2xf32> to vector<8x8x2xf32>
      %160 = vector.broadcast %152 : f32 to vector<8x8x2xf32>
      %161 = arith.mulf %160, %159 : vector<8x8x2xf32>
      %162 = arith.addf %134, %161 : vector<8x8x2xf32>
      %c0_120 = arith.constant 0 : index
      %c1_121 = arith.constant 1 : index
      %c1_122 = arith.constant 1 : index
      %c0_123 = arith.constant 0 : index
      %163 = vector.load %arg3[%c0_120, %c1_121, %c1_122, %c0_123] : memref<16x9x9x2xf32, #tpu.memory_space<vmem>>, vector<1x8x8x2xf32>
      %164 = vector.shape_cast %163 : vector<1x8x8x2xf32> to vector<8x8x2xf32>
      %165 = vector.broadcast %152 : f32 to vector<8x8x2xf32>
      %166 = arith.mulf %165, %164 : vector<8x8x2xf32>
      %167 = arith.addf %139, %166 : vector<8x8x2xf32>
      %c4_124 = arith.constant 4 : index
      %c1_125 = arith.constant 1 : index
      %c1_126 = arith.constant 1 : index
      %c0_127 = arith.constant 0 : index
      %168 = vector.load %arg3[%c4_124, %c1_125, %c1_126, %c0_127] : memref<16x9x9x2xf32, #tpu.memory_space<vmem>>, vector<1x8x8x2xf32>
      %169 = vector.shape_cast %168 : vector<1x8x8x2xf32> to vector<8x8x2xf32>
      %170 = vector.broadcast %152 : f32 to vector<8x8x2xf32>
      %171 = arith.mulf %170, %169 : vector<8x8x2xf32>
      %172 = arith.addf %144, %171 : vector<8x8x2xf32>
      %c4_i32_128 = arith.constant 4 : i32
      %173 = arith.muli %arg5, %c4_i32_128 : i32
      %c0_i32_129 = arith.constant 0 : i32
      %174 = arith.addi %173, %c0_i32_129 : i32
      %c3_i32_130 = arith.constant 3 : i32
      %175 = arith.muli %174, %c3_i32_130 : i32
      %c2_i32_131 = arith.constant 2 : i32
      %176 = arith.addi %175, %c2_i32_131 : i32
      %c3_i32_132 = arith.constant 3 : i32
      %177 = arith.muli %176, %c3_i32_132 : i32
      %c0_i32_133 = arith.constant 0 : i32
      %178 = arith.addi %177, %c0_i32_133 : i32
      %179 = arith.index_cast %178 : i32 to index
      %180 = memref.load %arg1[%179] : memref<288xf32, #tpu.memory_space<smem>>
      %c0_134 = arith.constant 0 : index
      %c1_135 = arith.constant 1 : index
      %c0_136 = arith.constant 0 : index
      %c0_137 = arith.constant 0 : index
      %181 = vector.load %arg3[%c0_134, %c1_135, %c0_136, %c0_137] : memref<16x9x9x2xf32, #tpu.memory_space<vmem>>, vector<1x8x8x2xf32>
      %182 = vector.shape_cast %181 : vector<1x8x8x2xf32> to vector<8x8x2xf32>
      %183 = vector.broadcast %180 : f32 to vector<8x8x2xf32>
      %184 = arith.mulf %183, %182 : vector<8x8x2xf32>
      %185 = arith.addf %157, %184 : vector<8x8x2xf32>
      %c4_138 = arith.constant 4 : index
      %c1_139 = arith.constant 1 : index
      %c0_140 = arith.constant 0 : index
      %c0_141 = arith.constant 0 : index
      %186 = vector.load %arg3[%c4_138, %c1_139, %c0_140, %c0_141] : memref<16x9x9x2xf32, #tpu.memory_space<vmem>>, vector<1x8x8x2xf32>
      %187 = vector.shape_cast %186 : vector<1x8x8x2xf32> to vector<8x8x2xf32>
      %188 = vector.broadcast %180 : f32 to vector<8x8x2xf32>
      %189 = arith.mulf %188, %187 : vector<8x8x2xf32>
      %190 = arith.addf %162, %189 : vector<8x8x2xf32>
      %c8_142 = arith.constant 8 : index
      %c1_143 = arith.constant 1 : index
      %c0_144 = arith.constant 0 : index
      %c0_145 = arith.constant 0 : index
      %191 = vector.load %arg3[%c8_142, %c1_143, %c0_144, %c0_145] : memref<16x9x9x2xf32, #tpu.memory_space<vmem>>, vector<1x8x8x2xf32>
      %192 = vector.shape_cast %191 : vector<1x8x8x2xf32> to vector<8x8x2xf32>
      %193 = vector.broadcast %180 : f32 to vector<8x8x2xf32>
      %194 = arith.mulf %193, %192 : vector<8x8x2xf32>
      %195 = arith.addf %167, %194 : vector<8x8x2xf32>
      %c12_146 = arith.constant 12 : index
      %c1_147 = arith.constant 1 : index
      %c0_148 = arith.constant 0 : index
      %c0_149 = arith.constant 0 : index
      %196 = vector.load %arg3[%c12_146, %c1_147, %c0_148, %c0_149] : memref<16x9x9x2xf32, #tpu.memory_space<vmem>>, vector<1x8x8x2xf32>
      %197 = vector.shape_cast %196 : vector<1x8x8x2xf32> to vector<8x8x2xf32>
      %198 = vector.broadcast %180 : f32 to vector<8x8x2xf32>
      %199 = arith.mulf %198, %197 : vector<8x8x2xf32>
      %200 = arith.addf %172, %199 : vector<8x8x2xf32>
      %c4_i32_150 = arith.constant 4 : i32
      %201 = arith.muli %arg5, %c4_i32_150 : i32
      %c0_i32_151 = arith.constant 0 : i32
      %202 = arith.addi %201, %c0_i32_151 : i32
      %c3_i32_152 = arith.constant 3 : i32
      %203 = arith.muli %202, %c3_i32_152 : i32
      %c2_i32_153 = arith.constant 2 : i32
      %204 = arith.addi %203, %c2_i32_153 : i32
      %c3_i32_154 = arith.constant 3 : i32
      %205 = arith.muli %204, %c3_i32_154 : i32
      %c1_i32_155 = arith.constant 1 : i32
      %206 = arith.addi %205, %c1_i32_155 : i32
      %207 = arith.index_cast %206 : i32 to index
      %208 = memref.load %arg1[%207] : memref<288xf32, #tpu.memory_space<smem>>
      %c4_156 = arith.constant 4 : index
      %c1_157 = arith.constant 1 : index
      %c0_158 = arith.constant 0 : index
      %c0_159 = arith.constant 0 : index
      %209 = vector.load %arg3[%c4_156, %c1_157, %c0_158, %c0_159] : memref<16x9x9x2xf32, #tpu.memory_space<vmem>>, vector<1x8x8x2xf32>
      %210 = vector.shape_cast %209 : vector<1x8x8x2xf32> to vector<8x8x2xf32>
      %211 = vector.broadcast %208 : f32 to vector<8x8x2xf32>
      %212 = arith.mulf %211, %210 : vector<8x8x2xf32>
      %213 = arith.addf %185, %212 : vector<8x8x2xf32>
      %c0_160 = arith.constant 0 : index
      %c1_161 = arith.constant 1 : index
      %c1_162 = arith.constant 1 : index
      %c0_163 = arith.constant 0 : index
      %214 = vector.load %arg3[%c0_160, %c1_161, %c1_162, %c0_163] : memref<16x9x9x2xf32, #tpu.memory_space<vmem>>, vector<1x8x8x2xf32>
      %215 = vector.shape_cast %214 : vector<1x8x8x2xf32> to vector<8x8x2xf32>
      %216 = vector.broadcast %208 : f32 to vector<8x8x2xf32>
      %217 = arith.mulf %216, %215 : vector<8x8x2xf32>
      %218 = arith.addf %190, %217 : vector<8x8x2xf32>
      %c12_164 = arith.constant 12 : index
      %c1_165 = arith.constant 1 : index
      %c0_166 = arith.constant 0 : index
      %c0_167 = arith.constant 0 : index
      %219 = vector.load %arg3[%c12_164, %c1_165, %c0_166, %c0_167] : memref<16x9x9x2xf32, #tpu.memory_space<vmem>>, vector<1x8x8x2xf32>
      %220 = vector.shape_cast %219 : vector<1x8x8x2xf32> to vector<8x8x2xf32>
      %221 = vector.broadcast %208 : f32 to vector<8x8x2xf32>
      %222 = arith.mulf %221, %220 : vector<8x8x2xf32>
      %223 = arith.addf %195, %222 : vector<8x8x2xf32>
      %c8_168 = arith.constant 8 : index
      %c1_169 = arith.constant 1 : index
      %c1_170 = arith.constant 1 : index
      %c0_171 = arith.constant 0 : index
      %224 = vector.load %arg3[%c8_168, %c1_169, %c1_170, %c0_171] : memref<16x9x9x2xf32, #tpu.memory_space<vmem>>, vector<1x8x8x2xf32>
      %225 = vector.shape_cast %224 : vector<1x8x8x2xf32> to vector<8x8x2xf32>
      %226 = vector.broadcast %208 : f32 to vector<8x8x2xf32>
      %227 = arith.mulf %226, %225 : vector<8x8x2xf32>
      %228 = arith.addf %200, %227 : vector<8x8x2xf32>
      %c4_i32_172 = arith.constant 4 : i32
      %229 = arith.muli %arg5, %c4_i32_172 : i32
      %c0_i32_173 = arith.constant 0 : i32
      %230 = arith.addi %229, %c0_i32_173 : i32
      %c3_i32_174 = arith.constant 3 : i32
      %231 = arith.muli %230, %c3_i32_174 : i32
      %c2_i32_175 = arith.constant 2 : i32
      %232 = arith.addi %231, %c2_i32_175 : i32
      %c3_i32_176 = arith.constant 3 : i32
      %233 = arith.muli %232, %c3_i32_176 : i32
      %c2_i32_177 = arith.constant 2 : i32
      %234 = arith.addi %233, %c2_i32_177 : i32
      %235 = arith.index_cast %234 : i32 to index
      %236 = memref.load %arg1[%235] : memref<288xf32, #tpu.memory_space<smem>>
      %c0_178 = arith.constant 0 : index
      %c1_179 = arith.constant 1 : index
      %c1_180 = arith.constant 1 : index
      %c0_181 = arith.constant 0 : index
      %237 = vector.load %arg3[%c0_178, %c1_179, %c1_180, %c0_181] : memref<16x9x9x2xf32, #tpu.memory_space<vmem>>, vector<1x8x8x2xf32>
      %238 = vector.shape_cast %237 : vector<1x8x8x2xf32> to vector<8x8x2xf32>
      %239 = vector.broadcast %236 : f32 to vector<8x8x2xf32>
      %240 = arith.mulf %239, %238 : vector<8x8x2xf32>
      %241 = arith.addf %213, %240 : vector<8x8x2xf32>
      %c4_182 = arith.constant 4 : index
      %c1_183 = arith.constant 1 : index
      %c1_184 = arith.constant 1 : index
      %c0_185 = arith.constant 0 : index
      %242 = vector.load %arg3[%c4_182, %c1_183, %c1_184, %c0_185] : memref<16x9x9x2xf32, #tpu.memory_space<vmem>>, vector<1x8x8x2xf32>
      %243 = vector.shape_cast %242 : vector<1x8x8x2xf32> to vector<8x8x2xf32>
      %244 = vector.broadcast %236 : f32 to vector<8x8x2xf32>
      %245 = arith.mulf %244, %243 : vector<8x8x2xf32>
      %246 = arith.addf %218, %245 : vector<8x8x2xf32>
      %c8_186 = arith.constant 8 : index
      %c1_187 = arith.constant 1 : index
      %c1_188 = arith.constant 1 : index
      %c0_189 = arith.constant 0 : index
      %247 = vector.load %arg3[%c8_186, %c1_187, %c1_188, %c0_189] : memref<16x9x9x2xf32, #tpu.memory_space<vmem>>, vector<1x8x8x2xf32>
      %248 = vector.shape_cast %247 : vector<1x8x8x2xf32> to vector<8x8x2xf32>
      %249 = vector.broadcast %236 : f32 to vector<8x8x2xf32>
      %250 = arith.mulf %249, %248 : vector<8x8x2xf32>
      %251 = arith.addf %223, %250 : vector<8x8x2xf32>
      %c12_190 = arith.constant 12 : index
      %c1_191 = arith.constant 1 : index
      %c1_192 = arith.constant 1 : index
      %c0_193 = arith.constant 0 : index
      %252 = vector.load %arg3[%c12_190, %c1_191, %c1_192, %c0_193] : memref<16x9x9x2xf32, #tpu.memory_space<vmem>>, vector<1x8x8x2xf32>
      %253 = vector.shape_cast %252 : vector<1x8x8x2xf32> to vector<8x8x2xf32>
      %254 = vector.broadcast %236 : f32 to vector<8x8x2xf32>
      %255 = arith.mulf %254, %253 : vector<8x8x2xf32>
      %256 = arith.addf %228, %255 : vector<8x8x2xf32>
      %c4_i32_194 = arith.constant 4 : i32
      %257 = arith.muli %arg5, %c4_i32_194 : i32
      %c1_i32_195 = arith.constant 1 : i32
      %258 = arith.addi %257, %c1_i32_195 : i32
      %c3_i32_196 = arith.constant 3 : i32
      %259 = arith.muli %258, %c3_i32_196 : i32
      %c0_i32_197 = arith.constant 0 : i32
      %260 = arith.addi %259, %c0_i32_197 : i32
      %c3_i32_198 = arith.constant 3 : i32
      %261 = arith.muli %260, %c3_i32_198 : i32
      %c0_i32_199 = arith.constant 0 : i32
      %262 = arith.addi %261, %c0_i32_199 : i32
      %263 = arith.index_cast %262 : i32 to index
      %264 = memref.load %arg1[%263] : memref<288xf32, #tpu.memory_space<smem>>
      %c1_200 = arith.constant 1 : index
      %c0_201 = arith.constant 0 : index
      %c0_202 = arith.constant 0 : index
      %c0_203 = arith.constant 0 : index
      %265 = vector.load %arg3[%c1_200, %c0_201, %c0_202, %c0_203] : memref<16x9x9x2xf32, #tpu.memory_space<vmem>>, vector<1x8x8x2xf32>
      %266 = vector.shape_cast %265 : vector<1x8x8x2xf32> to vector<8x8x2xf32>
      %267 = vector.broadcast %264 : f32 to vector<8x8x2xf32>
      %268 = arith.mulf %267, %266 : vector<8x8x2xf32>
      %269 = arith.addf %241, %268 : vector<8x8x2xf32>
      %c5 = arith.constant 5 : index
      %c0_204 = arith.constant 0 : index
      %c0_205 = arith.constant 0 : index
      %c0_206 = arith.constant 0 : index
      %270 = vector.load %arg3[%c5, %c0_204, %c0_205, %c0_206] : memref<16x9x9x2xf32, #tpu.memory_space<vmem>>, vector<1x8x8x2xf32>
      %271 = vector.shape_cast %270 : vector<1x8x8x2xf32> to vector<8x8x2xf32>
      %272 = vector.broadcast %264 : f32 to vector<8x8x2xf32>
      %273 = arith.mulf %272, %271 : vector<8x8x2xf32>
      %274 = arith.addf %246, %273 : vector<8x8x2xf32>
      %c9 = arith.constant 9 : index
      %c0_207 = arith.constant 0 : index
      %c0_208 = arith.constant 0 : index
      %c0_209 = arith.constant 0 : index
      %275 = vector.load %arg3[%c9, %c0_207, %c0_208, %c0_209] : memref<16x9x9x2xf32, #tpu.memory_space<vmem>>, vector<1x8x8x2xf32>
      %276 = vector.shape_cast %275 : vector<1x8x8x2xf32> to vector<8x8x2xf32>
      %277 = vector.broadcast %264 : f32 to vector<8x8x2xf32>
      %278 = arith.mulf %277, %276 : vector<8x8x2xf32>
      %279 = arith.addf %251, %278 : vector<8x8x2xf32>
      %c13 = arith.constant 13 : index
      %c0_210 = arith.constant 0 : index
      %c0_211 = arith.constant 0 : index
      %c0_212 = arith.constant 0 : index
      %280 = vector.load %arg3[%c13, %c0_210, %c0_211, %c0_212] : memref<16x9x9x2xf32, #tpu.memory_space<vmem>>, vector<1x8x8x2xf32>
      %281 = vector.shape_cast %280 : vector<1x8x8x2xf32> to vector<8x8x2xf32>
      %282 = vector.broadcast %264 : f32 to vector<8x8x2xf32>
      %283 = arith.mulf %282, %281 : vector<8x8x2xf32>
      %284 = arith.addf %256, %283 : vector<8x8x2xf32>
      %c4_i32_213 = arith.constant 4 : i32
      %285 = arith.muli %arg5, %c4_i32_213 : i32
      %c1_i32_214 = arith.constant 1 : i32
      %286 = arith.addi %285, %c1_i32_214 : i32
      %c3_i32_215 = arith.constant 3 : i32
      %287 = arith.muli %286, %c3_i32_215 : i32
      %c0_i32_216 = arith.constant 0 : i32
      %288 = arith.addi %287, %c0_i32_216 : i32
      %c3_i32_217 = arith.constant 3 : i32
      %289 = arith.muli %288, %c3_i32_217 : i32
      %c1_i32_218 = arith.constant 1 : i32
      %290 = arith.addi %289, %c1_i32_218 : i32
      %291 = arith.index_cast %290 : i32 to index
      %292 = memref.load %arg1[%291] : memref<288xf32, #tpu.memory_space<smem>>
      %c5_219 = arith.constant 5 : index
      %c0_220 = arith.constant 0 : index
      %c0_221 = arith.constant 0 : index
      %c0_222 = arith.constant 0 : index
      %293 = vector.load %arg3[%c5_219, %c0_220, %c0_221, %c0_222] : memref<16x9x9x2xf32, #tpu.memory_space<vmem>>, vector<1x8x8x2xf32>
      %294 = vector.shape_cast %293 : vector<1x8x8x2xf32> to vector<8x8x2xf32>
      %295 = vector.broadcast %292 : f32 to vector<8x8x2xf32>
      %296 = arith.mulf %295, %294 : vector<8x8x2xf32>
      %297 = arith.addf %269, %296 : vector<8x8x2xf32>
      %c1_223 = arith.constant 1 : index
      %c0_224 = arith.constant 0 : index
      %c1_225 = arith.constant 1 : index
      %c0_226 = arith.constant 0 : index
      %298 = vector.load %arg3[%c1_223, %c0_224, %c1_225, %c0_226] : memref<16x9x9x2xf32, #tpu.memory_space<vmem>>, vector<1x8x8x2xf32>
      %299 = vector.shape_cast %298 : vector<1x8x8x2xf32> to vector<8x8x2xf32>
      %300 = vector.broadcast %292 : f32 to vector<8x8x2xf32>
      %301 = arith.mulf %300, %299 : vector<8x8x2xf32>
      %302 = arith.addf %274, %301 : vector<8x8x2xf32>
      %c13_227 = arith.constant 13 : index
      %c0_228 = arith.constant 0 : index
      %c0_229 = arith.constant 0 : index
      %c0_230 = arith.constant 0 : index
      %303 = vector.load %arg3[%c13_227, %c0_228, %c0_229, %c0_230] : memref<16x9x9x2xf32, #tpu.memory_space<vmem>>, vector<1x8x8x2xf32>
      %304 = vector.shape_cast %303 : vector<1x8x8x2xf32> to vector<8x8x2xf32>
      %305 = vector.broadcast %292 : f32 to vector<8x8x2xf32>
      %306 = arith.mulf %305, %304 : vector<8x8x2xf32>
      %307 = arith.addf %279, %306 : vector<8x8x2xf32>
      %c9_231 = arith.constant 9 : index
      %c0_232 = arith.constant 0 : index
      %c1_233 = arith.constant 1 : index
      %c0_234 = arith.constant 0 : index
      %308 = vector.load %arg3[%c9_231, %c0_232, %c1_233, %c0_234] : memref<16x9x9x2xf32, #tpu.memory_space<vmem>>, vector<1x8x8x2xf32>
      %309 = vector.shape_cast %308 : vector<1x8x8x2xf32> to vector<8x8x2xf32>
      %310 = vector.broadcast %292 : f32 to vector<8x8x2xf32>
      %311 = arith.mulf %310, %309 : vector<8x8x2xf32>
      %312 = arith.addf %284, %311 : vector<8x8x2xf32>
      %c4_i32_235 = arith.constant 4 : i32
      %313 = arith.muli %arg5, %c4_i32_235 : i32
      %c1_i32_236 = arith.constant 1 : i32
      %314 = arith.addi %313, %c1_i32_236 : i32
      %c3_i32_237 = arith.constant 3 : i32
      %315 = arith.muli %314, %c3_i32_237 : i32
      %c0_i32_238 = arith.constant 0 : i32
      %316 = arith.addi %315, %c0_i32_238 : i32
      %c3_i32_239 = arith.constant 3 : i32
      %317 = arith.muli %316, %c3_i32_239 : i32
      %c2_i32_240 = arith.constant 2 : i32
      %318 = arith.addi %317, %c2_i32_240 : i32
      %319 = arith.index_cast %318 : i32 to index
      %320 = memref.load %arg1[%319] : memref<288xf32, #tpu.memory_space<smem>>
      %c1_241 = arith.constant 1 : index
      %c0_242 = arith.constant 0 : index
      %c1_243 = arith.constant 1 : index
      %c0_244 = arith.constant 0 : index
      %321 = vector.load %arg3[%c1_241, %c0_242, %c1_243, %c0_244] : memref<16x9x9x2xf32, #tpu.memory_space<vmem>>, vector<1x8x8x2xf32>
      %322 = vector.shape_cast %321 : vector<1x8x8x2xf32> to vector<8x8x2xf32>
      %323 = vector.broadcast %320 : f32 to vector<8x8x2xf32>
      %324 = arith.mulf %323, %322 : vector<8x8x2xf32>
      %325 = arith.addf %297, %324 : vector<8x8x2xf32>
      %c5_245 = arith.constant 5 : index
      %c0_246 = arith.constant 0 : index
      %c1_247 = arith.constant 1 : index
      %c0_248 = arith.constant 0 : index
      %326 = vector.load %arg3[%c5_245, %c0_246, %c1_247, %c0_248] : memref<16x9x9x2xf32, #tpu.memory_space<vmem>>, vector<1x8x8x2xf32>
      %327 = vector.shape_cast %326 : vector<1x8x8x2xf32> to vector<8x8x2xf32>
      %328 = vector.broadcast %320 : f32 to vector<8x8x2xf32>
      %329 = arith.mulf %328, %327 : vector<8x8x2xf32>
      %330 = arith.addf %302, %329 : vector<8x8x2xf32>
      %c9_249 = arith.constant 9 : index
      %c0_250 = arith.constant 0 : index
      %c1_251 = arith.constant 1 : index
      %c0_252 = arith.constant 0 : index
      %331 = vector.load %arg3[%c9_249, %c0_250, %c1_251, %c0_252] : memref<16x9x9x2xf32, #tpu.memory_space<vmem>>, vector<1x8x8x2xf32>
      %332 = vector.shape_cast %331 : vector<1x8x8x2xf32> to vector<8x8x2xf32>
      %333 = vector.broadcast %320 : f32 to vector<8x8x2xf32>
      %334 = arith.mulf %333, %332 : vector<8x8x2xf32>
      %335 = arith.addf %307, %334 : vector<8x8x2xf32>
      %c13_253 = arith.constant 13 : index
      %c0_254 = arith.constant 0 : index
      %c1_255 = arith.constant 1 : index
      %c0_256 = arith.constant 0 : index
      %336 = vector.load %arg3[%c13_253, %c0_254, %c1_255, %c0_256] : memref<16x9x9x2xf32, #tpu.memory_space<vmem>>, vector<1x8x8x2xf32>
      %337 = vector.shape_cast %336 : vector<1x8x8x2xf32> to vector<8x8x2xf32>
      %338 = vector.broadcast %320 : f32 to vector<8x8x2xf32>
      %339 = arith.mulf %338, %337 : vector<8x8x2xf32>
      %340 = arith.addf %312, %339 : vector<8x8x2xf32>
      %c4_i32_257 = arith.constant 4 : i32
      %341 = arith.muli %arg5, %c4_i32_257 : i32
      %c1_i32_258 = arith.constant 1 : i32
      %342 = arith.addi %341, %c1_i32_258 : i32
      %c3_i32_259 = arith.constant 3 : i32
      %343 = arith.muli %342, %c3_i32_259 : i32
      %c1_i32_260 = arith.constant 1 : i32
      %344 = arith.addi %343, %c1_i32_260 : i32
      %c3_i32_261 = arith.constant 3 : i32
      %345 = arith.muli %344, %c3_i32_261 : i32
      %c0_i32_262 = arith.constant 0 : i32
      %346 = arith.addi %345, %c0_i32_262 : i32
      %347 = arith.index_cast %346 : i32 to index
      %348 = memref.load %arg1[%347] : memref<288xf32, #tpu.memory_space<smem>>
      %c9_263 = arith.constant 9 : index
      %c0_264 = arith.constant 0 : index
      %c0_265 = arith.constant 0 : index
      %c0_266 = arith.constant 0 : index
      %349 = vector.load %arg3[%c9_263, %c0_264, %c0_265, %c0_266] : memref<16x9x9x2xf32, #tpu.memory_space<vmem>>, vector<1x8x8x2xf32>
      %350 = vector.shape_cast %349 : vector<1x8x8x2xf32> to vector<8x8x2xf32>
      %351 = vector.broadcast %348 : f32 to vector<8x8x2xf32>
      %352 = arith.mulf %351, %350 : vector<8x8x2xf32>
      %353 = arith.addf %325, %352 : vector<8x8x2xf32>
      %c13_267 = arith.constant 13 : index
      %c0_268 = arith.constant 0 : index
      %c0_269 = arith.constant 0 : index
      %c0_270 = arith.constant 0 : index
      %354 = vector.load %arg3[%c13_267, %c0_268, %c0_269, %c0_270] : memref<16x9x9x2xf32, #tpu.memory_space<vmem>>, vector<1x8x8x2xf32>
      %355 = vector.shape_cast %354 : vector<1x8x8x2xf32> to vector<8x8x2xf32>
      %356 = vector.broadcast %348 : f32 to vector<8x8x2xf32>
      %357 = arith.mulf %356, %355 : vector<8x8x2xf32>
      %358 = arith.addf %330, %357 : vector<8x8x2xf32>
      %c1_271 = arith.constant 1 : index
      %c1_272 = arith.constant 1 : index
      %c0_273 = arith.constant 0 : index
      %c0_274 = arith.constant 0 : index
      %359 = vector.load %arg3[%c1_271, %c1_272, %c0_273, %c0_274] : memref<16x9x9x2xf32, #tpu.memory_space<vmem>>, vector<1x8x8x2xf32>
      %360 = vector.shape_cast %359 : vector<1x8x8x2xf32> to vector<8x8x2xf32>
      %361 = vector.broadcast %348 : f32 to vector<8x8x2xf32>
      %362 = arith.mulf %361, %360 : vector<8x8x2xf32>
      %363 = arith.addf %335, %362 : vector<8x8x2xf32>
      %c5_275 = arith.constant 5 : index
      %c1_276 = arith.constant 1 : index
      %c0_277 = arith.constant 0 : index
      %c0_278 = arith.constant 0 : index
      %364 = vector.load %arg3[%c5_275, %c1_276, %c0_277, %c0_278] : memref<16x9x9x2xf32, #tpu.memory_space<vmem>>, vector<1x8x8x2xf32>
      %365 = vector.shape_cast %364 : vector<1x8x8x2xf32> to vector<8x8x2xf32>
      %366 = vector.broadcast %348 : f32 to vector<8x8x2xf32>
      %367 = arith.mulf %366, %365 : vector<8x8x2xf32>
      %368 = arith.addf %340, %367 : vector<8x8x2xf32>
      %c4_i32_279 = arith.constant 4 : i32
      %369 = arith.muli %arg5, %c4_i32_279 : i32
      %c1_i32_280 = arith.constant 1 : i32
      %370 = arith.addi %369, %c1_i32_280 : i32
      %c3_i32_281 = arith.constant 3 : i32
      %371 = arith.muli %370, %c3_i32_281 : i32
      %c1_i32_282 = arith.constant 1 : i32
      %372 = arith.addi %371, %c1_i32_282 : i32
      %c3_i32_283 = arith.constant 3 : i32
      %373 = arith.muli %372, %c3_i32_283 : i32
      %c1_i32_284 = arith.constant 1 : i32
      %374 = arith.addi %373, %c1_i32_284 : i32
      %375 = arith.index_cast %374 : i32 to index
      %376 = memref.load %arg1[%375] : memref<288xf32, #tpu.memory_space<smem>>
      %c13_285 = arith.constant 13 : index
      %c0_286 = arith.constant 0 : index
      %c0_287 = arith.constant 0 : index
      %c0_288 = arith.constant 0 : index
      %377 = vector.load %arg3[%c13_285, %c0_286, %c0_287, %c0_288] : memref<16x9x9x2xf32, #tpu.memory_space<vmem>>, vector<1x8x8x2xf32>
      %378 = vector.shape_cast %377 : vector<1x8x8x2xf32> to vector<8x8x2xf32>
      %379 = vector.broadcast %376 : f32 to vector<8x8x2xf32>
      %380 = arith.mulf %379, %378 : vector<8x8x2xf32>
      %381 = arith.addf %353, %380 : vector<8x8x2xf32>
      %c9_289 = arith.constant 9 : index
      %c0_290 = arith.constant 0 : index
      %c1_291 = arith.constant 1 : index
      %c0_292 = arith.constant 0 : index
      %382 = vector.load %arg3[%c9_289, %c0_290, %c1_291, %c0_292] : memref<16x9x9x2xf32, #tpu.memory_space<vmem>>, vector<1x8x8x2xf32>
      %383 = vector.shape_cast %382 : vector<1x8x8x2xf32> to vector<8x8x2xf32>
      %384 = vector.broadcast %376 : f32 to vector<8x8x2xf32>
      %385 = arith.mulf %384, %383 : vector<8x8x2xf32>
      %386 = arith.addf %358, %385 : vector<8x8x2xf32>
      %c5_293 = arith.constant 5 : index
      %c1_294 = arith.constant 1 : index
      %c0_295 = arith.constant 0 : index
      %c0_296 = arith.constant 0 : index
      %387 = vector.load %arg3[%c5_293, %c1_294, %c0_295, %c0_296] : memref<16x9x9x2xf32, #tpu.memory_space<vmem>>, vector<1x8x8x2xf32>
      %388 = vector.shape_cast %387 : vector<1x8x8x2xf32> to vector<8x8x2xf32>
      %389 = vector.broadcast %376 : f32 to vector<8x8x2xf32>
      %390 = arith.mulf %389, %388 : vector<8x8x2xf32>
      %391 = arith.addf %363, %390 : vector<8x8x2xf32>
      %c1_297 = arith.constant 1 : index
      %c1_298 = arith.constant 1 : index
      %c1_299 = arith.constant 1 : index
      %c0_300 = arith.constant 0 : index
      %392 = vector.load %arg3[%c1_297, %c1_298, %c1_299, %c0_300] : memref<16x9x9x2xf32, #tpu.memory_space<vmem>>, vector<1x8x8x2xf32>
      %393 = vector.shape_cast %392 : vector<1x8x8x2xf32> to vector<8x8x2xf32>
      %394 = vector.broadcast %376 : f32 to vector<8x8x2xf32>
      %395 = arith.mulf %394, %393 : vector<8x8x2xf32>
      %396 = arith.addf %368, %395 : vector<8x8x2xf32>
      %c4_i32_301 = arith.constant 4 : i32
      %397 = arith.muli %arg5, %c4_i32_301 : i32
      %c1_i32_302 = arith.constant 1 : i32
      %398 = arith.addi %397, %c1_i32_302 : i32
      %c3_i32_303 = arith.constant 3 : i32
      %399 = arith.muli %398, %c3_i32_303 : i32
      %c1_i32_304 = arith.constant 1 : i32
      %400 = arith.addi %399, %c1_i32_304 : i32
      %c3_i32_305 = arith.constant 3 : i32
      %401 = arith.muli %400, %c3_i32_305 : i32
      %c2_i32_306 = arith.constant 2 : i32
      %402 = arith.addi %401, %c2_i32_306 : i32
      %403 = arith.index_cast %402 : i32 to index
      %404 = memref.load %arg1[%403] : memref<288xf32, #tpu.memory_space<smem>>
      %c9_307 = arith.constant 9 : index
      %c0_308 = arith.constant 0 : index
      %c1_309 = arith.constant 1 : index
      %c0_310 = arith.constant 0 : index
      %405 = vector.load %arg3[%c9_307, %c0_308, %c1_309, %c0_310] : memref<16x9x9x2xf32, #tpu.memory_space<vmem>>, vector<1x8x8x2xf32>
      %406 = vector.shape_cast %405 : vector<1x8x8x2xf32> to vector<8x8x2xf32>
      %407 = vector.broadcast %404 : f32 to vector<8x8x2xf32>
      %408 = arith.mulf %407, %406 : vector<8x8x2xf32>
      %409 = arith.addf %381, %408 : vector<8x8x2xf32>
      %c13_311 = arith.constant 13 : index
      %c0_312 = arith.constant 0 : index
      %c1_313 = arith.constant 1 : index
      %c0_314 = arith.constant 0 : index
      %410 = vector.load %arg3[%c13_311, %c0_312, %c1_313, %c0_314] : memref<16x9x9x2xf32, #tpu.memory_space<vmem>>, vector<1x8x8x2xf32>
      %411 = vector.shape_cast %410 : vector<1x8x8x2xf32> to vector<8x8x2xf32>
      %412 = vector.broadcast %404 : f32 to vector<8x8x2xf32>
      %413 = arith.mulf %412, %411 : vector<8x8x2xf32>
      %414 = arith.addf %386, %413 : vector<8x8x2xf32>
      %c1_315 = arith.constant 1 : index
      %c1_316 = arith.constant 1 : index
      %c1_317 = arith.constant 1 : index
      %c0_318 = arith.constant 0 : index
      %415 = vector.load %arg3[%c1_315, %c1_316, %c1_317, %c0_318] : memref<16x9x9x2xf32, #tpu.memory_space<vmem>>, vector<1x8x8x2xf32>
      %416 = vector.shape_cast %415 : vector<1x8x8x2xf32> to vector<8x8x2xf32>
      %417 = vector.broadcast %404 : f32 to vector<8x8x2xf32>
      %418 = arith.mulf %417, %416 : vector<8x8x2xf32>
      %419 = arith.addf %391, %418 : vector<8x8x2xf32>
      %c5_319 = arith.constant 5 : index
      %c1_320 = arith.constant 1 : index
      %c1_321 = arith.constant 1 : index
      %c0_322 = arith.constant 0 : index
      %420 = vector.load %arg3[%c5_319, %c1_320, %c1_321, %c0_322] : memref<16x9x9x2xf32, #tpu.memory_space<vmem>>, vector<1x8x8x2xf32>
      %421 = vector.shape_cast %420 : vector<1x8x8x2xf32> to vector<8x8x2xf32>
      %422 = vector.broadcast %404 : f32 to vector<8x8x2xf32>
      %423 = arith.mulf %422, %421 : vector<8x8x2xf32>
      %424 = arith.addf %396, %423 : vector<8x8x2xf32>
      %c4_i32_323 = arith.constant 4 : i32
      %425 = arith.muli %arg5, %c4_i32_323 : i32
      %c1_i32_324 = arith.constant 1 : i32
      %426 = arith.addi %425, %c1_i32_324 : i32
      %c3_i32_325 = arith.constant 3 : i32
      %427 = arith.muli %426, %c3_i32_325 : i32
      %c2_i32_326 = arith.constant 2 : i32
      %428 = arith.addi %427, %c2_i32_326 : i32
      %c3_i32_327 = arith.constant 3 : i32
      %429 = arith.muli %428, %c3_i32_327 : i32
      %c0_i32_328 = arith.constant 0 : i32
      %430 = arith.addi %429, %c0_i32_328 : i32
      %431 = arith.index_cast %430 : i32 to index
      %432 = memref.load %arg1[%431] : memref<288xf32, #tpu.memory_space<smem>>
      %c1_329 = arith.constant 1 : index
      %c1_330 = arith.constant 1 : index
      %c0_331 = arith.constant 0 : index
      %c0_332 = arith.constant 0 : index
      %433 = vector.load %arg3[%c1_329, %c1_330, %c0_331, %c0_332] : memref<16x9x9x2xf32, #tpu.memory_space<vmem>>, vector<1x8x8x2xf32>
      %434 = vector.shape_cast %433 : vector<1x8x8x2xf32> to vector<8x8x2xf32>
      %435 = vector.broadcast %432 : f32 to vector<8x8x2xf32>
      %436 = arith.mulf %435, %434 : vector<8x8x2xf32>
      %437 = arith.addf %409, %436 : vector<8x8x2xf32>
      %c5_333 = arith.constant 5 : index
      %c1_334 = arith.constant 1 : index
      %c0_335 = arith.constant 0 : index
      %c0_336 = arith.constant 0 : index
      %438 = vector.load %arg3[%c5_333, %c1_334, %c0_335, %c0_336] : memref<16x9x9x2xf32, #tpu.memory_space<vmem>>, vector<1x8x8x2xf32>
      %439 = vector.shape_cast %438 : vector<1x8x8x2xf32> to vector<8x8x2xf32>
      %440 = vector.broadcast %432 : f32 to vector<8x8x2xf32>
      %441 = arith.mulf %440, %439 : vector<8x8x2xf32>
      %442 = arith.addf %414, %441 : vector<8x8x2xf32>
      %c9_337 = arith.constant 9 : index
      %c1_338 = arith.constant 1 : index
      %c0_339 = arith.constant 0 : index
      %c0_340 = arith.constant 0 : index
      %443 = vector.load %arg3[%c9_337, %c1_338, %c0_339, %c0_340] : memref<16x9x9x2xf32, #tpu.memory_space<vmem>>, vector<1x8x8x2xf32>
      %444 = vector.shape_cast %443 : vector<1x8x8x2xf32> to vector<8x8x2xf32>
      %445 = vector.broadcast %432 : f32 to vector<8x8x2xf32>
      %446 = arith.mulf %445, %444 : vector<8x8x2xf32>
      %447 = arith.addf %419, %446 : vector<8x8x2xf32>
      %c13_341 = arith.constant 13 : index
      %c1_342 = arith.constant 1 : index
      %c0_343 = arith.constant 0 : index
      %c0_344 = arith.constant 0 : index
      %448 = vector.load %arg3[%c13_341, %c1_342, %c0_343, %c0_344] : memref<16x9x9x2xf32, #tpu.memory_space<vmem>>, vector<1x8x8x2xf32>
      %449 = vector.shape_cast %448 : vector<1x8x8x2xf32> to vector<8x8x2xf32>
      %450 = vector.broadcast %432 : f32 to vector<8x8x2xf32>
      %451 = arith.mulf %450, %449 : vector<8x8x2xf32>
      %452 = arith.addf %424, %451 : vector<8x8x2xf32>
      %c4_i32_345 = arith.constant 4 : i32
      %453 = arith.muli %arg5, %c4_i32_345 : i32
      %c1_i32_346 = arith.constant 1 : i32
      %454 = arith.addi %453, %c1_i32_346 : i32
      %c3_i32_347 = arith.constant 3 : i32
      %455 = arith.muli %454, %c3_i32_347 : i32
      %c2_i32_348 = arith.constant 2 : i32
      %456 = arith.addi %455, %c2_i32_348 : i32
      %c3_i32_349 = arith.constant 3 : i32
      %457 = arith.muli %456, %c3_i32_349 : i32
      %c1_i32_350 = arith.constant 1 : i32
      %458 = arith.addi %457, %c1_i32_350 : i32
      %459 = arith.index_cast %458 : i32 to index
      %460 = memref.load %arg1[%459] : memref<288xf32, #tpu.memory_space<smem>>
      %c5_351 = arith.constant 5 : index
      %c1_352 = arith.constant 1 : index
      %c0_353 = arith.constant 0 : index
      %c0_354 = arith.constant 0 : index
      %461 = vector.load %arg3[%c5_351, %c1_352, %c0_353, %c0_354] : memref<16x9x9x2xf32, #tpu.memory_space<vmem>>, vector<1x8x8x2xf32>
      %462 = vector.shape_cast %461 : vector<1x8x8x2xf32> to vector<8x8x2xf32>
      %463 = vector.broadcast %460 : f32 to vector<8x8x2xf32>
      %464 = arith.mulf %463, %462 : vector<8x8x2xf32>
      %465 = arith.addf %437, %464 : vector<8x8x2xf32>
      %c1_355 = arith.constant 1 : index
      %c1_356 = arith.constant 1 : index
      %c1_357 = arith.constant 1 : index
      %c0_358 = arith.constant 0 : index
      %466 = vector.load %arg3[%c1_355, %c1_356, %c1_357, %c0_358] : memref<16x9x9x2xf32, #tpu.memory_space<vmem>>, vector<1x8x8x2xf32>
      %467 = vector.shape_cast %466 : vector<1x8x8x2xf32> to vector<8x8x2xf32>
      %468 = vector.broadcast %460 : f32 to vector<8x8x2xf32>
      %469 = arith.mulf %468, %467 : vector<8x8x2xf32>
      %470 = arith.addf %442, %469 : vector<8x8x2xf32>
      %c13_359 = arith.constant 13 : index
      %c1_360 = arith.constant 1 : index
      %c0_361 = arith.constant 0 : index
      %c0_362 = arith.constant 0 : index
      %471 = vector.load %arg3[%c13_359, %c1_360, %c0_361, %c0_362] : memref<16x9x9x2xf32, #tpu.memory_space<vmem>>, vector<1x8x8x2xf32>
      %472 = vector.shape_cast %471 : vector<1x8x8x2xf32> to vector<8x8x2xf32>
      %473 = vector.broadcast %460 : f32 to vector<8x8x2xf32>
      %474 = arith.mulf %473, %472 : vector<8x8x2xf32>
      %475 = arith.addf %447, %474 : vector<8x8x2xf32>
      %c9_363 = arith.constant 9 : index
      %c1_364 = arith.constant 1 : index
      %c1_365 = arith.constant 1 : index
      %c0_366 = arith.constant 0 : index
      %476 = vector.load %arg3[%c9_363, %c1_364, %c1_365, %c0_366] : memref<16x9x9x2xf32, #tpu.memory_space<vmem>>, vector<1x8x8x2xf32>
      %477 = vector.shape_cast %476 : vector<1x8x8x2xf32> to vector<8x8x2xf32>
      %478 = vector.broadcast %460 : f32 to vector<8x8x2xf32>
      %479 = arith.mulf %478, %477 : vector<8x8x2xf32>
      %480 = arith.addf %452, %479 : vector<8x8x2xf32>
      %c4_i32_367 = arith.constant 4 : i32
      %481 = arith.muli %arg5, %c4_i32_367 : i32
      %c1_i32_368 = arith.constant 1 : i32
      %482 = arith.addi %481, %c1_i32_368 : i32
      %c3_i32_369 = arith.constant 3 : i32
      %483 = arith.muli %482, %c3_i32_369 : i32
      %c2_i32_370 = arith.constant 2 : i32
      %484 = arith.addi %483, %c2_i32_370 : i32
      %c3_i32_371 = arith.constant 3 : i32
      %485 = arith.muli %484, %c3_i32_371 : i32
      %c2_i32_372 = arith.constant 2 : i32
      %486 = arith.addi %485, %c2_i32_372 : i32
      %487 = arith.index_cast %486 : i32 to index
      %488 = memref.load %arg1[%487] : memref<288xf32, #tpu.memory_space<smem>>
      %c1_373 = arith.constant 1 : index
      %c1_374 = arith.constant 1 : index
      %c1_375 = arith.constant 1 : index
      %c0_376 = arith.constant 0 : index
      %489 = vector.load %arg3[%c1_373, %c1_374, %c1_375, %c0_376] : memref<16x9x9x2xf32, #tpu.memory_space<vmem>>, vector<1x8x8x2xf32>
      %490 = vector.shape_cast %489 : vector<1x8x8x2xf32> to vector<8x8x2xf32>
      %491 = vector.broadcast %488 : f32 to vector<8x8x2xf32>
      %492 = arith.mulf %491, %490 : vector<8x8x2xf32>
      %493 = arith.addf %465, %492 : vector<8x8x2xf32>
      %c5_377 = arith.constant 5 : index
      %c1_378 = arith.constant 1 : index
      %c1_379 = arith.constant 1 : index
      %c0_380 = arith.constant 0 : index
      %494 = vector.load %arg3[%c5_377, %c1_378, %c1_379, %c0_380] : memref<16x9x9x2xf32, #tpu.memory_space<vmem>>, vector<1x8x8x2xf32>
      %495 = vector.shape_cast %494 : vector<1x8x8x2xf32> to vector<8x8x2xf32>
      %496 = vector.broadcast %488 : f32 to vector<8x8x2xf32>
      %497 = arith.mulf %496, %495 : vector<8x8x2xf32>
      %498 = arith.addf %470, %497 : vector<8x8x2xf32>
      %c9_381 = arith.constant 9 : index
      %c1_382 = arith.constant 1 : index
      %c1_383 = arith.constant 1 : index
      %c0_384 = arith.constant 0 : index
      %499 = vector.load %arg3[%c9_381, %c1_382, %c1_383, %c0_384] : memref<16x9x9x2xf32, #tpu.memory_space<vmem>>, vector<1x8x8x2xf32>
      %500 = vector.shape_cast %499 : vector<1x8x8x2xf32> to vector<8x8x2xf32>
      %501 = vector.broadcast %488 : f32 to vector<8x8x2xf32>
      %502 = arith.mulf %501, %500 : vector<8x8x2xf32>
      %503 = arith.addf %475, %502 : vector<8x8x2xf32>
      %c13_385 = arith.constant 13 : index
      %c1_386 = arith.constant 1 : index
      %c1_387 = arith.constant 1 : index
      %c0_388 = arith.constant 0 : index
      %504 = vector.load %arg3[%c13_385, %c1_386, %c1_387, %c0_388] : memref<16x9x9x2xf32, #tpu.memory_space<vmem>>, vector<1x8x8x2xf32>
      %505 = vector.shape_cast %504 : vector<1x8x8x2xf32> to vector<8x8x2xf32>
      %506 = vector.broadcast %488 : f32 to vector<8x8x2xf32>
      %507 = arith.mulf %506, %505 : vector<8x8x2xf32>
      %508 = arith.addf %480, %507 : vector<8x8x2xf32>
      %c4_i32_389 = arith.constant 4 : i32
      %509 = arith.muli %arg5, %c4_i32_389 : i32
      %c2_i32_390 = arith.constant 2 : i32
      %510 = arith.addi %509, %c2_i32_390 : i32
      %c3_i32_391 = arith.constant 3 : i32
      %511 = arith.muli %510, %c3_i32_391 : i32
      %c0_i32_392 = arith.constant 0 : i32
      %512 = arith.addi %511, %c0_i32_392 : i32
      %c3_i32_393 = arith.constant 3 : i32
      %513 = arith.muli %512, %c3_i32_393 : i32
      %c0_i32_394 = arith.constant 0 : i32
      %514 = arith.addi %513, %c0_i32_394 : i32
      %515 = arith.index_cast %514 : i32 to index
      %516 = memref.load %arg1[%515] : memref<288xf32, #tpu.memory_space<smem>>
      %c2 = arith.constant 2 : index
      %c0_395 = arith.constant 0 : index
      %c0_396 = arith.constant 0 : index
      %c0_397 = arith.constant 0 : index
      %517 = vector.load %arg3[%c2, %c0_395, %c0_396, %c0_397] : memref<16x9x9x2xf32, #tpu.memory_space<vmem>>, vector<1x8x8x2xf32>
      %518 = vector.shape_cast %517 : vector<1x8x8x2xf32> to vector<8x8x2xf32>
      %519 = vector.broadcast %516 : f32 to vector<8x8x2xf32>
      %520 = arith.mulf %519, %518 : vector<8x8x2xf32>
      %521 = arith.addf %493, %520 : vector<8x8x2xf32>
      %c6 = arith.constant 6 : index
      %c0_398 = arith.constant 0 : index
      %c0_399 = arith.constant 0 : index
      %c0_400 = arith.constant 0 : index
      %522 = vector.load %arg3[%c6, %c0_398, %c0_399, %c0_400] : memref<16x9x9x2xf32, #tpu.memory_space<vmem>>, vector<1x8x8x2xf32>
      %523 = vector.shape_cast %522 : vector<1x8x8x2xf32> to vector<8x8x2xf32>
      %524 = vector.broadcast %516 : f32 to vector<8x8x2xf32>
      %525 = arith.mulf %524, %523 : vector<8x8x2xf32>
      %526 = arith.addf %498, %525 : vector<8x8x2xf32>
      %c10 = arith.constant 10 : index
      %c0_401 = arith.constant 0 : index
      %c0_402 = arith.constant 0 : index
      %c0_403 = arith.constant 0 : index
      %527 = vector.load %arg3[%c10, %c0_401, %c0_402, %c0_403] : memref<16x9x9x2xf32, #tpu.memory_space<vmem>>, vector<1x8x8x2xf32>
      %528 = vector.shape_cast %527 : vector<1x8x8x2xf32> to vector<8x8x2xf32>
      %529 = vector.broadcast %516 : f32 to vector<8x8x2xf32>
      %530 = arith.mulf %529, %528 : vector<8x8x2xf32>
      %531 = arith.addf %503, %530 : vector<8x8x2xf32>
      %c14 = arith.constant 14 : index
      %c0_404 = arith.constant 0 : index
      %c0_405 = arith.constant 0 : index
      %c0_406 = arith.constant 0 : index
      %532 = vector.load %arg3[%c14, %c0_404, %c0_405, %c0_406] : memref<16x9x9x2xf32, #tpu.memory_space<vmem>>, vector<1x8x8x2xf32>
      %533 = vector.shape_cast %532 : vector<1x8x8x2xf32> to vector<8x8x2xf32>
      %534 = vector.broadcast %516 : f32 to vector<8x8x2xf32>
      %535 = arith.mulf %534, %533 : vector<8x8x2xf32>
      %536 = arith.addf %508, %535 : vector<8x8x2xf32>
      %c4_i32_407 = arith.constant 4 : i32
      %537 = arith.muli %arg5, %c4_i32_407 : i32
      %c2_i32_408 = arith.constant 2 : i32
      %538 = arith.addi %537, %c2_i32_408 : i32
      %c3_i32_409 = arith.constant 3 : i32
      %539 = arith.muli %538, %c3_i32_409 : i32
      %c0_i32_410 = arith.constant 0 : i32
      %540 = arith.addi %539, %c0_i32_410 : i32
      %c3_i32_411 = arith.constant 3 : i32
      %541 = arith.muli %540, %c3_i32_411 : i32
      %c1_i32_412 = arith.constant 1 : i32
      %542 = arith.addi %541, %c1_i32_412 : i32
      %543 = arith.index_cast %542 : i32 to index
      %544 = memref.load %arg1[%543] : memref<288xf32, #tpu.memory_space<smem>>
      %c6_413 = arith.constant 6 : index
      %c0_414 = arith.constant 0 : index
      %c0_415 = arith.constant 0 : index
      %c0_416 = arith.constant 0 : index
      %545 = vector.load %arg3[%c6_413, %c0_414, %c0_415, %c0_416] : memref<16x9x9x2xf32, #tpu.memory_space<vmem>>, vector<1x8x8x2xf32>
      %546 = vector.shape_cast %545 : vector<1x8x8x2xf32> to vector<8x8x2xf32>
      %547 = vector.broadcast %544 : f32 to vector<8x8x2xf32>
      %548 = arith.mulf %547, %546 : vector<8x8x2xf32>
      %549 = arith.addf %521, %548 : vector<8x8x2xf32>
      %c2_417 = arith.constant 2 : index
      %c0_418 = arith.constant 0 : index
      %c1_419 = arith.constant 1 : index
      %c0_420 = arith.constant 0 : index
      %550 = vector.load %arg3[%c2_417, %c0_418, %c1_419, %c0_420] : memref<16x9x9x2xf32, #tpu.memory_space<vmem>>, vector<1x8x8x2xf32>
      %551 = vector.shape_cast %550 : vector<1x8x8x2xf32> to vector<8x8x2xf32>
      %552 = vector.broadcast %544 : f32 to vector<8x8x2xf32>
      %553 = arith.mulf %552, %551 : vector<8x8x2xf32>
      %554 = arith.addf %526, %553 : vector<8x8x2xf32>
      %c14_421 = arith.constant 14 : index
      %c0_422 = arith.constant 0 : index
      %c0_423 = arith.constant 0 : index
      %c0_424 = arith.constant 0 : index
      %555 = vector.load %arg3[%c14_421, %c0_422, %c0_423, %c0_424] : memref<16x9x9x2xf32, #tpu.memory_space<vmem>>, vector<1x8x8x2xf32>
      %556 = vector.shape_cast %555 : vector<1x8x8x2xf32> to vector<8x8x2xf32>
      %557 = vector.broadcast %544 : f32 to vector<8x8x2xf32>
      %558 = arith.mulf %557, %556 : vector<8x8x2xf32>
      %559 = arith.addf %531, %558 : vector<8x8x2xf32>
      %c10_425 = arith.constant 10 : index
      %c0_426 = arith.constant 0 : index
      %c1_427 = arith.constant 1 : index
      %c0_428 = arith.constant 0 : index
      %560 = vector.load %arg3[%c10_425, %c0_426, %c1_427, %c0_428] : memref<16x9x9x2xf32, #tpu.memory_space<vmem>>, vector<1x8x8x2xf32>
      %561 = vector.shape_cast %560 : vector<1x8x8x2xf32> to vector<8x8x2xf32>
      %562 = vector.broadcast %544 : f32 to vector<8x8x2xf32>
      %563 = arith.mulf %562, %561 : vector<8x8x2xf32>
      %564 = arith.addf %536, %563 : vector<8x8x2xf32>
      %c4_i32_429 = arith.constant 4 : i32
      %565 = arith.muli %arg5, %c4_i32_429 : i32
      %c2_i32_430 = arith.constant 2 : i32
      %566 = arith.addi %565, %c2_i32_430 : i32
      %c3_i32_431 = arith.constant 3 : i32
      %567 = arith.muli %566, %c3_i32_431 : i32
      %c0_i32_432 = arith.constant 0 : i32
      %568 = arith.addi %567, %c0_i32_432 : i32
      %c3_i32_433 = arith.constant 3 : i32
      %569 = arith.muli %568, %c3_i32_433 : i32
      %c2_i32_434 = arith.constant 2 : i32
      %570 = arith.addi %569, %c2_i32_434 : i32
      %571 = arith.index_cast %570 : i32 to index
      %572 = memref.load %arg1[%571] : memref<288xf32, #tpu.memory_space<smem>>
      %c2_435 = arith.constant 2 : index
      %c0_436 = arith.constant 0 : index
      %c1_437 = arith.constant 1 : index
      %c0_438 = arith.constant 0 : index
      %573 = vector.load %arg3[%c2_435, %c0_436, %c1_437, %c0_438] : memref<16x9x9x2xf32, #tpu.memory_space<vmem>>, vector<1x8x8x2xf32>
      %574 = vector.shape_cast %573 : vector<1x8x8x2xf32> to vector<8x8x2xf32>
      %575 = vector.broadcast %572 : f32 to vector<8x8x2xf32>
      %576 = arith.mulf %575, %574 : vector<8x8x2xf32>
      %577 = arith.addf %549, %576 : vector<8x8x2xf32>
      %c6_439 = arith.constant 6 : index
      %c0_440 = arith.constant 0 : index
      %c1_441 = arith.constant 1 : index
      %c0_442 = arith.constant 0 : index
      %578 = vector.load %arg3[%c6_439, %c0_440, %c1_441, %c0_442] : memref<16x9x9x2xf32, #tpu.memory_space<vmem>>, vector<1x8x8x2xf32>
      %579 = vector.shape_cast %578 : vector<1x8x8x2xf32> to vector<8x8x2xf32>
      %580 = vector.broadcast %572 : f32 to vector<8x8x2xf32>
      %581 = arith.mulf %580, %579 : vector<8x8x2xf32>
      %582 = arith.addf %554, %581 : vector<8x8x2xf32>
      %c10_443 = arith.constant 10 : index
      %c0_444 = arith.constant 0 : index
      %c1_445 = arith.constant 1 : index
      %c0_446 = arith.constant 0 : index
      %583 = vector.load %arg3[%c10_443, %c0_444, %c1_445, %c0_446] : memref<16x9x9x2xf32, #tpu.memory_space<vmem>>, vector<1x8x8x2xf32>
      %584 = vector.shape_cast %583 : vector<1x8x8x2xf32> to vector<8x8x2xf32>
      %585 = vector.broadcast %572 : f32 to vector<8x8x2xf32>
      %586 = arith.mulf %585, %584 : vector<8x8x2xf32>
      %587 = arith.addf %559, %586 : vector<8x8x2xf32>
      %c14_447 = arith.constant 14 : index
      %c0_448 = arith.constant 0 : index
      %c1_449 = arith.constant 1 : index
      %c0_450 = arith.constant 0 : index
      %588 = vector.load %arg3[%c14_447, %c0_448, %c1_449, %c0_450] : memref<16x9x9x2xf32, #tpu.memory_space<vmem>>, vector<1x8x8x2xf32>
      %589 = vector.shape_cast %588 : vector<1x8x8x2xf32> to vector<8x8x2xf32>
      %590 = vector.broadcast %572 : f32 to vector<8x8x2xf32>
      %591 = arith.mulf %590, %589 : vector<8x8x2xf32>
      %592 = arith.addf %564, %591 : vector<8x8x2xf32>
      %c4_i32_451 = arith.constant 4 : i32
      %593 = arith.muli %arg5, %c4_i32_451 : i32
      %c2_i32_452 = arith.constant 2 : i32
      %594 = arith.addi %593, %c2_i32_452 : i32
      %c3_i32_453 = arith.constant 3 : i32
      %595 = arith.muli %594, %c3_i32_453 : i32
      %c1_i32_454 = arith.constant 1 : i32
      %596 = arith.addi %595, %c1_i32_454 : i32
      %c3_i32_455 = arith.constant 3 : i32
      %597 = arith.muli %596, %c3_i32_455 : i32
      %c0_i32_456 = arith.constant 0 : i32
      %598 = arith.addi %597, %c0_i32_456 : i32
      %599 = arith.index_cast %598 : i32 to index
      %600 = memref.load %arg1[%599] : memref<288xf32, #tpu.memory_space<smem>>
      %c10_457 = arith.constant 10 : index
      %c0_458 = arith.constant 0 : index
      %c0_459 = arith.constant 0 : index
      %c0_460 = arith.constant 0 : index
      %601 = vector.load %arg3[%c10_457, %c0_458, %c0_459, %c0_460] : memref<16x9x9x2xf32, #tpu.memory_space<vmem>>, vector<1x8x8x2xf32>
      %602 = vector.shape_cast %601 : vector<1x8x8x2xf32> to vector<8x8x2xf32>
      %603 = vector.broadcast %600 : f32 to vector<8x8x2xf32>
      %604 = arith.mulf %603, %602 : vector<8x8x2xf32>
      %605 = arith.addf %577, %604 : vector<8x8x2xf32>
      %c14_461 = arith.constant 14 : index
      %c0_462 = arith.constant 0 : index
      %c0_463 = arith.constant 0 : index
      %c0_464 = arith.constant 0 : index
      %606 = vector.load %arg3[%c14_461, %c0_462, %c0_463, %c0_464] : memref<16x9x9x2xf32, #tpu.memory_space<vmem>>, vector<1x8x8x2xf32>
      %607 = vector.shape_cast %606 : vector<1x8x8x2xf32> to vector<8x8x2xf32>
      %608 = vector.broadcast %600 : f32 to vector<8x8x2xf32>
      %609 = arith.mulf %608, %607 : vector<8x8x2xf32>
      %610 = arith.addf %582, %609 : vector<8x8x2xf32>
      %c2_465 = arith.constant 2 : index
      %c1_466 = arith.constant 1 : index
      %c0_467 = arith.constant 0 : index
      %c0_468 = arith.constant 0 : index
      %611 = vector.load %arg3[%c2_465, %c1_466, %c0_467, %c0_468] : memref<16x9x9x2xf32, #tpu.memory_space<vmem>>, vector<1x8x8x2xf32>
      %612 = vector.shape_cast %611 : vector<1x8x8x2xf32> to vector<8x8x2xf32>
      %613 = vector.broadcast %600 : f32 to vector<8x8x2xf32>
      %614 = arith.mulf %613, %612 : vector<8x8x2xf32>
      %615 = arith.addf %587, %614 : vector<8x8x2xf32>
      %c6_469 = arith.constant 6 : index
      %c1_470 = arith.constant 1 : index
      %c0_471 = arith.constant 0 : index
      %c0_472 = arith.constant 0 : index
      %616 = vector.load %arg3[%c6_469, %c1_470, %c0_471, %c0_472] : memref<16x9x9x2xf32, #tpu.memory_space<vmem>>, vector<1x8x8x2xf32>
      %617 = vector.shape_cast %616 : vector<1x8x8x2xf32> to vector<8x8x2xf32>
      %618 = vector.broadcast %600 : f32 to vector<8x8x2xf32>
      %619 = arith.mulf %618, %617 : vector<8x8x2xf32>
      %620 = arith.addf %592, %619 : vector<8x8x2xf32>
      %c4_i32_473 = arith.constant 4 : i32
      %621 = arith.muli %arg5, %c4_i32_473 : i32
      %c2_i32_474 = arith.constant 2 : i32
      %622 = arith.addi %621, %c2_i32_474 : i32
      %c3_i32_475 = arith.constant 3 : i32
      %623 = arith.muli %622, %c3_i32_475 : i32
      %c1_i32_476 = arith.constant 1 : i32
      %624 = arith.addi %623, %c1_i32_476 : i32
      %c3_i32_477 = arith.constant 3 : i32
      %625 = arith.muli %624, %c3_i32_477 : i32
      %c1_i32_478 = arith.constant 1 : i32
      %626 = arith.addi %625, %c1_i32_478 : i32
      %627 = arith.index_cast %626 : i32 to index
      %628 = memref.load %arg1[%627] : memref<288xf32, #tpu.memory_space<smem>>
      %c14_479 = arith.constant 14 : index
      %c0_480 = arith.constant 0 : index
      %c0_481 = arith.constant 0 : index
      %c0_482 = arith.constant 0 : index
      %629 = vector.load %arg3[%c14_479, %c0_480, %c0_481, %c0_482] : memref<16x9x9x2xf32, #tpu.memory_space<vmem>>, vector<1x8x8x2xf32>
      %630 = vector.shape_cast %629 : vector<1x8x8x2xf32> to vector<8x8x2xf32>
      %631 = vector.broadcast %628 : f32 to vector<8x8x2xf32>
      %632 = arith.mulf %631, %630 : vector<8x8x2xf32>
      %633 = arith.addf %605, %632 : vector<8x8x2xf32>
      %c10_483 = arith.constant 10 : index
      %c0_484 = arith.constant 0 : index
      %c1_485 = arith.constant 1 : index
      %c0_486 = arith.constant 0 : index
      %634 = vector.load %arg3[%c10_483, %c0_484, %c1_485, %c0_486] : memref<16x9x9x2xf32, #tpu.memory_space<vmem>>, vector<1x8x8x2xf32>
      %635 = vector.shape_cast %634 : vector<1x8x8x2xf32> to vector<8x8x2xf32>
      %636 = vector.broadcast %628 : f32 to vector<8x8x2xf32>
      %637 = arith.mulf %636, %635 : vector<8x8x2xf32>
      %638 = arith.addf %610, %637 : vector<8x8x2xf32>
      %c6_487 = arith.constant 6 : index
      %c1_488 = arith.constant 1 : index
      %c0_489 = arith.constant 0 : index
      %c0_490 = arith.constant 0 : index
      %639 = vector.load %arg3[%c6_487, %c1_488, %c0_489, %c0_490] : memref<16x9x9x2xf32, #tpu.memory_space<vmem>>, vector<1x8x8x2xf32>
      %640 = vector.shape_cast %639 : vector<1x8x8x2xf32> to vector<8x8x2xf32>
      %641 = vector.broadcast %628 : f32 to vector<8x8x2xf32>
      %642 = arith.mulf %641, %640 : vector<8x8x2xf32>
      %643 = arith.addf %615, %642 : vector<8x8x2xf32>
      %c2_491 = arith.constant 2 : index
      %c1_492 = arith.constant 1 : index
      %c1_493 = arith.constant 1 : index
      %c0_494 = arith.constant 0 : index
      %644 = vector.load %arg3[%c2_491, %c1_492, %c1_493, %c0_494] : memref<16x9x9x2xf32, #tpu.memory_space<vmem>>, vector<1x8x8x2xf32>
      %645 = vector.shape_cast %644 : vector<1x8x8x2xf32> to vector<8x8x2xf32>
      %646 = vector.broadcast %628 : f32 to vector<8x8x2xf32>
      %647 = arith.mulf %646, %645 : vector<8x8x2xf32>
      %648 = arith.addf %620, %647 : vector<8x8x2xf32>
      %c4_i32_495 = arith.constant 4 : i32
      %649 = arith.muli %arg5, %c4_i32_495 : i32
      %c2_i32_496 = arith.constant 2 : i32
      %650 = arith.addi %649, %c2_i32_496 : i32
      %c3_i32_497 = arith.constant 3 : i32
      %651 = arith.muli %650, %c3_i32_497 : i32
      %c1_i32_498 = arith.constant 1 : i32
      %652 = arith.addi %651, %c1_i32_498 : i32
      %c3_i32_499 = arith.constant 3 : i32
      %653 = arith.muli %652, %c3_i32_499 : i32
      %c2_i32_500 = arith.constant 2 : i32
      %654 = arith.addi %653, %c2_i32_500 : i32
      %655 = arith.index_cast %654 : i32 to index
      %656 = memref.load %arg1[%655] : memref<288xf32, #tpu.memory_space<smem>>
      %c10_501 = arith.constant 10 : index
      %c0_502 = arith.constant 0 : index
      %c1_503 = arith.constant 1 : index
      %c0_504 = arith.constant 0 : index
      %657 = vector.load %arg3[%c10_501, %c0_502, %c1_503, %c0_504] : memref<16x9x9x2xf32, #tpu.memory_space<vmem>>, vector<1x8x8x2xf32>
      %658 = vector.shape_cast %657 : vector<1x8x8x2xf32> to vector<8x8x2xf32>
      %659 = vector.broadcast %656 : f32 to vector<8x8x2xf32>
      %660 = arith.mulf %659, %658 : vector<8x8x2xf32>
      %661 = arith.addf %633, %660 : vector<8x8x2xf32>
      %c14_505 = arith.constant 14 : index
      %c0_506 = arith.constant 0 : index
      %c1_507 = arith.constant 1 : index
      %c0_508 = arith.constant 0 : index
      %662 = vector.load %arg3[%c14_505, %c0_506, %c1_507, %c0_508] : memref<16x9x9x2xf32, #tpu.memory_space<vmem>>, vector<1x8x8x2xf32>
      %663 = vector.shape_cast %662 : vector<1x8x8x2xf32> to vector<8x8x2xf32>
      %664 = vector.broadcast %656 : f32 to vector<8x8x2xf32>
      %665 = arith.mulf %664, %663 : vector<8x8x2xf32>
      %666 = arith.addf %638, %665 : vector<8x8x2xf32>
      %c2_509 = arith.constant 2 : index
      %c1_510 = arith.constant 1 : index
      %c1_511 = arith.constant 1 : index
      %c0_512 = arith.constant 0 : index
      %667 = vector.load %arg3[%c2_509, %c1_510, %c1_511, %c0_512] : memref<16x9x9x2xf32, #tpu.memory_space<vmem>>, vector<1x8x8x2xf32>
      %668 = vector.shape_cast %667 : vector<1x8x8x2xf32> to vector<8x8x2xf32>
      %669 = vector.broadcast %656 : f32 to vector<8x8x2xf32>
      %670 = arith.mulf %669, %668 : vector<8x8x2xf32>
      %671 = arith.addf %643, %670 : vector<8x8x2xf32>
      %c6_513 = arith.constant 6 : index
      %c1_514 = arith.constant 1 : index
      %c1_515 = arith.constant 1 : index
      %c0_516 = arith.constant 0 : index
      %672 = vector.load %arg3[%c6_513, %c1_514, %c1_515, %c0_516] : memref<16x9x9x2xf32, #tpu.memory_space<vmem>>, vector<1x8x8x2xf32>
      %673 = vector.shape_cast %672 : vector<1x8x8x2xf32> to vector<8x8x2xf32>
      %674 = vector.broadcast %656 : f32 to vector<8x8x2xf32>
      %675 = arith.mulf %674, %673 : vector<8x8x2xf32>
      %676 = arith.addf %648, %675 : vector<8x8x2xf32>
      %c4_i32_517 = arith.constant 4 : i32
      %677 = arith.muli %arg5, %c4_i32_517 : i32
      %c2_i32_518 = arith.constant 2 : i32
      %678 = arith.addi %677, %c2_i32_518 : i32
      %c3_i32_519 = arith.constant 3 : i32
      %679 = arith.muli %678, %c3_i32_519 : i32
      %c2_i32_520 = arith.constant 2 : i32
      %680 = arith.addi %679, %c2_i32_520 : i32
      %c3_i32_521 = arith.constant 3 : i32
      %681 = arith.muli %680, %c3_i32_521 : i32
      %c0_i32_522 = arith.constant 0 : i32
      %682 = arith.addi %681, %c0_i32_522 : i32
      %683 = arith.index_cast %682 : i32 to index
      %684 = memref.load %arg1[%683] : memref<288xf32, #tpu.memory_space<smem>>
      %c2_523 = arith.constant 2 : index
      %c1_524 = arith.constant 1 : index
      %c0_525 = arith.constant 0 : index
      %c0_526 = arith.constant 0 : index
      %685 = vector.load %arg3[%c2_523, %c1_524, %c0_525, %c0_526] : memref<16x9x9x2xf32, #tpu.memory_space<vmem>>, vector<1x8x8x2xf32>
      %686 = vector.shape_cast %685 : vector<1x8x8x2xf32> to vector<8x8x2xf32>
      %687 = vector.broadcast %684 : f32 to vector<8x8x2xf32>
      %688 = arith.mulf %687, %686 : vector<8x8x2xf32>
      %689 = arith.addf %661, %688 : vector<8x8x2xf32>
      %c6_527 = arith.constant 6 : index
      %c1_528 = arith.constant 1 : index
      %c0_529 = arith.constant 0 : index
      %c0_530 = arith.constant 0 : index
      %690 = vector.load %arg3[%c6_527, %c1_528, %c0_529, %c0_530] : memref<16x9x9x2xf32, #tpu.memory_space<vmem>>, vector<1x8x8x2xf32>
      %691 = vector.shape_cast %690 : vector<1x8x8x2xf32> to vector<8x8x2xf32>
      %692 = vector.broadcast %684 : f32 to vector<8x8x2xf32>
      %693 = arith.mulf %692, %691 : vector<8x8x2xf32>
      %694 = arith.addf %666, %693 : vector<8x8x2xf32>
      %c10_531 = arith.constant 10 : index
      %c1_532 = arith.constant 1 : index
      %c0_533 = arith.constant 0 : index
      %c0_534 = arith.constant 0 : index
      %695 = vector.load %arg3[%c10_531, %c1_532, %c0_533, %c0_534] : memref<16x9x9x2xf32, #tpu.memory_space<vmem>>, vector<1x8x8x2xf32>
      %696 = vector.shape_cast %695 : vector<1x8x8x2xf32> to vector<8x8x2xf32>
      %697 = vector.broadcast %684 : f32 to vector<8x8x2xf32>
      %698 = arith.mulf %697, %696 : vector<8x8x2xf32>
      %699 = arith.addf %671, %698 : vector<8x8x2xf32>
      %c14_535 = arith.constant 14 : index
      %c1_536 = arith.constant 1 : index
      %c0_537 = arith.constant 0 : index
      %c0_538 = arith.constant 0 : index
      %700 = vector.load %arg3[%c14_535, %c1_536, %c0_537, %c0_538] : memref<16x9x9x2xf32, #tpu.memory_space<vmem>>, vector<1x8x8x2xf32>
      %701 = vector.shape_cast %700 : vector<1x8x8x2xf32> to vector<8x8x2xf32>
      %702 = vector.broadcast %684 : f32 to vector<8x8x2xf32>
      %703 = arith.mulf %702, %701 : vector<8x8x2xf32>
      %704 = arith.addf %676, %703 : vector<8x8x2xf32>
      %c4_i32_539 = arith.constant 4 : i32
      %705 = arith.muli %arg5, %c4_i32_539 : i32
      %c2_i32_540 = arith.constant 2 : i32
      %706 = arith.addi %705, %c2_i32_540 : i32
      %c3_i32_541 = arith.constant 3 : i32
      %707 = arith.muli %706, %c3_i32_541 : i32
      %c2_i32_542 = arith.constant 2 : i32
      %708 = arith.addi %707, %c2_i32_542 : i32
      %c3_i32_543 = arith.constant 3 : i32
      %709 = arith.muli %708, %c3_i32_543 : i32
      %c1_i32_544 = arith.constant 1 : i32
      %710 = arith.addi %709, %c1_i32_544 : i32
      %711 = arith.index_cast %710 : i32 to index
      %712 = memref.load %arg1[%711] : memref<288xf32, #tpu.memory_space<smem>>
      %c6_545 = arith.constant 6 : index
      %c1_546 = arith.constant 1 : index
      %c0_547 = arith.constant 0 : index
      %c0_548 = arith.constant 0 : index
      %713 = vector.load %arg3[%c6_545, %c1_546, %c0_547, %c0_548] : memref<16x9x9x2xf32, #tpu.memory_space<vmem>>, vector<1x8x8x2xf32>
      %714 = vector.shape_cast %713 : vector<1x8x8x2xf32> to vector<8x8x2xf32>
      %715 = vector.broadcast %712 : f32 to vector<8x8x2xf32>
      %716 = arith.mulf %715, %714 : vector<8x8x2xf32>
      %717 = arith.addf %689, %716 : vector<8x8x2xf32>
      %c2_549 = arith.constant 2 : index
      %c1_550 = arith.constant 1 : index
      %c1_551 = arith.constant 1 : index
      %c0_552 = arith.constant 0 : index
      %718 = vector.load %arg3[%c2_549, %c1_550, %c1_551, %c0_552] : memref<16x9x9x2xf32, #tpu.memory_space<vmem>>, vector<1x8x8x2xf32>
      %719 = vector.shape_cast %718 : vector<1x8x8x2xf32> to vector<8x8x2xf32>
      %720 = vector.broadcast %712 : f32 to vector<8x8x2xf32>
      %721 = arith.mulf %720, %719 : vector<8x8x2xf32>
      %722 = arith.addf %694, %721 : vector<8x8x2xf32>
      %c14_553 = arith.constant 14 : index
      %c1_554 = arith.constant 1 : index
      %c0_555 = arith.constant 0 : index
      %c0_556 = arith.constant 0 : index
      %723 = vector.load %arg3[%c14_553, %c1_554, %c0_555, %c0_556] : memref<16x9x9x2xf32, #tpu.memory_space<vmem>>, vector<1x8x8x2xf32>
      %724 = vector.shape_cast %723 : vector<1x8x8x2xf32> to vector<8x8x2xf32>
      %725 = vector.broadcast %712 : f32 to vector<8x8x2xf32>
      %726 = arith.mulf %725, %724 : vector<8x8x2xf32>
      %727 = arith.addf %699, %726 : vector<8x8x2xf32>
      %c10_557 = arith.constant 10 : index
      %c1_558 = arith.constant 1 : index
      %c1_559 = arith.constant 1 : index
      %c0_560 = arith.constant 0 : index
      %728 = vector.load %arg3[%c10_557, %c1_558, %c1_559, %c0_560] : memref<16x9x9x2xf32, #tpu.memory_space<vmem>>, vector<1x8x8x2xf32>
      %729 = vector.shape_cast %728 : vector<1x8x8x2xf32> to vector<8x8x2xf32>
      %730 = vector.broadcast %712 : f32 to vector<8x8x2xf32>
      %731 = arith.mulf %730, %729 : vector<8x8x2xf32>
      %732 = arith.addf %704, %731 : vector<8x8x2xf32>
      %c4_i32_561 = arith.constant 4 : i32
      %733 = arith.muli %arg5, %c4_i32_561 : i32
      %c2_i32_562 = arith.constant 2 : i32
      %734 = arith.addi %733, %c2_i32_562 : i32
      %c3_i32_563 = arith.constant 3 : i32
      %735 = arith.muli %734, %c3_i32_563 : i32
      %c2_i32_564 = arith.constant 2 : i32
      %736 = arith.addi %735, %c2_i32_564 : i32
      %c3_i32_565 = arith.constant 3 : i32
      %737 = arith.muli %736, %c3_i32_565 : i32
      %c2_i32_566 = arith.constant 2 : i32
      %738 = arith.addi %737, %c2_i32_566 : i32
      %739 = arith.index_cast %738 : i32 to index
      %740 = memref.load %arg1[%739] : memref<288xf32, #tpu.memory_space<smem>>
      %c2_567 = arith.constant 2 : index
      %c1_568 = arith.constant 1 : index
      %c1_569 = arith.constant 1 : index
      %c0_570 = arith.constant 0 : index
      %741 = vector.load %arg3[%c2_567, %c1_568, %c1_569, %c0_570] : memref<16x9x9x2xf32, #tpu.memory_space<vmem>>, vector<1x8x8x2xf32>
      %742 = vector.shape_cast %741 : vector<1x8x8x2xf32> to vector<8x8x2xf32>
      %743 = vector.broadcast %740 : f32 to vector<8x8x2xf32>
      %744 = arith.mulf %743, %742 : vector<8x8x2xf32>
      %745 = arith.addf %717, %744 : vector<8x8x2xf32>
      %c6_571 = arith.constant 6 : index
      %c1_572 = arith.constant 1 : index
      %c1_573 = arith.constant 1 : index
      %c0_574 = arith.constant 0 : index
      %746 = vector.load %arg3[%c6_571, %c1_572, %c1_573, %c0_574] : memref<16x9x9x2xf32, #tpu.memory_space<vmem>>, vector<1x8x8x2xf32>
      %747 = vector.shape_cast %746 : vector<1x8x8x2xf32> to vector<8x8x2xf32>
      %748 = vector.broadcast %740 : f32 to vector<8x8x2xf32>
      %749 = arith.mulf %748, %747 : vector<8x8x2xf32>
      %750 = arith.addf %722, %749 : vector<8x8x2xf32>
      %c10_575 = arith.constant 10 : index
      %c1_576 = arith.constant 1 : index
      %c1_577 = arith.constant 1 : index
      %c0_578 = arith.constant 0 : index
      %751 = vector.load %arg3[%c10_575, %c1_576, %c1_577, %c0_578] : memref<16x9x9x2xf32, #tpu.memory_space<vmem>>, vector<1x8x8x2xf32>
      %752 = vector.shape_cast %751 : vector<1x8x8x2xf32> to vector<8x8x2xf32>
      %753 = vector.broadcast %740 : f32 to vector<8x8x2xf32>
      %754 = arith.mulf %753, %752 : vector<8x8x2xf32>
      %755 = arith.addf %727, %754 : vector<8x8x2xf32>
      %c14_579 = arith.constant 14 : index
      %c1_580 = arith.constant 1 : index
      %c1_581 = arith.constant 1 : index
      %c0_582 = arith.constant 0 : index
      %756 = vector.load %arg3[%c14_579, %c1_580, %c1_581, %c0_582] : memref<16x9x9x2xf32, #tpu.memory_space<vmem>>, vector<1x8x8x2xf32>
      %757 = vector.shape_cast %756 : vector<1x8x8x2xf32> to vector<8x8x2xf32>
      %758 = vector.broadcast %740 : f32 to vector<8x8x2xf32>
      %759 = arith.mulf %758, %757 : vector<8x8x2xf32>
      %760 = arith.addf %732, %759 : vector<8x8x2xf32>
      %c4_i32_583 = arith.constant 4 : i32
      %761 = arith.muli %arg5, %c4_i32_583 : i32
      %c3_i32_584 = arith.constant 3 : i32
      %762 = arith.addi %761, %c3_i32_584 : i32
      %c3_i32_585 = arith.constant 3 : i32
      %763 = arith.muli %762, %c3_i32_585 : i32
      %c0_i32_586 = arith.constant 0 : i32
      %764 = arith.addi %763, %c0_i32_586 : i32
      %c3_i32_587 = arith.constant 3 : i32
      %765 = arith.muli %764, %c3_i32_587 : i32
      %c0_i32_588 = arith.constant 0 : i32
      %766 = arith.addi %765, %c0_i32_588 : i32
      %767 = arith.index_cast %766 : i32 to index
      %768 = memref.load %arg1[%767] : memref<288xf32, #tpu.memory_space<smem>>
      %c3 = arith.constant 3 : index
      %c0_589 = arith.constant 0 : index
      %c0_590 = arith.constant 0 : index
      %c0_591 = arith.constant 0 : index
      %769 = vector.load %arg3[%c3, %c0_589, %c0_590, %c0_591] : memref<16x9x9x2xf32, #tpu.memory_space<vmem>>, vector<1x8x8x2xf32>
      %770 = vector.shape_cast %769 : vector<1x8x8x2xf32> to vector<8x8x2xf32>
      %771 = vector.broadcast %768 : f32 to vector<8x8x2xf32>
      %772 = arith.mulf %771, %770 : vector<8x8x2xf32>
      %773 = arith.addf %745, %772 : vector<8x8x2xf32>
      %c7 = arith.constant 7 : index
      %c0_592 = arith.constant 0 : index
      %c0_593 = arith.constant 0 : index
      %c0_594 = arith.constant 0 : index
      %774 = vector.load %arg3[%c7, %c0_592, %c0_593, %c0_594] : memref<16x9x9x2xf32, #tpu.memory_space<vmem>>, vector<1x8x8x2xf32>
      %775 = vector.shape_cast %774 : vector<1x8x8x2xf32> to vector<8x8x2xf32>
      %776 = vector.broadcast %768 : f32 to vector<8x8x2xf32>
      %777 = arith.mulf %776, %775 : vector<8x8x2xf32>
      %778 = arith.addf %750, %777 : vector<8x8x2xf32>
      %c11 = arith.constant 11 : index
      %c0_595 = arith.constant 0 : index
      %c0_596 = arith.constant 0 : index
      %c0_597 = arith.constant 0 : index
      %779 = vector.load %arg3[%c11, %c0_595, %c0_596, %c0_597] : memref<16x9x9x2xf32, #tpu.memory_space<vmem>>, vector<1x8x8x2xf32>
      %780 = vector.shape_cast %779 : vector<1x8x8x2xf32> to vector<8x8x2xf32>
      %781 = vector.broadcast %768 : f32 to vector<8x8x2xf32>
      %782 = arith.mulf %781, %780 : vector<8x8x2xf32>
      %783 = arith.addf %755, %782 : vector<8x8x2xf32>
      %c15 = arith.constant 15 : index
      %c0_598 = arith.constant 0 : index
      %c0_599 = arith.constant 0 : index
      %c0_600 = arith.constant 0 : index
      %784 = vector.load %arg3[%c15, %c0_598, %c0_599, %c0_600] : memref<16x9x9x2xf32, #tpu.memory_space<vmem>>, vector<1x8x8x2xf32>
      %785 = vector.shape_cast %784 : vector<1x8x8x2xf32> to vector<8x8x2xf32>
      %786 = vector.broadcast %768 : f32 to vector<8x8x2xf32>
      %787 = arith.mulf %786, %785 : vector<8x8x2xf32>
      %788 = arith.addf %760, %787 : vector<8x8x2xf32>
      %c4_i32_601 = arith.constant 4 : i32
      %789 = arith.muli %arg5, %c4_i32_601 : i32
      %c3_i32_602 = arith.constant 3 : i32
      %790 = arith.addi %789, %c3_i32_602 : i32
      %c3_i32_603 = arith.constant 3 : i32
      %791 = arith.muli %790, %c3_i32_603 : i32
      %c0_i32_604 = arith.constant 0 : i32
      %792 = arith.addi %791, %c0_i32_604 : i32
      %c3_i32_605 = arith.constant 3 : i32
      %793 = arith.muli %792, %c3_i32_605 : i32
      %c1_i32_606 = arith.constant 1 : i32
      %794 = arith.addi %793, %c1_i32_606 : i32
      %795 = arith.index_cast %794 : i32 to index
      %796 = memref.load %arg1[%795] : memref<288xf32, #tpu.memory_space<smem>>
      %c7_607 = arith.constant 7 : index
      %c0_608 = arith.constant 0 : index
      %c0_609 = arith.constant 0 : index
      %c0_610 = arith.constant 0 : index
      %797 = vector.load %arg3[%c7_607, %c0_608, %c0_609, %c0_610] : memref<16x9x9x2xf32, #tpu.memory_space<vmem>>, vector<1x8x8x2xf32>
      %798 = vector.shape_cast %797 : vector<1x8x8x2xf32> to vector<8x8x2xf32>
      %799 = vector.broadcast %796 : f32 to vector<8x8x2xf32>
      %800 = arith.mulf %799, %798 : vector<8x8x2xf32>
      %801 = arith.addf %773, %800 : vector<8x8x2xf32>
      %c3_611 = arith.constant 3 : index
      %c0_612 = arith.constant 0 : index
      %c1_613 = arith.constant 1 : index
      %c0_614 = arith.constant 0 : index
      %802 = vector.load %arg3[%c3_611, %c0_612, %c1_613, %c0_614] : memref<16x9x9x2xf32, #tpu.memory_space<vmem>>, vector<1x8x8x2xf32>
      %803 = vector.shape_cast %802 : vector<1x8x8x2xf32> to vector<8x8x2xf32>
      %804 = vector.broadcast %796 : f32 to vector<8x8x2xf32>
      %805 = arith.mulf %804, %803 : vector<8x8x2xf32>
      %806 = arith.addf %778, %805 : vector<8x8x2xf32>
      %c15_615 = arith.constant 15 : index
      %c0_616 = arith.constant 0 : index
      %c0_617 = arith.constant 0 : index
      %c0_618 = arith.constant 0 : index
      %807 = vector.load %arg3[%c15_615, %c0_616, %c0_617, %c0_618] : memref<16x9x9x2xf32, #tpu.memory_space<vmem>>, vector<1x8x8x2xf32>
      %808 = vector.shape_cast %807 : vector<1x8x8x2xf32> to vector<8x8x2xf32>
      %809 = vector.broadcast %796 : f32 to vector<8x8x2xf32>
      %810 = arith.mulf %809, %808 : vector<8x8x2xf32>
      %811 = arith.addf %783, %810 : vector<8x8x2xf32>
      %c11_619 = arith.constant 11 : index
      %c0_620 = arith.constant 0 : index
      %c1_621 = arith.constant 1 : index
      %c0_622 = arith.constant 0 : index
      %812 = vector.load %arg3[%c11_619, %c0_620, %c1_621, %c0_622] : memref<16x9x9x2xf32, #tpu.memory_space<vmem>>, vector<1x8x8x2xf32>
      %813 = vector.shape_cast %812 : vector<1x8x8x2xf32> to vector<8x8x2xf32>
      %814 = vector.broadcast %796 : f32 to vector<8x8x2xf32>
      %815 = arith.mulf %814, %813 : vector<8x8x2xf32>
      %816 = arith.addf %788, %815 : vector<8x8x2xf32>
      %c4_i32_623 = arith.constant 4 : i32
      %817 = arith.muli %arg5, %c4_i32_623 : i32
      %c3_i32_624 = arith.constant 3 : i32
      %818 = arith.addi %817, %c3_i32_624 : i32
      %c3_i32_625 = arith.constant 3 : i32
      %819 = arith.muli %818, %c3_i32_625 : i32
      %c0_i32_626 = arith.constant 0 : i32
      %820 = arith.addi %819, %c0_i32_626 : i32
      %c3_i32_627 = arith.constant 3 : i32
      %821 = arith.muli %820, %c3_i32_627 : i32
      %c2_i32_628 = arith.constant 2 : i32
      %822 = arith.addi %821, %c2_i32_628 : i32
      %823 = arith.index_cast %822 : i32 to index
      %824 = memref.load %arg1[%823] : memref<288xf32, #tpu.memory_space<smem>>
      %c3_629 = arith.constant 3 : index
      %c0_630 = arith.constant 0 : index
      %c1_631 = arith.constant 1 : index
      %c0_632 = arith.constant 0 : index
      %825 = vector.load %arg3[%c3_629, %c0_630, %c1_631, %c0_632] : memref<16x9x9x2xf32, #tpu.memory_space<vmem>>, vector<1x8x8x2xf32>
      %826 = vector.shape_cast %825 : vector<1x8x8x2xf32> to vector<8x8x2xf32>
      %827 = vector.broadcast %824 : f32 to vector<8x8x2xf32>
      %828 = arith.mulf %827, %826 : vector<8x8x2xf32>
      %829 = arith.addf %801, %828 : vector<8x8x2xf32>
      %c7_633 = arith.constant 7 : index
      %c0_634 = arith.constant 0 : index
      %c1_635 = arith.constant 1 : index
      %c0_636 = arith.constant 0 : index
      %830 = vector.load %arg3[%c7_633, %c0_634, %c1_635, %c0_636] : memref<16x9x9x2xf32, #tpu.memory_space<vmem>>, vector<1x8x8x2xf32>
      %831 = vector.shape_cast %830 : vector<1x8x8x2xf32> to vector<8x8x2xf32>
      %832 = vector.broadcast %824 : f32 to vector<8x8x2xf32>
      %833 = arith.mulf %832, %831 : vector<8x8x2xf32>
      %834 = arith.addf %806, %833 : vector<8x8x2xf32>
      %c11_637 = arith.constant 11 : index
      %c0_638 = arith.constant 0 : index
      %c1_639 = arith.constant 1 : index
      %c0_640 = arith.constant 0 : index
      %835 = vector.load %arg3[%c11_637, %c0_638, %c1_639, %c0_640] : memref<16x9x9x2xf32, #tpu.memory_space<vmem>>, vector<1x8x8x2xf32>
      %836 = vector.shape_cast %835 : vector<1x8x8x2xf32> to vector<8x8x2xf32>
      %837 = vector.broadcast %824 : f32 to vector<8x8x2xf32>
      %838 = arith.mulf %837, %836 : vector<8x8x2xf32>
      %839 = arith.addf %811, %838 : vector<8x8x2xf32>
      %c15_641 = arith.constant 15 : index
      %c0_642 = arith.constant 0 : index
      %c1_643 = arith.constant 1 : index
      %c0_644 = arith.constant 0 : index
      %840 = vector.load %arg3[%c15_641, %c0_642, %c1_643, %c0_644] : memref<16x9x9x2xf32, #tpu.memory_space<vmem>>, vector<1x8x8x2xf32>
      %841 = vector.shape_cast %840 : vector<1x8x8x2xf32> to vector<8x8x2xf32>
      %842 = vector.broadcast %824 : f32 to vector<8x8x2xf32>
      %843 = arith.mulf %842, %841 : vector<8x8x2xf32>
      %844 = arith.addf %816, %843 : vector<8x8x2xf32>
      %c4_i32_645 = arith.constant 4 : i32
      %845 = arith.muli %arg5, %c4_i32_645 : i32
      %c3_i32_646 = arith.constant 3 : i32
      %846 = arith.addi %845, %c3_i32_646 : i32
      %c3_i32_647 = arith.constant 3 : i32
      %847 = arith.muli %846, %c3_i32_647 : i32
      %c1_i32_648 = arith.constant 1 : i32
      %848 = arith.addi %847, %c1_i32_648 : i32
      %c3_i32_649 = arith.constant 3 : i32
      %849 = arith.muli %848, %c3_i32_649 : i32
      %c0_i32_650 = arith.constant 0 : i32
      %850 = arith.addi %849, %c0_i32_650 : i32
      %851 = arith.index_cast %850 : i32 to index
      %852 = memref.load %arg1[%851] : memref<288xf32, #tpu.memory_space<smem>>
      %c11_651 = arith.constant 11 : index
      %c0_652 = arith.constant 0 : index
      %c0_653 = arith.constant 0 : index
      %c0_654 = arith.constant 0 : index
      %853 = vector.load %arg3[%c11_651, %c0_652, %c0_653, %c0_654] : memref<16x9x9x2xf32, #tpu.memory_space<vmem>>, vector<1x8x8x2xf32>
      %854 = vector.shape_cast %853 : vector<1x8x8x2xf32> to vector<8x8x2xf32>
      %855 = vector.broadcast %852 : f32 to vector<8x8x2xf32>
      %856 = arith.mulf %855, %854 : vector<8x8x2xf32>
      %857 = arith.addf %829, %856 : vector<8x8x2xf32>
      %c15_655 = arith.constant 15 : index
      %c0_656 = arith.constant 0 : index
      %c0_657 = arith.constant 0 : index
      %c0_658 = arith.constant 0 : index
      %858 = vector.load %arg3[%c15_655, %c0_656, %c0_657, %c0_658] : memref<16x9x9x2xf32, #tpu.memory_space<vmem>>, vector<1x8x8x2xf32>
      %859 = vector.shape_cast %858 : vector<1x8x8x2xf32> to vector<8x8x2xf32>
      %860 = vector.broadcast %852 : f32 to vector<8x8x2xf32>
      %861 = arith.mulf %860, %859 : vector<8x8x2xf32>
      %862 = arith.addf %834, %861 : vector<8x8x2xf32>
      %c3_659 = arith.constant 3 : index
      %c1_660 = arith.constant 1 : index
      %c0_661 = arith.constant 0 : index
      %c0_662 = arith.constant 0 : index
      %863 = vector.load %arg3[%c3_659, %c1_660, %c0_661, %c0_662] : memref<16x9x9x2xf32, #tpu.memory_space<vmem>>, vector<1x8x8x2xf32>
      %864 = vector.shape_cast %863 : vector<1x8x8x2xf32> to vector<8x8x2xf32>
      %865 = vector.broadcast %852 : f32 to vector<8x8x2xf32>
      %866 = arith.mulf %865, %864 : vector<8x8x2xf32>
      %867 = arith.addf %839, %866 : vector<8x8x2xf32>
      %c7_663 = arith.constant 7 : index
      %c1_664 = arith.constant 1 : index
      %c0_665 = arith.constant 0 : index
      %c0_666 = arith.constant 0 : index
      %868 = vector.load %arg3[%c7_663, %c1_664, %c0_665, %c0_666] : memref<16x9x9x2xf32, #tpu.memory_space<vmem>>, vector<1x8x8x2xf32>
      %869 = vector.shape_cast %868 : vector<1x8x8x2xf32> to vector<8x8x2xf32>
      %870 = vector.broadcast %852 : f32 to vector<8x8x2xf32>
      %871 = arith.mulf %870, %869 : vector<8x8x2xf32>
      %872 = arith.addf %844, %871 : vector<8x8x2xf32>
      %c4_i32_667 = arith.constant 4 : i32
      %873 = arith.muli %arg5, %c4_i32_667 : i32
      %c3_i32_668 = arith.constant 3 : i32
      %874 = arith.addi %873, %c3_i32_668 : i32
      %c3_i32_669 = arith.constant 3 : i32
      %875 = arith.muli %874, %c3_i32_669 : i32
      %c1_i32_670 = arith.constant 1 : i32
      %876 = arith.addi %875, %c1_i32_670 : i32
      %c3_i32_671 = arith.constant 3 : i32
      %877 = arith.muli %876, %c3_i32_671 : i32
      %c1_i32_672 = arith.constant 1 : i32
      %878 = arith.addi %877, %c1_i32_672 : i32
      %879 = arith.index_cast %878 : i32 to index
      %880 = memref.load %arg1[%879] : memref<288xf32, #tpu.memory_space<smem>>
      %c15_673 = arith.constant 15 : index
      %c0_674 = arith.constant 0 : index
      %c0_675 = arith.constant 0 : index
      %c0_676 = arith.constant 0 : index
      %881 = vector.load %arg3[%c15_673, %c0_674, %c0_675, %c0_676] : memref<16x9x9x2xf32, #tpu.memory_space<vmem>>, vector<1x8x8x2xf32>
      %882 = vector.shape_cast %881 : vector<1x8x8x2xf32> to vector<8x8x2xf32>
      %883 = vector.broadcast %880 : f32 to vector<8x8x2xf32>
      %884 = arith.mulf %883, %882 : vector<8x8x2xf32>
      %885 = arith.addf %857, %884 : vector<8x8x2xf32>
      %c11_677 = arith.constant 11 : index
      %c0_678 = arith.constant 0 : index
      %c1_679 = arith.constant 1 : index
      %c0_680 = arith.constant 0 : index
      %886 = vector.load %arg3[%c11_677, %c0_678, %c1_679, %c0_680] : memref<16x9x9x2xf32, #tpu.memory_space<vmem>>, vector<1x8x8x2xf32>
      %887 = vector.shape_cast %886 : vector<1x8x8x2xf32> to vector<8x8x2xf32>
      %888 = vector.broadcast %880 : f32 to vector<8x8x2xf32>
      %889 = arith.mulf %888, %887 : vector<8x8x2xf32>
      %890 = arith.addf %862, %889 : vector<8x8x2xf32>
      %c7_681 = arith.constant 7 : index
      %c1_682 = arith.constant 1 : index
      %c0_683 = arith.constant 0 : index
      %c0_684 = arith.constant 0 : index
      %891 = vector.load %arg3[%c7_681, %c1_682, %c0_683, %c0_684] : memref<16x9x9x2xf32, #tpu.memory_space<vmem>>, vector<1x8x8x2xf32>
      %892 = vector.shape_cast %891 : vector<1x8x8x2xf32> to vector<8x8x2xf32>
      %893 = vector.broadcast %880 : f32 to vector<8x8x2xf32>
      %894 = arith.mulf %893, %892 : vector<8x8x2xf32>
      %895 = arith.addf %867, %894 : vector<8x8x2xf32>
      %c3_685 = arith.constant 3 : index
      %c1_686 = arith.constant 1 : index
      %c1_687 = arith.constant 1 : index
      %c0_688 = arith.constant 0 : index
      %896 = vector.load %arg3[%c3_685, %c1_686, %c1_687, %c0_688] : memref<16x9x9x2xf32, #tpu.memory_space<vmem>>, vector<1x8x8x2xf32>
      %897 = vector.shape_cast %896 : vector<1x8x8x2xf32> to vector<8x8x2xf32>
      %898 = vector.broadcast %880 : f32 to vector<8x8x2xf32>
      %899 = arith.mulf %898, %897 : vector<8x8x2xf32>
      %900 = arith.addf %872, %899 : vector<8x8x2xf32>
      %c4_i32_689 = arith.constant 4 : i32
      %901 = arith.muli %arg5, %c4_i32_689 : i32
      %c3_i32_690 = arith.constant 3 : i32
      %902 = arith.addi %901, %c3_i32_690 : i32
      %c3_i32_691 = arith.constant 3 : i32
      %903 = arith.muli %902, %c3_i32_691 : i32
      %c1_i32_692 = arith.constant 1 : i32
      %904 = arith.addi %903, %c1_i32_692 : i32
      %c3_i32_693 = arith.constant 3 : i32
      %905 = arith.muli %904, %c3_i32_693 : i32
      %c2_i32_694 = arith.constant 2 : i32
      %906 = arith.addi %905, %c2_i32_694 : i32
      %907 = arith.index_cast %906 : i32 to index
      %908 = memref.load %arg1[%907] : memref<288xf32, #tpu.memory_space<smem>>
      %c11_695 = arith.constant 11 : index
      %c0_696 = arith.constant 0 : index
      %c1_697 = arith.constant 1 : index
      %c0_698 = arith.constant 0 : index
      %909 = vector.load %arg3[%c11_695, %c0_696, %c1_697, %c0_698] : memref<16x9x9x2xf32, #tpu.memory_space<vmem>>, vector<1x8x8x2xf32>
      %910 = vector.shape_cast %909 : vector<1x8x8x2xf32> to vector<8x8x2xf32>
      %911 = vector.broadcast %908 : f32 to vector<8x8x2xf32>
      %912 = arith.mulf %911, %910 : vector<8x8x2xf32>
      %913 = arith.addf %885, %912 : vector<8x8x2xf32>
      %c15_699 = arith.constant 15 : index
      %c0_700 = arith.constant 0 : index
      %c1_701 = arith.constant 1 : index
      %c0_702 = arith.constant 0 : index
      %914 = vector.load %arg3[%c15_699, %c0_700, %c1_701, %c0_702] : memref<16x9x9x2xf32, #tpu.memory_space<vmem>>, vector<1x8x8x2xf32>
      %915 = vector.shape_cast %914 : vector<1x8x8x2xf32> to vector<8x8x2xf32>
      %916 = vector.broadcast %908 : f32 to vector<8x8x2xf32>
      %917 = arith.mulf %916, %915 : vector<8x8x2xf32>
      %918 = arith.addf %890, %917 : vector<8x8x2xf32>
      %c3_703 = arith.constant 3 : index
      %c1_704 = arith.constant 1 : index
      %c1_705 = arith.constant 1 : index
      %c0_706 = arith.constant 0 : index
      %919 = vector.load %arg3[%c3_703, %c1_704, %c1_705, %c0_706] : memref<16x9x9x2xf32, #tpu.memory_space<vmem>>, vector<1x8x8x2xf32>
      %920 = vector.shape_cast %919 : vector<1x8x8x2xf32> to vector<8x8x2xf32>
      %921 = vector.broadcast %908 : f32 to vector<8x8x2xf32>
      %922 = arith.mulf %921, %920 : vector<8x8x2xf32>
      %923 = arith.addf %895, %922 : vector<8x8x2xf32>
      %c7_707 = arith.constant 7 : index
      %c1_708 = arith.constant 1 : index
      %c1_709 = arith.constant 1 : index
      %c0_710 = arith.constant 0 : index
      %924 = vector.load %arg3[%c7_707, %c1_708, %c1_709, %c0_710] : memref<16x9x9x2xf32, #tpu.memory_space<vmem>>, vector<1x8x8x2xf32>
      %925 = vector.shape_cast %924 : vector<1x8x8x2xf32> to vector<8x8x2xf32>
      %926 = vector.broadcast %908 : f32 to vector<8x8x2xf32>
      %927 = arith.mulf %926, %925 : vector<8x8x2xf32>
      %928 = arith.addf %900, %927 : vector<8x8x2xf32>
      %c4_i32_711 = arith.constant 4 : i32
      %929 = arith.muli %arg5, %c4_i32_711 : i32
      %c3_i32_712 = arith.constant 3 : i32
      %930 = arith.addi %929, %c3_i32_712 : i32
      %c3_i32_713 = arith.constant 3 : i32
      %931 = arith.muli %930, %c3_i32_713 : i32
      %c2_i32_714 = arith.constant 2 : i32
      %932 = arith.addi %931, %c2_i32_714 : i32
      %c3_i32_715 = arith.constant 3 : i32
      %933 = arith.muli %932, %c3_i32_715 : i32
      %c0_i32_716 = arith.constant 0 : i32
      %934 = arith.addi %933, %c0_i32_716 : i32
      %935 = arith.index_cast %934 : i32 to index
      %936 = memref.load %arg1[%935] : memref<288xf32, #tpu.memory_space<smem>>
      %c3_717 = arith.constant 3 : index
      %c1_718 = arith.constant 1 : index
      %c0_719 = arith.constant 0 : index
      %c0_720 = arith.constant 0 : index
      %937 = vector.load %arg3[%c3_717, %c1_718, %c0_719, %c0_720] : memref<16x9x9x2xf32, #tpu.memory_space<vmem>>, vector<1x8x8x2xf32>
      %938 = vector.shape_cast %937 : vector<1x8x8x2xf32> to vector<8x8x2xf32>
      %939 = vector.broadcast %936 : f32 to vector<8x8x2xf32>
      %940 = arith.mulf %939, %938 : vector<8x8x2xf32>
      %941 = arith.addf %913, %940 : vector<8x8x2xf32>
      %c7_721 = arith.constant 7 : index
      %c1_722 = arith.constant 1 : index
      %c0_723 = arith.constant 0 : index
      %c0_724 = arith.constant 0 : index
      %942 = vector.load %arg3[%c7_721, %c1_722, %c0_723, %c0_724] : memref<16x9x9x2xf32, #tpu.memory_space<vmem>>, vector<1x8x8x2xf32>
      %943 = vector.shape_cast %942 : vector<1x8x8x2xf32> to vector<8x8x2xf32>
      %944 = vector.broadcast %936 : f32 to vector<8x8x2xf32>
      %945 = arith.mulf %944, %943 : vector<8x8x2xf32>
      %946 = arith.addf %918, %945 : vector<8x8x2xf32>
      %c11_725 = arith.constant 11 : index
      %c1_726 = arith.constant 1 : index
      %c0_727 = arith.constant 0 : index
      %c0_728 = arith.constant 0 : index
      %947 = vector.load %arg3[%c11_725, %c1_726, %c0_727, %c0_728] : memref<16x9x9x2xf32, #tpu.memory_space<vmem>>, vector<1x8x8x2xf32>
      %948 = vector.shape_cast %947 : vector<1x8x8x2xf32> to vector<8x8x2xf32>
      %949 = vector.broadcast %936 : f32 to vector<8x8x2xf32>
      %950 = arith.mulf %949, %948 : vector<8x8x2xf32>
      %951 = arith.addf %923, %950 : vector<8x8x2xf32>
      %c15_729 = arith.constant 15 : index
      %c1_730 = arith.constant 1 : index
      %c0_731 = arith.constant 0 : index
      %c0_732 = arith.constant 0 : index
      %952 = vector.load %arg3[%c15_729, %c1_730, %c0_731, %c0_732] : memref<16x9x9x2xf32, #tpu.memory_space<vmem>>, vector<1x8x8x2xf32>
      %953 = vector.shape_cast %952 : vector<1x8x8x2xf32> to vector<8x8x2xf32>
      %954 = vector.broadcast %936 : f32 to vector<8x8x2xf32>
      %955 = arith.mulf %954, %953 : vector<8x8x2xf32>
      %956 = arith.addf %928, %955 : vector<8x8x2xf32>
      %c4_i32_733 = arith.constant 4 : i32
      %957 = arith.muli %arg5, %c4_i32_733 : i32
      %c3_i32_734 = arith.constant 3 : i32
      %958 = arith.addi %957, %c3_i32_734 : i32
      %c3_i32_735 = arith.constant 3 : i32
      %959 = arith.muli %958, %c3_i32_735 : i32
      %c2_i32_736 = arith.constant 2 : i32
      %960 = arith.addi %959, %c2_i32_736 : i32
      %c3_i32_737 = arith.constant 3 : i32
      %961 = arith.muli %960, %c3_i32_737 : i32
      %c1_i32_738 = arith.constant 1 : i32
      %962 = arith.addi %961, %c1_i32_738 : i32
      %963 = arith.index_cast %962 : i32 to index
      %964 = memref.load %arg1[%963] : memref<288xf32, #tpu.memory_space<smem>>
      %c7_739 = arith.constant 7 : index
      %c1_740 = arith.constant 1 : index
      %c0_741 = arith.constant 0 : index
      %c0_742 = arith.constant 0 : index
      %965 = vector.load %arg3[%c7_739, %c1_740, %c0_741, %c0_742] : memref<16x9x9x2xf32, #tpu.memory_space<vmem>>, vector<1x8x8x2xf32>
      %966 = vector.shape_cast %965 : vector<1x8x8x2xf32> to vector<8x8x2xf32>
      %967 = vector.broadcast %964 : f32 to vector<8x8x2xf32>
      %968 = arith.mulf %967, %966 : vector<8x8x2xf32>
      %969 = arith.addf %941, %968 : vector<8x8x2xf32>
      %c3_743 = arith.constant 3 : index
      %c1_744 = arith.constant 1 : index
      %c1_745 = arith.constant 1 : index
      %c0_746 = arith.constant 0 : index
      %970 = vector.load %arg3[%c3_743, %c1_744, %c1_745, %c0_746] : memref<16x9x9x2xf32, #tpu.memory_space<vmem>>, vector<1x8x8x2xf32>
      %971 = vector.shape_cast %970 : vector<1x8x8x2xf32> to vector<8x8x2xf32>
      %972 = vector.broadcast %964 : f32 to vector<8x8x2xf32>
      %973 = arith.mulf %972, %971 : vector<8x8x2xf32>
      %974 = arith.addf %946, %973 : vector<8x8x2xf32>
      %c15_747 = arith.constant 15 : index
      %c1_748 = arith.constant 1 : index
      %c0_749 = arith.constant 0 : index
      %c0_750 = arith.constant 0 : index
      %975 = vector.load %arg3[%c15_747, %c1_748, %c0_749, %c0_750] : memref<16x9x9x2xf32, #tpu.memory_space<vmem>>, vector<1x8x8x2xf32>
      %976 = vector.shape_cast %975 : vector<1x8x8x2xf32> to vector<8x8x2xf32>
      %977 = vector.broadcast %964 : f32 to vector<8x8x2xf32>
      %978 = arith.mulf %977, %976 : vector<8x8x2xf32>
      %979 = arith.addf %951, %978 : vector<8x8x2xf32>
      %c11_751 = arith.constant 11 : index
      %c1_752 = arith.constant 1 : index
      %c1_753 = arith.constant 1 : index
      %c0_754 = arith.constant 0 : index
      %980 = vector.load %arg3[%c11_751, %c1_752, %c1_753, %c0_754] : memref<16x9x9x2xf32, #tpu.memory_space<vmem>>, vector<1x8x8x2xf32>
      %981 = vector.shape_cast %980 : vector<1x8x8x2xf32> to vector<8x8x2xf32>
      %982 = vector.broadcast %964 : f32 to vector<8x8x2xf32>
      %983 = arith.mulf %982, %981 : vector<8x8x2xf32>
      %984 = arith.addf %956, %983 : vector<8x8x2xf32>
      %c4_i32_755 = arith.constant 4 : i32
      %985 = arith.muli %arg5, %c4_i32_755 : i32
      %c3_i32_756 = arith.constant 3 : i32
      %986 = arith.addi %985, %c3_i32_756 : i32
      %c3_i32_757 = arith.constant 3 : i32
      %987 = arith.muli %986, %c3_i32_757 : i32
      %c2_i32_758 = arith.constant 2 : i32
      %988 = arith.addi %987, %c2_i32_758 : i32
      %c3_i32_759 = arith.constant 3 : i32
      %989 = arith.muli %988, %c3_i32_759 : i32
      %c2_i32_760 = arith.constant 2 : i32
      %990 = arith.addi %989, %c2_i32_760 : i32
      %991 = arith.index_cast %990 : i32 to index
      %992 = memref.load %arg1[%991] : memref<288xf32, #tpu.memory_space<smem>>
      %c3_761 = arith.constant 3 : index
      %c1_762 = arith.constant 1 : index
      %c1_763 = arith.constant 1 : index
      %c0_764 = arith.constant 0 : index
      %993 = vector.load %arg3[%c3_761, %c1_762, %c1_763, %c0_764] : memref<16x9x9x2xf32, #tpu.memory_space<vmem>>, vector<1x8x8x2xf32>
      %994 = vector.shape_cast %993 : vector<1x8x8x2xf32> to vector<8x8x2xf32>
      %995 = vector.broadcast %992 : f32 to vector<8x8x2xf32>
      %996 = arith.mulf %995, %994 : vector<8x8x2xf32>
      %997 = arith.addf %969, %996 : vector<8x8x2xf32>
      %c7_765 = arith.constant 7 : index
      %c1_766 = arith.constant 1 : index
      %c1_767 = arith.constant 1 : index
      %c0_768 = arith.constant 0 : index
      %998 = vector.load %arg3[%c7_765, %c1_766, %c1_767, %c0_768] : memref<16x9x9x2xf32, #tpu.memory_space<vmem>>, vector<1x8x8x2xf32>
      %999 = vector.shape_cast %998 : vector<1x8x8x2xf32> to vector<8x8x2xf32>
      %1000 = vector.broadcast %992 : f32 to vector<8x8x2xf32>
      %1001 = arith.mulf %1000, %999 : vector<8x8x2xf32>
      %1002 = arith.addf %974, %1001 : vector<8x8x2xf32>
      %c11_769 = arith.constant 11 : index
      %c1_770 = arith.constant 1 : index
      %c1_771 = arith.constant 1 : index
      %c0_772 = arith.constant 0 : index
      %1003 = vector.load %arg3[%c11_769, %c1_770, %c1_771, %c0_772] : memref<16x9x9x2xf32, #tpu.memory_space<vmem>>, vector<1x8x8x2xf32>
      %1004 = vector.shape_cast %1003 : vector<1x8x8x2xf32> to vector<8x8x2xf32>
      %1005 = vector.broadcast %992 : f32 to vector<8x8x2xf32>
      %1006 = arith.mulf %1005, %1004 : vector<8x8x2xf32>
      %1007 = arith.addf %979, %1006 : vector<8x8x2xf32>
      %c15_773 = arith.constant 15 : index
      %c1_774 = arith.constant 1 : index
      %c1_775 = arith.constant 1 : index
      %c0_776 = arith.constant 0 : index
      %1008 = vector.load %arg3[%c15_773, %c1_774, %c1_775, %c0_776] : memref<16x9x9x2xf32, #tpu.memory_space<vmem>>, vector<1x8x8x2xf32>
      %1009 = vector.shape_cast %1008 : vector<1x8x8x2xf32> to vector<8x8x2xf32>
      %1010 = vector.broadcast %992 : f32 to vector<8x8x2xf32>
      %1011 = arith.mulf %1010, %1009 : vector<8x8x2xf32>
      %1012 = arith.addf %984, %1011 : vector<8x8x2xf32>
      %1013 = arith.maximumf %997, %1002 : vector<8x8x2xf32>
      %1014 = arith.maximumf %1007, %1012 : vector<8x8x2xf32>
      %1015 = arith.maximumf %1013, %1014 : vector<8x8x2xf32>
      %1016 = arith.index_cast %arg5 : i32 to index
      %1017 = memref.load %arg2[%1016] : memref<8xf32, #tpu.memory_space<smem>>
      %1018 = vector.broadcast %1017 : f32 to vector<8x8x2xf32>
      %1019 = arith.addf %1015, %1018 : vector<8x8x2xf32>
      %cst_777 = arith.constant 0.000000e+00 : f32
      %1020 = vector.broadcast %cst_777 : f32 to vector<8x8x2xf32>
      %1021 = arith.maximumf %1019, %1020 : vector<8x8x2xf32>
      %1022 = arith.index_cast %arg5 : i32 to index
      %c0_778 = arith.constant 0 : index
      %c0_779 = arith.constant 0 : index
      %c0_780 = arith.constant 0 : index
      %1023 = vector.load %arg4[%1022, %c0_778, %c0_779, %c0_780] : memref<8x8x8x2xf32, #tpu.memory_space<vmem>>, vector<1x8x8x2xf32>
      %1024 = vector.shape_cast %1023 : vector<1x8x8x2xf32> to vector<8x8x2xf32>
      %1025 = vector.shape_cast %1021 : vector<8x8x2xf32> to vector<1x8x8x2xf32>
      tpu.vector_store %arg4[%1022, %c0_778, %c0_779, %c0_780], %1025 {strides = array<i32>} : memref<8x8x8x2xf32, #tpu.memory_space<vmem>>, vector<1x8x8x2xf32>,
    }
    %c8_i32_0 = arith.constant 8 : i32
    return
  }
  func.func @transform_0(%arg0: i32) -> i32 {
    %c0_i32 = arith.constant 0 : i32
    %c0_i32_0 = arith.constant 0 : i32
    return %c0_i32 : i32
  }
  func.func @transform_1(%arg0: i32) -> i32 {
    %c0_i32 = arith.constant 0 : i32
    %c0_i32_0 = arith.constant 0 : i32
    return %c0_i32 : i32
  }
  func.func @transform_2(%arg0: i32) -> (i32, i32, i32, i32) {
    %c0_i32 = arith.constant 0 : i32
    %c0_i32_0 = arith.constant 0 : i32
    %c0_i32_1 = arith.constant 0 : i32
    %c0_i32_2 = arith.constant 0 : i32
    return %c0_i32, %c0_i32_0, %c0_i32_1, %arg0 : i32, i32, i32, i32
  }
  func.func @transform_3(%arg0: i32) -> (i32, i32, i32, i32) {
    %c0_i32 = arith.constant 0 : i32
    %c0_i32_0 = arith.constant 0 : i32
    %c0_i32_1 = arith.constant 0 : i32
    %c0_i32_2 = arith.constant 0 : i32
    return %c0_i32, %c0_i32_0, %c0_i32_1, %arg0 : i32, i32, i32, i32
  }
}

</mosaic_0001>

<llo_original>
// kernel: st_extract_forward.1
$region0: #{st_extract_forward.1}
  #allocation0 [shape = 'u32[]', space=smem, size = 0x4, offset = 0x4, fixed_abs, tag = 'smem constant byte address 0x4 - core index']
  #allocation1 [shape = 'u32[144,128]{1,0:T(1,128)}', space=vmem, size = 0x12000, scoped, tag = 'internal scratch']
  %s0 = inlined_call_operand.vmem [shape: f32[288], index: 0, kind: input, shape index: {}]
  %s1 = inlined_call_operand.vmem [shape: f32[8], index: 1, kind: input, shape index: {}]
  %s2 = inlined_call_operand.vmem [shape: f32[16,9,9,2], index: 2, kind: input, shape index: {}]
  %s3 = inlined_call_operand.vmem [shape: f32[8,8,8,2], index: 3, kind: output, shape index: {}]
  %s4 = sld [smem:[#allocation0]]
  $region37: #{st_extract_forward.1} parent=0
    _
  %s6 = ssub.s32 1, %s4
  %s7 = scalar_select 0, %s6, %s4
  $region1: #{st_extract_forward.1} parent=0
    #allocation2 [shape = 'u8[1536]{0}', space=smem, size = 0x600, scoped, tag = 'input window, operand 0, single buffered']
    #allocation3 [shape = 's32[1]{0}', space=sflag, size = 0x4, scoped, tag = 'scoped memory for st_extract_forward.1']
    #allocation4 [shape = 'u8[512]{0}', space=smem, size = 0x200, scoped, tag = 'input window, operand 1, single buffered']
    #allocation5 [shape = 's32[1]{0}', space=sflag, size = 0x4, scoped, tag = 'scoped memory for st_extract_forward.1']
    %8 = vsyncpa [#allocation3], 0
    %9 = vsyncpa [#allocation5], 0
    // Predicated region
    $region2: #{st_extract_forward.1} parent=1 // pred_check
      _
    $region3: #{st_extract_forward.1} parent=1 // pred_check_branch
      %11 = sbr.rel (0) target = $region5
    $region4: #{st_extract_forward.1} parent=1 // pred_region
      %s13 = ssub.s32 48, 48
      %14 = vsyncadd [#allocation3], %s13
      %s16 = sshll.u32 %s0, 4
      %s17 = int_to_ptr.vmem [resolvable:$true] %s16
      %19 = dma.vmem_to_smem %s17, 48, [#allocation2], [#allocation3]
    $region5: #{st_extract_forward.1} parent=1 // pred_fallthru
      _
    // Predicated region
    $region6: #{st_extract_forward.1} parent=1 // pred_check
      _
    $region7: #{st_extract_forward.1} parent=1 // pred_check_branch
      %21 = sbr.rel (0) target = $region9
    $region8: #{st_extract_forward.1} parent=1 // pred_region
      %s23 = ssub.s32 16, 16
      %24 = vsyncadd [#allocation5], %s23
      %s26 = sshll.u32 %s1, 4
      %s27 = int_to_ptr.vmem [resolvable:$true] %s26
      %29 = dma.vmem_to_smem %s27, 16, [#allocation4], [#allocation5]
    $region9: #{st_extract_forward.1} parent=1 // pred_fallthru
      _
    // Predicated region
    $region10: #{st_extract_forward.1} parent=1 // pred_check
      _
    $region11: #{st_extract_forward.1} parent=1 // pred_check_branch
      %31 = sbr.rel (0) target = $region13
    $region12: #{st_extract_forward.1} parent=1 // pred_region
      _
    $region13: #{st_extract_forward.1} parent=1 // pred_fallthru
      _
    // Predicated region
    $region14: #{st_extract_forward.1} parent=1 // pred_check
      _
    $region15: #{st_extract_forward.1} parent=1 // pred_check_branch
      %33 = sbr.rel (0) target = $region17
    $region16: #{st_extract_forward.1} parent=1 // pred_region
      %34 = dma.done [#allocation3], 48
    $region17: #{st_extract_forward.1} parent=1 // pred_fallthru
      _
    // Predicated region
    $region18: #{st_extract_forward.1} parent=1 // pred_check
      _
    $region19: #{st_extract_forward.1} parent=1 // pred_check_branch
      %36 = sbr.rel (0) target = $region21
    $region20: #{st_extract_forward.1} parent=1 // pred_region
      %37 = dma.done [#allocation5], 16
    $region21: #{st_extract_forward.1} parent=1 // pred_fallthru
      _
    %38 = sfence
    loop: start=0, step=1, limit=8
    $region22: #{st_extract_forward.1} parent=1 // loop_pre_header
      _
    $region23: #{st_extract_forward.1} parent=1 // loop_header
      %s40 = sphi 0, %s44
      %p41 = scmp.ge.s32.totalorder %s40, 8
    $region24: #{st_extract_forward.1} parent=1 // loop_header_branch
      %43 = sbr.rel (%p41) target = $region28
    $region25: #{st_extract_forward.1} parent=1 // loop_body
      %s45 = smul.u32 %s40, 36
      %s46 = sld [smem:[#allocation2 + %s45]]
      %v47 = vld [vmem:[%s2] sm:$0xff]
      %v48 = vld [vmem:[%s2 + $0x10] sm:$0xff]
      %v49 = vld [vmem:[%s2 + $0x20] sm:$0xff]
      %v50 = vld [vmem:[%s2 + $0x30] sm:$0xff]
      %v51 = vld [vmem:[%s2 + $0x40] sm:$0xff]
      %v52 = vld [vmem:[%s2 + $0x50] sm:$0xff]
      %v53 = vld [vmem:[%s2 + $0x60] sm:$0xff]
      %v54 = vld [vmem:[%s2 + $0x70] sm:$0xff]
      %v55 = vstv %s46
      %v56 = vmul.f32 %v55, %v47
      %v57 = vmul.f32 %v55, %v48
      %v58 = vmul.f32 %v55, %v49
      %v59 = vmul.f32 %v55, %v50
      %v60 = vmul.f32 %v55, %v51
      %v61 = vmul.f32 %v55, %v52
      %v62 = vmul.f32 %v55, %v53
      %v63 = vmul.f32 %v55, %v54
      %v64 = vadd.f32 %v56, 0.0
      %v65 = vadd.f32 %v57, 0.0
      %v66 = vadd.f32 %v58, 0.0
      %v67 = vadd.f32 %v59, 0.0
      %v68 = vadd.f32 %v60, 0.0
      %v69 = vadd.f32 %v61, 0.0
      %v70 = vadd.f32 %v62, 0.0
      %v71 = vadd.f32 %v63, 0.0
      %s72 = scalar_lea.vmem %s2, 576
      %v73 = vld [vmem:[%s72] sm:$0xff]
      %v74 = vld [vmem:[%s72 + $0x10] sm:$0xff]
      %v75 = vld [vmem:[%s72 + $0x20] sm:$0xff]
      %v76 = vld [vmem:[%s72 + $0x30] sm:$0xff]
      %v77 = vld [vmem:[%s72 + $0x40] sm:$0xff]
      %v78 = vld [vmem:[%s72 + $0x50] sm:$0xff]
      %v79 = vld [vmem:[%s72 + $0x60] sm:$0xff]
      %v80 = vld [vmem:[%s72 + $0x70] sm:$0xff]
      %v81 = vmul.f32 %v55, %v73
      %v82 = vmul.f32 %v55, %v74
      %v83 = vmul.f32 %v55, %v75
      %v84 = vmul.f32 %v55, %v76
      %v85 = vmul.f32 %v55, %v77
      %v86 = vmul.f32 %v55, %v78
      %v87 = vmul.f32 %v55, %v79
      %v88 = vmul.f32 %v55, %v80
      %v89 = vadd.f32 %v81, 0.0
      %v90 = vadd.f32 %v82, 0.0
      %v91 = vadd.f32 %v83, 0.0
      %v92 = vadd.f32 %v84, 0.0
      %v93 = vadd.f32 %v85, 0.0
      %v94 = vadd.f32 %v86, 0.0
      %v95 = vadd.f32 %v87, 0.0
      %v96 = vadd.f32 %v88, 0.0
      %s97 = scalar_lea.vmem %s2, 1152
      %v98 = vld [vmem:[%s97] sm:$0xff]
      %v99 = vld [vmem:[%s97 + $0x10] sm:$0xff]
      %v100 = vld [vmem:[%s97 + $0x20] sm:$0xff]
      %v101 = vld [vmem:[%s97 + $0x30] sm:$0xff]
      %v102 = vld [vmem:[%s97 + $0x40] sm:$0xff]
      %v103 = vld [vmem:[%s97 + $0x50] sm:$0xff]
      %v104 = vld [vmem:[%s97 + $0x60] sm:$0xff]
      %v105 = vld [vmem:[%s97 + $0x70] sm:$0xff]
      %v106 = vmul.f32 %v55, %v98
      %v107 = vmul.f32 %v55, %v99
      %v108 = vmul.f32 %v55, %v100
      %v109 = vmul.f32 %v55, %v101
      %v110 = vmul.f32 %v55, %v102
      %v111 = vmul.f32 %v55, %v103
      %v112 = vmul.f32 %v55, %v104
      %v113 = vmul.f32 %v55, %v105
      %v114 = vadd.f32 %v106, 0.0
      %v115 = vadd.f32 %v107, 0.0
      %v116 = vadd.f32 %v108, 0.0
      %v117 = vadd.f32 %v109, 0.0
      %v118 = vadd.f32 %v110, 0.0
      %v119 = vadd.f32 %v111, 0.0
      %v120 = vadd.f32 %v112, 0.0
      %v121 = vadd.f32 %v113, 0.0
      %s122 = scalar_lea.vmem %s2, 1728
      %v123 = vld [vmem:[%s122] sm:$0xff]
      %v124 = vld [vmem:[%s122 + $0x10] sm:$0xff]
      %v125 = vld [vmem:[%s122 + $0x20] sm:$0xff]
      %v126 = vld [vmem:[%s122 + $0x30] sm:$0xff]
      %v127 = vld [vmem:[%s122 + $0x40] sm:$0xff]
      %v128 = vld [vmem:[%s122 + $0x50] sm:$0xff]
      %v129 = vld [vmem:[%s122 + $0x60] sm:$0xff]
      %v130 = vld [vmem:[%s122 + $0x70] sm:$0xff]
      %v131 = vmul.f32 %v55, %v123
      %v132 = vmul.f32 %v55, %v124
      %v133 = vmul.f32 %v55, %v125
      %v134 = vmul.f32 %v55, %v126
      %v135 = vmul.f32 %v55, %v127
      %v136 = vmul.f32 %v55, %v128
      %v137 = vmul.f32 %v55, %v129
      %v138 = vmul.f32 %v55, %v130
      %v139 = vadd.f32 %v131, 0.0
      %v140 = vadd.f32 %v132, 0.0
      %v141 = vadd.f32 %v133, 0.0
      %v142 = vadd.f32 %v134, 0.0
      %v143 = vadd.f32 %v135, 0.0
      %v144 = vadd.f32 %v136, 0.0
      %v145 = vadd.f32 %v137, 0.0
      %v146 = vadd.f32 %v138, 0.0
      %s147 = sadd.s32 %s45, 1
      %s148 = sld [smem:[#allocation2 + %s147]]
      %v149 = vstv %s148
      %v150 = vmul.f32 %v149, %v73
      %v151 = vmul.f32 %v149, %v74
      %v152 = vmul.f32 %v149, %v75
      %v153 = vmul.f32 %v149, %v76
      %v154 = vmul.f32 %v149, %v77
      %v155 = vmul.f32 %v149, %v78
      %v156 = vmul.f32 %v149, %v79
      %v157 = vmul.f32 %v149, %v80
      %v158 = vadd.f32 %v64, %v150
      %v159 = vadd.f32 %v65, %v151
      %v160 = vadd.f32 %v66, %v152
      %v161 = vadd.f32 %v67, %v153
      %v162 = vadd.f32 %v68, %v154
      %v163 = vadd.f32 %v69, %v155
      %v164 = vadd.f32 %v70, %v156
      %v165 = vadd.f32 %v71, %v157
      %v166 = vld [vmem:[%s2 + $0x1] sm:$0xff]
      %v167 = vld [vmem:[%s2 + $0x11] sm:$0xff]
      %v168 = vld [vmem:[%s2 + $0x21] sm:$0xff]
      %v169 = vld [vmem:[%s2 + $0x31] sm:$0xff]
      %v170 = vld [vmem:[%s2 + $0x41] sm:$0xff]
      %v171 = vld [vmem:[%s2 + $0x51] sm:$0xff]
      %v172 = vld [vmem:[%s2 + $0x61] sm:$0xff]
      %v173 = vld [vmem:[%s2 + $0x71] sm:$0xff]
      %v174 = vmul.f32 %v149, %v166
      %v175 = vmul.f32 %v149, %v167
      %v176 = vmul.f32 %v149, %v168
      %v177 = vmul.f32 %v149, %v169
      %v178 = vmul.f32 %v149, %v170
      %v179 = vmul.f32 %v149, %v171
      %v180 = vmul.f32 %v149, %v172
      %v181 = vmul.f32 %v149, %v173
      %v182 = vadd.f32 %v89, %v174
      %v183 = vadd.f32 %v90, %v175
      %v184 = vadd.f32 %v91, %v176
      %v185 = vadd.f32 %v92, %v177
      %v186 = vadd.f32 %v93, %v178
      %v187 = vadd.f32 %v94, %v179
      %v188 = vadd.f32 %v95, %v180
      %v189 = vadd.f32 %v96, %v181
      %v190 = vmul.f32 %v149, %v123
      %v191 = vmul.f32 %v149, %v124
      %v192 = vmul.f32 %v149, %v125
      %v193 = vmul.f32 %v149, %v126
      %v194 = vmul.f32 %v149, %v127
      %v195 = vmul.f32 %v149, %v128
      %v196 = vmul.f32 %v149, %v129
      %v197 = vmul.f32 %v149, %v130
      %v198 = vadd.f32 %v114, %v190
      %v199 = vadd.f32 %v115, %v191
      %v200 = vadd.f32 %v116, %v192
      %v201 = vadd.f32 %v117, %v193
      %v202 = vadd.f32 %v118, %v194
      %v203 = vadd.f32 %v119, %v195
      %v204 = vadd.f32 %v120, %v196
      %v205 = vadd.f32 %v121, %v197
      %v206 = vld [vmem:[%s97 + $0x1] sm:$0xff]
      %v207 = vld [vmem:[%s97 + $0x11] sm:$0xff]
      %v208 = vld [vmem:[%s97 + $0x21] sm:$0xff]
      %v209 = vld [vmem:[%s97 + $0x31] sm:$0xff]
      %v210 = vld [vmem:[%s97 + $0x41] sm:$0xff]
      %v211 = vld [vmem:[%s97 + $0x51] sm:$0xff]
      %v212 = vld [vmem:[%s97 + $0x61] sm:$0xff]
      %v213 = vld [vmem:[%s97 + $0x71] sm:$0xff]
      %v214 = vmul.f32 %v149, %v206
      %v215 = vmul.f32 %v149, %v207
      %v216 = vmul.f32 %v149, %v208
      %v217 = vmul.f32 %v149, %v209
      %v218 = vmul.f32 %v149, %v210
      %v219 = vmul.f32 %v149, %v211
      %v220 = vmul.f32 %v149, %v212
      %v221 = vmul.f32 %v149, %v213
      %v222 = vadd.f32 %v139, %v214
      %v223 = vadd.f32 %v140, %v215
      %v224 = vadd.f32 %v141, %v216
      %v225 = vadd.f32 %v142, %v217
      %v226 = vadd.f32 %v143, %v218
      %v227 = vadd.f32 %v144, %v219
      %v228 = vadd.f32 %v145, %v220
      %v229 = vadd.f32 %v146, %v221
      %s230 = sadd.s32 %s45, 2
      %s231 = sld [smem:[#allocation2 + %s230]]
      %v232 = vstv %s231
      %v233 = vmul.f32 %v232, %v166
      %v234 = vmul.f32 %v232, %v167
      %v235 = vmul.f32 %v232, %v168
      %v236 = vmul.f32 %v232, %v169
      %v237 = vmul.f32 %v232, %v170
      %v238 = vmul.f32 %v232, %v171
      %v239 = vmul.f32 %v232, %v172
      %v240 = vmul.f32 %v232, %v173
      %v241 = vadd.f32 %v158, %v233
      %v242 = vadd.f32 %v159, %v234
      %v243 = vadd.f32 %v160, %v235
      %v244 = vadd.f32 %v161, %v236
      %v245 = vadd.f32 %v162, %v237
      %v246 = vadd.f32 %v163, %v238
      %v247 = vadd.f32 %v164, %v239
      %v248 = vadd.f32 %v165, %v240
      %v249 = vld [vmem:[%s72 + $0x1] sm:$0xff]
      %v250 = vld [vmem:[%s72 + $0x11] sm:$0xff]
      %v251 = vld [vmem:[%s72 + $0x21] sm:$0xff]
      %v252 = vld [vmem:[%s72 + $0x31] sm:$0xff]
      %v253 = vld [vmem:[%s72 + $0x41] sm:$0xff]
      %v254 = vld [vmem:[%s72 + $0x51] sm:$0xff]
      %v255 = vld [vmem:[%s72 + $0x61] sm:$0xff]
      %v256 = vld [vmem:[%s72 + $0x71] sm:$0xff]
      %v257 = vmul.f32 %v232, %v249
      %v258 = vmul.f32 %v232, %v250
      %v259 = vmul.f32 %v232, %v251
      %v260 = vmul.f32 %v232, %v252
      %v261 = vmul.f32 %v232, %v253
      %v262 = vmul.f32 %v232, %v254
      %v263 = vmul.f32 %v232, %v255
      %v264 = vmul.f32 %v232, %v256
      %v265 = vadd.f32 %v182, %v257
      %v266 = vadd.f32 %v183, %v258
      %v267 = vadd.f32 %v184, %v259
      %v268 = vadd.f32 %v185, %v260
      %v269 = vadd.f32 %v186, %v261
      %v270 = vadd.f32 %v187, %v262
      %v271 = vadd.f32 %v188, %v263
      %v272 = vadd.f32 %v189, %v264
      %v273 = vmul.f32 %v232, %v206
      %v274 = vmul.f32 %v232, %v207
      %v275 = vmul.f32 %v232, %v208
      %v276 = vmul.f32 %v232, %v209
      %v277 = vmul.f32 %v232, %v210
      %v278 = vmul.f32 %v232, %v211
      %v279 = vmul.f32 %v232, %v212
      %v280 = vmul.f32 %v232, %v213
      %v281 = vadd.f32 %v198, %v273
      %v282 = vadd.f32 %v199, %v274
      %v283 = vadd.f32 %v200, %v275
      %v284 = vadd.f32 %v201, %v276
      %v285 = vadd.f32 %v202, %v277
      %v286 = vadd.f32 %v203, %v278
      %v287 = vadd.f32 %v204, %v279
      %v288 = vadd.f32 %v205, %v280
      %v289 = vld [vmem:[%s122 + $0x1] sm:$0xff]
      %v290 = vld [vmem:[%s122 + $0x11] sm:$0xff]
      %v291 = vld [vmem:[%s122 + $0x21] sm:$0xff]
      %v292 = vld [vmem:[%s122 + $0x31] sm:$0xff]
      %v293 = vld [vmem:[%s122 + $0x41] sm:$0xff]
      %v294 = vld [vmem:[%s122 + $0x51] sm:$0xff]
      %v295 = vld [vmem:[%s122 + $0x61] sm:$0xff]
      %v296 = vld [vmem:[%s122 + $0x71] sm:$0xff]
      %v297 = vmul.f32 %v232, %v289
      %v298 = vmul.f32 %v232, %v290
      %v299 = vmul.f32 %v232, %v291
      %v300 = vmul.f32 %v232, %v292
      %v301 = vmul.f32 %v232, %v293
      %v302 = vmul.f32 %v232, %v294
      %v303 = vmul.f32 %v232, %v295
      %v304 = vmul.f32 %v232, %v296
      %v305 = vadd.f32 %v222, %v297
      %v306 = vadd.f32 %v223, %v298
      %v307 = vadd.f32 %v224, %v299
      %v308 = vadd.f32 %v225, %v300
      %v309 = vadd.f32 %v226, %v301
      %v310 = vadd.f32 %v227, %v302
      %v311 = vadd.f32 %v228, %v303
      %v312 = vadd.f32 %v229, %v304
      %s313 = smul.u32 %s40, 12
      %s314 = sadd.s32 %s313, 1
      %s315 = smul.u32 %s314, 3
      %s316 = sld [smem:[#allocation2 + %s315]]
      %v317 = vstv %s316
      %v318 = vmul.f32 %v317, %v98
      %v319 = vmul.f32 %v317, %v99
      %v320 = vmul.f32 %v317, %v100
      %v321 = vmul.f32 %v317, %v101
      %v322 = vmul.f32 %v317, %v102
      %v323 = vmul.f32 %v317, %v103
      %v324 = vmul.f32 %v317, %v104
      %v325 = vmul.f32 %v317, %v105
      %v326 = vadd.f32 %v241, %v318
      %v327 = vadd.f32 %v242, %v319
      %v328 = vadd.f32 %v243, %v320
      %v329 = vadd.f32 %v244, %v321
      %v330 = vadd.f32 %v245, %v322
      %v331 = vadd.f32 %v246, %v323
      %v332 = vadd.f32 %v247, %v324
      %v333 = vadd.f32 %v248, %v325
      %v334 = vmul.f32 %v317, %v123
      %v335 = vmul.f32 %v317, %v124
      %v336 = vmul.f32 %v317, %v125
      %v337 = vmul.f32 %v317, %v126
      %v338 = vmul.f32 %v317, %v127
      %v339 = vmul.f32 %v317, %v128
      %v340 = vmul.f32 %v317, %v129
      %v341 = vmul.f32 %v317, %v130
      %v342 = vadd.f32 %v265, %v334
      %v343 = vadd.f32 %v266, %v335
      %v344 = vadd.f32 %v267, %v336
      %v345 = vadd.f32 %v268, %v337
      %v346 = vadd.f32 %v269, %v338
      %v347 = vadd.f32 %v270, %v339
      %v348 = vadd.f32 %v271, %v340
      %v349 = vadd.f32 %v272, %v341
      %s350 = scalar_lea.vmem %s2, 16
      %v351 = vld [vmem:[%s350] sm:$0xff]
      %v352 = vld [vmem:[%s350 + $0x10] sm:$0xff]
      %v353 = vld [vmem:[%s350 + $0x20] sm:$0xff]
      %v354 = vld [vmem:[%s350 + $0x30] sm:$0xff]
      %v355 = vld [vmem:[%s350 + $0x40] sm:$0xff]
      %v356 = vld [vmem:[%s350 + $0x50] sm:$0xff]
      %v357 = vld [vmem:[%s350 + $0x60] sm:$0xff]
      %v358 = vld [vmem:[%s350 + $0x70] sm:$0xff]
      %v359 = vmul.f32 %v317, %v351
      %v360 = vmul.f32 %v317, %v352
      %v361 = vmul.f32 %v317, %v353
      %v362 = vmul.f32 %v317, %v354
      %v363 = vmul.f32 %v317, %v355
      %v364 = vmul.f32 %v317, %v356
      %v365 = vmul.f32 %v317, %v357
      %v366 = vmul.f32 %v317, %v358
      %v367 = vadd.f32 %v281, %v359
      %v368 = vadd.f32 %v282, %v360
      %v369 = vadd.f32 %v283, %v361
      %v370 = vadd.f32 %v284, %v362
      %v371 = vadd.f32 %v285, %v363
      %v372 = vadd.f32 %v286, %v364
      %v373 = vadd.f32 %v287, %v365
      %v374 = vadd.f32 %v288, %v366
      %s375 = scalar_lea.vmem %s2, 592
      %v376 = vld [vmem:[%s375] sm:$0xff]
      %v377 = vld [vmem:[%s375 + $0x10] sm:$0xff]
      %v378 = vld [vmem:[%s375 + $0x20] sm:$0xff]
      %v379 = vld [vmem:[%s375 + $0x30] sm:$0xff]
      %v380 = vld [vmem:[%s375 + $0x40] sm:$0xff]
      %v381 = vld [vmem:[%s375 + $0x50] sm:$0xff]
      %v382 = vld [vmem:[%s375 + $0x60] sm:$0xff]
      %v383 = vld [vmem:[%s375 + $0x70] sm:$0xff]
      %v384 = vmul.f32 %v317, %v376
      %v385 = vmul.f32 %v317, %v377
      %v386 = vmul.f32 %v317, %v378
      %v387 = vmul.f32 %v317, %v379
      %v388 = vmul.f32 %v317, %v380
      %v389 = vmul.f32 %v317, %v381
      %v390 = vmul.f32 %v317, %v382
      %v391 = vmul.f32 %v317, %v383
      %v392 = vadd.f32 %v305, %v384
      %v393 = vadd.f32 %v306, %v385
      %v394 = vadd.f32 %v307, %v386
      %v395 = vadd.f32 %v308, %v387
      %v396 = vadd.f32 %v309, %v388
      %v397 = vadd.f32 %v310, %v389
      %v398 = vadd.f32 %v311, %v390
      %v399 = vadd.f32 %v312, %v391
      %s400 = sadd.s32 %s315, 1
      %s401 = sld [smem:[#allocation2 + %s400]]
      %v402 = vstv %s401
      %v403 = vmul.f32 %v402, %v123
      %v404 = vmul.f32 %v402, %v124
      %v405 = vmul.f32 %v402, %v125
      %v406 = vmul.f32 %v402, %v126
      %v407 = vmul.f32 %v402, %v127
      %v408 = vmul.f32 %v402, %v128
      %v409 = vmul.f32 %v402, %v129
      %v410 = vmul.f32 %v402, %v130
      %v411 = vadd.f32 %v326, %v403
      %v412 = vadd.f32 %v327, %v404
      %v413 = vadd.f32 %v328, %v405
      %v414 = vadd.f32 %v329, %v406
      %v415 = vadd.f32 %v330, %v407
      %v416 = vadd.f32 %v331, %v408
      %v417 = vadd.f32 %v332, %v409
      %v418 = vadd.f32 %v333, %v410
      %v419 = vmul.f32 %v402, %v206
      %v420 = vmul.f32 %v402, %v207
      %v421 = vmul.f32 %v402, %v208
      %v422 = vmul.f32 %v402, %v209
      %v423 = vmul.f32 %v402, %v210
      %v424 = vmul.f32 %v402, %v211
      %v425 = vmul.f32 %v402, %v212
      %v426 = vmul.f32 %v402, %v213
      %v427 = vadd.f32 %v342, %v419
      %v428 = vadd.f32 %v343, %v420
      %v429 = vadd.f32 %v344, %v421
      %v430 = vadd.f32 %v345, %v422
      %v431 = vadd.f32 %v346, %v423
      %v432 = vadd.f32 %v347, %v424
      %v433 = vadd.f32 %v348, %v425
      %v434 = vadd.f32 %v349, %v426
      %v435 = vmul.f32 %v402, %v376
      %v436 = vmul.f32 %v402, %v377
      %v437 = vmul.f32 %v402, %v378
      %v438 = vmul.f32 %v402, %v379
      %v439 = vmul.f32 %v402, %v380
      %v440 = vmul.f32 %v402, %v381
      %v441 = vmul.f32 %v402, %v382
      %v442 = vmul.f32 %v402, %v383
      %v443 = vadd.f32 %v367, %v435
      %v444 = vadd.f32 %v368, %v436
      %v445 = vadd.f32 %v369, %v437
      %v446 = vadd.f32 %v370, %v438
      %v447 = vadd.f32 %v371, %v439
      %v448 = vadd.f32 %v372, %v440
      %v449 = vadd.f32 %v373, %v441
      %v450 = vadd.f32 %v374, %v442
      %v451 = vld [vmem:[%s350 + $0x1] sm:$0xff]
      %v452 = vld [vmem:[%s350 + $0x11] sm:$0xff]
      %v453 = vld [vmem:[%s350 + $0x21] sm:$0xff]
      %v454 = vld [vmem:[%s350 + $0x31] sm:$0xff]
      %v455 = vld [vmem:[%s350 + $0x41] sm:$0xff]
      %v456 = vld [vmem:[%s350 + $0x51] sm:$0xff]
      %v457 = vld [vmem:[%s350 + $0x61] sm:$0xff]
      %v458 = vld [vmem:[%s350 + $0x71] sm:$0xff]
      %v459 = vmul.f32 %v402, %v451
      %v460 = vmul.f32 %v402, %v452
      %v461 = vmul.f32 %v402, %v453
      %v462 = vmul.f32 %v402, %v454
      %v463 = vmul.f32 %v402, %v455
      %v464 = vmul.f32 %v402, %v456
      %v465 = vmul.f32 %v402, %v457
      %v466 = vmul.f32 %v402, %v458
      %v467 = vadd.f32 %v392, %v459
      %v468 = vadd.f32 %v393, %v460
      %v469 = vadd.f32 %v394, %v461
      %v470 = vadd.f32 %v395, %v462
      %v471 = vadd.f32 %v396, %v463
      %v472 = vadd.f32 %v397, %v464
      %v473 = vadd.f32 %v398, %v465
      %v474 = vadd.f32 %v399, %v466
      %s475 = sadd.s32 %s315, 2
      %s476 = sld [smem:[#allocation2 + %s475]]
      %v477 = vstv %s476
      %v478 = vmul.f32 %v477, %v206
      %v479 = vmul.f32 %v477, %v207
      %v480 = vmul.f32 %v477, %v208
      %v481 = vmul.f32 %v477, %v209
      %v482 = vmul.f32 %v477, %v210
      %v483 = vmul.f32 %v477, %v211
      %v484 = vmul.f32 %v477, %v212
      %v485 = vmul.f32 %v477, %v213
      %v486 = vadd.f32 %v411, %v478
      %v487 = vadd.f32 %v412, %v479
      %v488 = vadd.f32 %v413, %v480
      %v489 = vadd.f32 %v414, %v481
      %v490 = vadd.f32 %v415, %v482
      %v491 = vadd.f32 %v416, %v483
      %v492 = vadd.f32 %v417, %v484
      %v493 = vadd.f32 %v418, %v485
      %v494 = vmul.f32 %v477, %v289
      %v495 = vmul.f32 %v477, %v290
      %v496 = vmul.f32 %v477, %v291
      %v497 = vmul.f32 %v477, %v292
      %v498 = vmul.f32 %v477, %v293
      %v499 = vmul.f32 %v477, %v294
      %v500 = vmul.f32 %v477, %v295
      %v501 = vmul.f32 %v477, %v296
      %v502 = vadd.f32 %v427, %v494
      %v503 = vadd.f32 %v428, %v495
      %v504 = vadd.f32 %v429, %v496
      %v505 = vadd.f32 %v430, %v497
      %v506 = vadd.f32 %v431, %v498
      %v507 = vadd.f32 %v432, %v499
      %v508 = vadd.f32 %v433, %v500
      %v509 = vadd.f32 %v434, %v501
      %v510 = vmul.f32 %v477, %v451
      %v511 = vmul.f32 %v477, %v452
      %v512 = vmul.f32 %v477, %v453
      %v513 = vmul.f32 %v477, %v454
      %v514 = vmul.f32 %v477, %v455
      %v515 = vmul.f32 %v477, %v456
      %v516 = vmul.f32 %v477, %v457
      %v517 = vmul.f32 %v477, %v458
      %v518 = vadd.f32 %v443, %v510
      %v519 = vadd.f32 %v444, %v511
      %v520 = vadd.f32 %v445, %v512
      %v521 = vadd.f32 %v446, %v513
      %v522 = vadd.f32 %v447, %v514
      %v523 = vadd.f32 %v448, %v515
      %v524 = vadd.f32 %v449, %v516
      %v525 = vadd.f32 %v450, %v517
      %v526 = vld [vmem:[%s375 + $0x1] sm:$0xff]
      %v527 = vld [vmem:[%s375 + $0x11] sm:$0xff]
      %v528 = vld [vmem:[%s375 + $0x21] sm:$0xff]
      %v529 = vld [vmem:[%s375 + $0x31] sm:$0xff]
      %v530 = vld [vmem:[%s375 + $0x41] sm:$0xff]
      %v531 = vld [vmem:[%s375 + $0x51] sm:$0xff]
      %v532 = vld [vmem:[%s375 + $0x61] sm:$0xff]
      %v533 = vld [vmem:[%s375 + $0x71] sm:$0xff]
      %v534 = vmul.f32 %v477, %v526
      %v535 = vmul.f32 %v477, %v527
      %v536 = vmul.f32 %v477, %v528
      %v537 = vmul.f32 %v477, %v529
      %v538 = vmul.f32 %v477, %v530
      %v539 = vmul.f32 %v477, %v531
      %v540 = vmul.f32 %v477, %v532
      %v541 = vmul.f32 %v477, %v533
      %v542 = vadd.f32 %v467, %v534
      %v543 = vadd.f32 %v468, %v535
      %v544 = vadd.f32 %v469, %v536
      %v545 = vadd.f32 %v470, %v537
      %v546 = vadd.f32 %v471, %v538
      %v547 = vadd.f32 %v472, %v539
      %v548 = vadd.f32 %v473, %v540
      %v549 = vadd.f32 %v474, %v541
      %s550 = sadd.s32 %s313, 2
      %s551 = smul.u32 %s550, 3
      %s552 = sld [smem:[#allocation2 + %s551]]
      %v553 = vstv %s552
      %v554 = vmul.f32 %v553, %v351
      %v555 = vmul.f32 %v553, %v352
      %v556 = vmul.f32 %v553, %v353
      %v557 = vmul.f32 %v553, %v354
      %v558 = vmul.f32 %v553, %v355
      %v559 = vmul.f32 %v553, %v356
      %v560 = vmul.f32 %v553, %v357
      %v561 = vmul.f32 %v553, %v358
      %v562 = vadd.f32 %v486, %v554
      %v563 = vadd.f32 %v487, %v555
      %v564 = vadd.f32 %v488, %v556
      %v565 = vadd.f32 %v489, %v557
      %v566 = vadd.f32 %v490, %v558
      %v567 = vadd.f32 %v491, %v559
      %v568 = vadd.f32 %v492, %v560
      %v569 = vadd.f32 %v493, %v561
      %v570 = vmul.f32 %v553, %v376
      %v571 = vmul.f32 %v553, %v377
      %v572 = vmul.f32 %v553, %v378
      %v573 = vmul.f32 %v553, %v379
      %v574 = vmul.f32 %v553, %v380
      %v575 = vmul.f32 %v553, %v381
      %v576 = vmul.f32 %v553, %v382
      %v577 = vmul.f32 %v553, %v383
      %v578 = vadd.f32 %v502, %v570
      %v579 = vadd.f32 %v503, %v571
      %v580 = vadd.f32 %v504, %v572
      %v581 = vadd.f32 %v505, %v573
      %v582 = vadd.f32 %v506, %v574
      %v583 = vadd.f32 %v507, %v575
      %v584 = vadd.f32 %v508, %v576
      %v585 = vadd.f32 %v509, %v577
      %s586 = scalar_lea.vmem %s2, 1168
      %v587 = vld [vmem:[%s586] sm:$0xff]
      %v588 = vld [vmem:[%s586 + $0x10] sm:$0xff]
      %v589 = vld [vmem:[%s586 + $0x20] sm:$0xff]
      %v590 = vld [vmem:[%s586 + $0x30] sm:$0xff]
      %v591 = vld [vmem:[%s586 + $0x40] sm:$0xff]
      %v592 = vld [vmem:[%s586 + $0x50] sm:$0xff]
      %v593 = vld [vmem:[%s586 + $0x60] sm:$0xff]
      %v594 = vld [vmem:[%s586 + $0x70] sm:$0xff]
      %v595 = vmul.f32 %v553, %v587
      %v596 = vmul.f32 %v553, %v588
      %v597 = vmul.f32 %v553, %v589
      %v598 = vmul.f32 %v553, %v590
      %v599 = vmul.f32 %v553, %v591
      %v600 = vmul.f32 %v553, %v592
      %v601 = vmul.f32 %v553, %v593
      %v602 = vmul.f32 %v553, %v594
      %v603 = vadd.f32 %v518, %v595
      %v604 = vadd.f32 %v519, %v596
      %v605 = vadd.f32 %v520, %v597
      %v606 = vadd.f32 %v521, %v598
      %v607 = vadd.f32 %v522, %v599
      %v608 = vadd.f32 %v523, %v600
      %v609 = vadd.f32 %v524, %v601
      %v610 = vadd.f32 %v525, %v602
      %s611 = scalar_lea.vmem %s2, 1744
      %v612 = vld [vmem:[%s611] sm:$0xff]
      %v613 = vld [vmem:[%s611 + $0x10] sm:$0xff]
      %v614 = vld [vmem:[%s611 + $0x20] sm:$0xff]
      %v615 = vld [vmem:[%s611 + $0x30] sm:$0xff]
      %v616 = vld [vmem:[%s611 + $0x40] sm:$0xff]
      %v617 = vld [vmem:[%s611 + $0x50] sm:$0xff]
      %v618 = vld [vmem:[%s611 + $0x60] sm:$0xff]
      %v619 = vld [vmem:[%s611 + $0x70] sm:$0xff]
      %v620 = vmul.f32 %v553, %v612
      %v621 = vmul.f32 %v553, %v613
      %v622 = vmul.f32 %v553, %v614
      %v623 = vmul.f32 %v553, %v615
      %v624 = vmul.f32 %v553, %v616
      %v625 = vmul.f32 %v553, %v617
      %v626 = vmul.f32 %v553, %v618
      %v627 = vmul.f32 %v553, %v619
      %v628 = vadd.f32 %v542, %v620
      %v629 = vadd.f32 %v543, %v621
      %v630 = vadd.f32 %v544, %v622
      %v631 = vadd.f32 %v545, %v623
      %v632 = vadd.f32 %v546, %v624
      %v633 = vadd.f32 %v547, %v625
      %v634 = vadd.f32 %v548, %v626
      %v635 = vadd.f32 %v549, %v627
      %s636 = sadd.s32 %s551, 1
      %s637 = sld [smem:[#allocation2 + %s636]]
      %v638 = vstv %s637
      %v639 = vmul.f32 %v638, %v376
      %v640 = vmul.f32 %v638, %v377
      %v641 = vmul.f32 %v638, %v378
      %v642 = vmul.f32 %v638, %v379
      %v643 = vmul.f32 %v638, %v380
      %v644 = vmul.f32 %v638, %v381
      %v645 = vmul.f32 %v638, %v382
      %v646 = vmul.f32 %v638, %v383
      %v647 = vadd.f32 %v562, %v639
      %v648 = vadd.f32 %v563, %v640
      %v649 = vadd.f32 %v564, %v641
      %v650 = vadd.f32 %v565, %v642
      %v651 = vadd.f32 %v566, %v643
      %v652 = vadd.f32 %v567, %v644
      %v653 = vadd.f32 %v568, %v645
      %v654 = vadd.f32 %v569, %v646
      %v655 = vmul.f32 %v638, %v451
      %v656 = vmul.f32 %v638, %v452
      %v657 = vmul.f32 %v638, %v453
      %v658 = vmul.f32 %v638, %v454
      %v659 = vmul.f32 %v638, %v455
      %v660 = vmul.f32 %v638, %v456
      %v661 = vmul.f32 %v638, %v457
      %v662 = vmul.f32 %v638, %v458
      %v663 = vadd.f32 %v578, %v655
      %v664 = vadd.f32 %v579, %v656
      %v665 = vadd.f32 %v580, %v657
      %v666 = vadd.f32 %v581, %v658
      %v667 = vadd.f32 %v582, %v659
      %v668 = vadd.f32 %v583, %v660
      %v669 = vadd.f32 %v584, %v661
      %v670 = vadd.f32 %v585, %v662
      %v671 = vmul.f32 %v638, %v612
      %v672 = vmul.f32 %v638, %v613
      %v673 = vmul.f32 %v638, %v614
      %v674 = vmul.f32 %v638, %v615
      %v675 = vmul.f32 %v638, %v616
      %v676 = vmul.f32 %v638, %v617
      %v677 = vmul.f32 %v638, %v618
      %v678 = vmul.f32 %v638, %v619
      %v679 = vadd.f32 %v603, %v671
      %v680 = vadd.f32 %v604, %v672
      %v681 = vadd.f32 %v605, %v673
      %v682 = vadd.f32 %v606, %v674
      %v683 = vadd.f32 %v607, %v675
      %v684 = vadd.f32 %v608, %v676
      %v685 = vadd.f32 %v609, %v677
      %v686 = vadd.f32 %v610, %v678
      %v687 = vld [vmem:[%s586 + $0x1] sm:$0xff]
      %v688 = vld [vmem:[%s586 + $0x11] sm:$0xff]
      %v689 = vld [vmem:[%s586 + $0x21] sm:$0xff]
      %v690 = vld [vmem:[%s586 + $0x31] sm:$0xff]
      %v691 = vld [vmem:[%s586 + $0x41] sm:$0xff]
      %v692 = vld [vmem:[%s586 + $0x51] sm:$0xff]
      %v693 = vld [vmem:[%s586 + $0x61] sm:$0xff]
      %v694 = vld [vmem:[%s586 + $0x71] sm:$0xff]
      %v695 = vmul.f32 %v638, %v687
      %v696 = vmul.f32 %v638, %v688
      %v697 = vmul.f32 %v638, %v689
      %v698 = vmul.f32 %v638, %v690
      %v699 = vmul.f32 %v638, %v691
      %v700 = vmul.f32 %v638, %v692
      %v701 = vmul.f32 %v638, %v693
      %v702 = vmul.f32 %v638, %v694
      %v703 = vadd.f32 %v628, %v695
      %v704 = vadd.f32 %v629, %v696
      %v705 = vadd.f32 %v630, %v697
      %v706 = vadd.f32 %v631, %v698
      %v707 = vadd.f32 %v632, %v699
      %v708 = vadd.f32 %v633, %v700
      %v709 = vadd.f32 %v634, %v701
      %v710 = vadd.f32 %v635, %v702
      %s711 = sadd.s32 %s551, 2
      %s712 = sld [smem:[#allocation2 + %s711]]
      %v713 = vstv %s712
      %v714 = vmul.f32 %v713, %v451
      %v715 = vmul.f32 %v713, %v452
      %v716 = vmul.f32 %v713, %v453
      %v717 = vmul.f32 %v713, %v454
      %v718 = vmul.f32 %v713, %v455
      %v719 = vmul.f32 %v713, %v456
      %v720 = vmul.f32 %v713, %v457
      %v721 = vmul.f32 %v713, %v458
      %v722 = vadd.f32 %v647, %v714
      %v723 = vadd.f32 %v648, %v715
      %v724 = vadd.f32 %v649, %v716
      %v725 = vadd.f32 %v650, %v717
      %v726 = vadd.f32 %v651, %v718
      %v727 = vadd.f32 %v652, %v719
      %v728 = vadd.f32 %v653, %v720
      %v729 = vadd.f32 %v654, %v721
      %v730 = vmul.f32 %v713, %v526
      %v731 = vmul.f32 %v713, %v527
      %v732 = vmul.f32 %v713, %v528
      %v733 = vmul.f32 %v713, %v529
      %v734 = vmul.f32 %v713, %v530
      %v735 = vmul.f32 %v713, %v531
      %v736 = vmul.f32 %v713, %v532
      %v737 = vmul.f32 %v713, %v533
      %v738 = vadd.f32 %v663, %v730
      %v739 = vadd.f32 %v664, %v731
      %v740 = vadd.f32 %v665, %v732
      %v741 = vadd.f32 %v666, %v733
      %v742 = vadd.f32 %v667, %v734
      %v743 = vadd.f32 %v668, %v735
      %v744 = vadd.f32 %v669, %v736
      %v745 = vadd.f32 %v670, %v737
      %v746 = vmul.f32 %v713, %v687
      %v747 = vmul.f32 %v713, %v688
      %v748 = vmul.f32 %v713, %v689
      %v749 = vmul.f32 %v713, %v690
      %v750 = vmul.f32 %v713, %v691
      %v751 = vmul.f32 %v713, %v692
      %v752 = vmul.f32 %v713, %v693
      %v753 = vmul.f32 %v713, %v694
      %v754 = vadd.f32 %v679, %v746
      %v755 = vadd.f32 %v680, %v747
      %v756 = vadd.f32 %v681, %v748
      %v757 = vadd.f32 %v682, %v749
      %v758 = vadd.f32 %v683, %v750
      %v759 = vadd.f32 %v684, %v751
      %v760 = vadd.f32 %v685, %v752
      %v761 = vadd.f32 %v686, %v753
      %v762 = vld [vmem:[%s611 + $0x1] sm:$0xff]
      %v763 = vld [vmem:[%s611 + $0x11] sm:$0xff]
      %v764 = vld [vmem:[%s611 + $0x21] sm:$0xff]
      %v765 = vld [vmem:[%s611 + $0x31] sm:$0xff]
      %v766 = vld [vmem:[%s611 + $0x41] sm:$0xff]
      %v767 = vld [vmem:[%s611 + $0x51] sm:$0xff]
      %v768 = vld [vmem:[%s611 + $0x61] sm:$0xff]
      %v769 = vld [vmem:[%s611 + $0x71] sm:$0xff]
      %v770 = vmul.f32 %v713, %v762
      %v771 = vmul.f32 %v713, %v763
      %v772 = vmul.f32 %v713, %v764
      %v773 = vmul.f32 %v713, %v765
      %v774 = vmul.f32 %v713, %v766
      %v775 = vmul.f32 %v713, %v767
      %v776 = vmul.f32 %v713, %v768
      %v777 = vmul.f32 %v713, %v769
      %v778 = vadd.f32 %v703, %v770
      %v779 = vadd.f32 %v704, %v771
      %v780 = vadd.f32 %v705, %v772
      %v781 = vadd.f32 %v706, %v773
      %v782 = vadd.f32 %v707, %v774
      %v783 = vadd.f32 %v708, %v775
      %v784 = vadd.f32 %v709, %v776
      %v785 = vadd.f32 %v710, %v777
      %s786 = smul.u32 %s40, 4
      %s787 = sadd.s32 %s786, 1
      %s788 = smul.u32 %s787, 9
      %s789 = sld [smem:[#allocation2 + %s788]]
      %s790 = scalar_lea.vmem %s2, 144
      %v791 = vld [vmem:[%s790] sm:$0xff]
      %v792 = vld [vmem:[%s790 + $0x10] sm:$0xff]
      %v793 = vld [vmem:[%s790 + $0x20] sm:$0xff]
      %v794 = vld [vmem:[%s790 + $0x30] sm:$0xff]
      %v795 = vld [vmem:[%s790 + $0x40] sm:$0xff]
      %v796 = vld [vmem:[%s790 + $0x50] sm:$0xff]
      %v797 = vld [vmem:[%s790 + $0x60] sm:$0xff]
      %v798 = vld [vmem:[%s790 + $0x70] sm:$0xff]
      %v799 = vstv %s789
      %v800 = vmul.f32 %v799, %v791
      %v801 = vmul.f32 %v799, %v792
      %v802 = vmul.f32 %v799, %v793
      %v803 = vmul.f32 %v799, %v794
      %v804 = vmul.f32 %v799, %v795
      %v805 = vmul.f32 %v799, %v796
      %v806 = vmul.f32 %v799, %v797
      %v807 = vmul.f32 %v799, %v798
      %v808 = vadd.f32 %v722, %v800
      %v809 = vadd.f32 %v723, %v801
      %v810 = vadd.f32 %v724, %v802
      %v811 = vadd.f32 %v725, %v803
      %v812 = vadd.f32 %v726, %v804
      %v813 = vadd.f32 %v727, %v805
      %v814 = vadd.f32 %v728, %v806
      %v815 = vadd.f32 %v729, %v807
      %s816 = scalar_lea.vmem %s2, 720
      %v817 = vld [vmem:[%s816] sm:$0xff]
      %v818 = vld [vmem:[%s816 + $0x10] sm:$0xff]
      %v819 = vld [vmem:[%s816 + $0x20] sm:$0xff]
      %v820 = vld [vmem:[%s816 + $0x30] sm:$0xff]
      %v821 = vld [vmem:[%s816 + $0x40] sm:$0xff]
      %v822 = vld [vmem:[%s816 + $0x50] sm:$0xff]
      %v823 = vld [vmem:[%s816 + $0x60] sm:$0xff]
      %v824 = vld [vmem:[%s816 + $0x70] sm:$0xff]
      %v825 = vmul.f32 %v799, %v817
      %v826 = vmul.f32 %v799, %v818
      %v827 = vmul.f32 %v799, %v819
      %v828 = vmul.f32 %v799, %v820
      %v829 = vmul.f32 %v799, %v821
      %v830 = vmul.f32 %v799, %v822
      %v831 = vmul.f32 %v799, %v823
      %v832 = vmul.f32 %v799, %v824
      %v833 = vadd.f32 %v738, %v825
      %v834 = vadd.f32 %v739, %v826
      %v835 = vadd.f32 %v740, %v827
      %v836 = vadd.f32 %v741, %v828
      %v837 = vadd.f32 %v742, %v829
      %v838 = vadd.f32 %v743, %v830
      %v839 = vadd.f32 %v744, %v831
      %v840 = vadd.f32 %v745, %v832
      %s841 = scalar_lea.vmem %s2, 1296
      %v842 = vld [vmem:[%s841] sm:$0xff]
      %v843 = vld [vmem:[%s841 + $0x10] sm:$0xff]
      %v844 = vld [vmem:[%s841 + $0x20] sm:$0xff]
      %v845 = vld [vmem:[%s841 + $0x30] sm:$0xff]
      %v846 = vld [vmem:[%s841 + $0x40] sm:$0xff]
      %v847 = vld [vmem:[%s841 + $0x50] sm:$0xff]
      %v848 = vld [vmem:[%s841 + $0x60] sm:$0xff]
      %v849 = vld [vmem:[%s841 + $0x70] sm:$0xff]
      %v850 = vmul.f32 %v799, %v842
      %v851 = vmul.f32 %v799, %v843
      %v852 = vmul.f32 %v799, %v844
      %v853 = vmul.f32 %v799, %v845
      %v854 = vmul.f32 %v799, %v846
      %v855 = vmul.f32 %v799, %v847
      %v856 = vmul.f32 %v799, %v848
      %v857 = vmul.f32 %v799, %v849
      %v858 = vadd.f32 %v754, %v850
      %v859 = vadd.f32 %v755, %v851
      %v860 = vadd.f32 %v756, %v852
      %v861 = vadd.f32 %v757, %v853
      %v862 = vadd.f32 %v758, %v854
      %v863 = vadd.f32 %v759, %v855
      %v864 = vadd.f32 %v760, %v856
      %v865 = vadd.f32 %v761, %v857
      %s866 = scalar_lea.vmem %s2, 1872
      %v867 = vld [vmem:[%s866] sm:$0xff]
      %v868 = vld [vmem:[%s866 + $0x10] sm:$0xff]
      %v869 = vld [vmem:[%s866 + $0x20] sm:$0xff]
      %v870 = vld [vmem:[%s866 + $0x30] sm:$0xff]
      %v871 = vld [vmem:[%s866 + $0x40] sm:$0xff]
      %v872 = vld [vmem:[%s866 + $0x50] sm:$0xff]
      %v873 = vld [vmem:[%s866 + $0x60] sm:$0xff]
      %v874 = vld [vmem:[%s866 + $0x70] sm:$0xff]
      %v875 = vmul.f32 %v799, %v867
      %v876 = vmul.f32 %v799, %v868
      %v877 = vmul.f32 %v799, %v869
      %v878 = vmul.f32 %v799, %v870
      %v879 = vmul.f32 %v799, %v871
      %v880 = vmul.f32 %v799, %v872
      %v881 = vmul.f32 %v799, %v873
      %v882 = vmul.f32 %v799, %v874
      %v883 = vadd.f32 %v778, %v875
      %v884 = vadd.f32 %v779, %v876
      %v885 = vadd.f32 %v780, %v877
      %v886 = vadd.f32 %v781, %v878
      %v887 = vadd.f32 %v782, %v879
      %v888 = vadd.f32 %v783, %v880
      %v889 = vadd.f32 %v784, %v881
      %v890 = vadd.f32 %v785, %v882
      %s891 = sadd.s32 %s788, 1
      %s892 = sld [smem:[#allocation2 + %s891]]
      %v893 = vstv %s892
      %v894 = vmul.f32 %v893, %v817
      %v895 = vmul.f32 %v893, %v818
      %v896 = vmul.f32 %v893, %v819
      %v897 = vmul.f32 %v893, %v820
      %v898 = vmul.f32 %v893, %v821
      %v899 = vmul.f32 %v893, %v822
      %v900 = vmul.f32 %v893, %v823
      %v901 = vmul.f32 %v893, %v824
      %v902 = vadd.f32 %v808, %v894
      %v903 = vadd.f32 %v809, %v895
      %v904 = vadd.f32 %v810, %v896
      %v905 = vadd.f32 %v811, %v897
      %v906 = vadd.f32 %v812, %v898
      %v907 = vadd.f32 %v813, %v899
      %v908 = vadd.f32 %v814, %v900
      %v909 = vadd.f32 %v815, %v901
      %v910 = vld [vmem:[%s790 + $0x1] sm:$0xff]
      %v911 = vld [vmem:[%s790 + $0x11] sm:$0xff]
      %v912 = vld [vmem:[%s790 + $0x21] sm:$0xff]
      %v913 = vld [vmem:[%s790 + $0x31] sm:$0xff]
      %v914 = vld [vmem:[%s790 + $0x41] sm:$0xff]
      %v915 = vld [vmem:[%s790 + $0x51] sm:$0xff]
      %v916 = vld [vmem:[%s790 + $0x61] sm:$0xff]
      %v917 = vld [vmem:[%s790 + $0x71] sm:$0xff]
      %v918 = vmul.f32 %v893, %v910
      %v919 = vmul.f32 %v893, %v911
      %v920 = vmul.f32 %v893, %v912
      %v921 = vmul.f32 %v893, %v913
      %v922 = vmul.f32 %v893, %v914
      %v923 = vmul.f32 %v893, %v915
      %v924 = vmul.f32 %v893, %v916
      %v925 = vmul.f32 %v893, %v917
      %v926 = vadd.f32 %v833, %v918
      %v927 = vadd.f32 %v834, %v919
      %v928 = vadd.f32 %v835, %v920
      %v929 = vadd.f32 %v836, %v921
      %v930 = vadd.f32 %v837, %v922
      %v931 = vadd.f32 %v838, %v923
      %v932 = vadd.f32 %v839, %v924
      %v933 = vadd.f32 %v840, %v925
      %v934 = vmul.f32 %v893, %v867
      %v935 = vmul.f32 %v893, %v868
      %v936 = vmul.f32 %v893, %v869
      %v937 = vmul.f32 %v893, %v870
      %v938 = vmul.f32 %v893, %v871
      %v939 = vmul.f32 %v893, %v872
      %v940 = vmul.f32 %v893, %v873
      %v941 = vmul.f32 %v893, %v874
      %v942 = vadd.f32 %v858, %v934
      %v943 = vadd.f32 %v859, %v935
      %v944 = vadd.f32 %v860, %v936
      %v945 = vadd.f32 %v861, %v937
      %v946 = vadd.f32 %v862, %v938
      %v947 = vadd.f32 %v863, %v939
      %v948 = vadd.f32 %v864, %v940
      %v949 = vadd.f32 %v865, %v941
      %v950 = vld [vmem:[%s841 + $0x1] sm:$0xff]
      %v951 = vld [vmem:[%s841 + $0x11] sm:$0xff]
      %v952 = vld [vmem:[%s841 + $0x21] sm:$0xff]
      %v953 = vld [vmem:[%s841 + $0x31] sm:$0xff]
      %v954 = vld [vmem:[%s841 + $0x41] sm:$0xff]
      %v955 = vld [vmem:[%s841 + $0x51] sm:$0xff]
      %v956 = vld [vmem:[%s841 + $0x61] sm:$0xff]
      %v957 = vld [vmem:[%s841 + $0x71] sm:$0xff]
      %v958 = vmul.f32 %v893, %v950
      %v959 = vmul.f32 %v893, %v951
      %v960 = vmul.f32 %v893, %v952
      %v961 = vmul.f32 %v893, %v953
      %v962 = vmul.f32 %v893, %v954
      %v963 = vmul.f32 %v893, %v955
      %v964 = vmul.f32 %v893, %v956
      %v965 = vmul.f32 %v893, %v957
      %v966 = vadd.f32 %v883, %v958
      %v967 = vadd.f32 %v884, %v959
      %v968 = vadd.f32 %v885, %v960
      %v969 = vadd.f32 %v886, %v961
      %v970 = vadd.f32 %v887, %v962
      %v971 = vadd.f32 %v888, %v963
      %v972 = vadd.f32 %v889, %v964
      %v973 = vadd.f32 %v890, %v965
      %s974 = sadd.s32 %s788, 2
      %s975 = sld [smem:[#allocation2 + %s974]]
      %v976 = vstv %s975
      %v977 = vmul.f32 %v976, %v910
      %v978 = vmul.f32 %v976, %v911
      %v979 = vmul.f32 %v976, %v912
      %v980 = vmul.f32 %v976, %v913
      %v981 = vmul.f32 %v976, %v914
      %v982 = vmul.f32 %v976, %v915
      %v983 = vmul.f32 %v976, %v916
      %v984 = vmul.f32 %v976, %v917
      %v985 = vadd.f32 %v902, %v977
      %v986 = vadd.f32 %v903, %v978
      %v987 = vadd.f32 %v904, %v979
      %v988 = vadd.f32 %v905, %v980
      %v989 = vadd.f32 %v906, %v981
      %v990 = vadd.f32 %v907, %v982
      %v991 = vadd.f32 %v908, %v983
      %v992 = vadd.f32 %v909, %v984
      %v993 = vld [vmem:[%s816 + $0x1] sm:$0xff]
      %v994 = vld [vmem:[%s816 + $0x11] sm:$0xff]
      %v995 = vld [vmem:[%s816 + $0x21] sm:$0xff]
      %v996 = vld [vmem:[%s816 + $0x31] sm:$0xff]
      %v997 = vld [vmem:[%s816 + $0x41] sm:$0xff]
      %v998 = vld [vmem:[%s816 + $0x51] sm:$0xff]
      %v999 = vld [vmem:[%s816 + $0x61] sm:$0xff]
      %v1000 = vld [vmem:[%s816 + $0x71] sm:$0xff]
      %v1001 = vmul.f32 %v976, %v993
      %v1002 = vmul.f32 %v976, %v994
      %v1003 = vmul.f32 %v976, %v995
      %v1004 = vmul.f32 %v976, %v996
      %v1005 = vmul.f32 %v976, %v997
      %v1006 = vmul.f32 %v976, %v998
      %v1007 = vmul.f32 %v976, %v999
      %v1008 = vmul.f32 %v976, %v1000
      %v1009 = vadd.f32 %v926, %v1001
      %v1010 = vadd.f32 %v927, %v1002
      %v1011 = vadd.f32 %v928, %v1003
      %v1012 = vadd.f32 %v929, %v1004
      %v1013 = vadd.f32 %v930, %v1005
      %v1014 = vadd.f32 %v931, %v1006
      %v1015 = vadd.f32 %v932, %v1007
      %v1016 = vadd.f32 %v933, %v1008
      %v1017 = vmul.f32 %v976, %v950
      %v1018 = vmul.f32 %v976, %v951
      %v1019 = vmul.f32 %v976, %v952
      %v1020 = vmul.f32 %v976, %v953
      %v1021 = vmul.f32 %v976, %v954
      %v1022 = vmul.f32 %v976, %v955
      %v1023 = vmul.f32 %v976, %v956
      %v1024 = vmul.f32 %v976, %v957
      %v1025 = vadd.f32 %v942, %v1017
      %v1026 = vadd.f32 %v943, %v1018
      %v1027 = vadd.f32 %v944, %v1019
      %v1028 = vadd.f32 %v945, %v1020
      %v1029 = vadd.f32 %v946, %v1021
      %v1030 = vadd.f32 %v947, %v1022
      %v1031 = vadd.f32 %v948, %v1023
      %v1032 = vadd.f32 %v949, %v1024
      %v1033 = vld [vmem:[%s866 + $0x1] sm:$0xff]
      %v1034 = vld [vmem:[%s866 + $0x11] sm:$0xff]
      %v1035 = vld [vmem:[%s866 + $0x21] sm:$0xff]
      %v1036 = vld [vmem:[%s866 + $0x31] sm:$0xff]
      %v1037 = vld [vmem:[%s866 + $0x41] sm:$0xff]
      %v1038 = vld [vmem:[%s866 + $0x51] sm:$0xff]
      %v1039 = vld [vmem:[%s866 + $0x61] sm:$0xff]
      %v1040 = vld [vmem:[%s866 + $0x71] sm:$0xff]
      %v1041 = vmul.f32 %v976, %v1033
      %v1042 = vmul.f32 %v976, %v1034
      %v1043 = vmul.f32 %v976, %v1035
      %v1044 = vmul.f32 %v976, %v1036
      %v1045 = vmul.f32 %v976, %v1037
      %v1046 = vmul.f32 %v976, %v1038
      %v1047 = vmul.f32 %v976, %v1039
      %v1048 = vmul.f32 %v976, %v1040
      %v1049 = vadd.f32 %v966, %v1041
      %v1050 = vadd.f32 %v967, %v1042
      %v1051 = vadd.f32 %v968, %v1043
      %v1052 = vadd.f32 %v969, %v1044
      %v1053 = vadd.f32 %v970, %v1045
      %v1054 = vadd.f32 %v971, %v1046
      %v1055 = vadd.f32 %v972, %v1047
      %v1056 = vadd.f32 %v973, %v1048
      %s1057 = smul.u32 %s787, 3
      %s1058 = sadd.s32 %s1057, 1
      %s1059 = smul.u32 %s1058, 3
      %s1060 = sld [smem:[#allocation2 + %s1059]]
      %v1061 = vstv %s1060
      %v1062 = vmul.f32 %v1061, %v842
      %v1063 = vmul.f32 %v1061, %v843
      %v1064 = vmul.f32 %v1061, %v844
      %v1065 = vmul.f32 %v1061, %v845
      %v1066 = vmul.f32 %v1061, %v846
      %v1067 = vmul.f32 %v1061, %v847
      %v1068 = vmul.f32 %v1061, %v848
      %v1069 = vmul.f32 %v1061, %v849
      %v1070 = vadd.f32 %v985, %v1062
      %v1071 = vadd.f32 %v986, %v1063
      %v1072 = vadd.f32 %v987, %v1064
      %v1073 = vadd.f32 %v988, %v1065
      %v1074 = vadd.f32 %v989, %v1066
      %v1075 = vadd.f32 %v990, %v1067
      %v1076 = vadd.f32 %v991, %v1068
      %v1077 = vadd.f32 %v992, %v1069
      %v1078 = vmul.f32 %v1061, %v867
      %v1079 = vmul.f32 %v1061, %v868
      %v1080 = vmul.f32 %v1061, %v869
      %v1081 = vmul.f32 %v1061, %v870
      %v1082 = vmul.f32 %v1061, %v871
      %v1083 = vmul.f32 %v1061, %v872
      %v1084 = vmul.f32 %v1061, %v873
      %v1085 = vmul.f32 %v1061, %v874
      %v1086 = vadd.f32 %v1009, %v1078
      %v1087 = vadd.f32 %v1010, %v1079
      %v1088 = vadd.f32 %v1011, %v1080
      %v1089 = vadd.f32 %v1012, %v1081
      %v1090 = vadd.f32 %v1013, %v1082
      %v1091 = vadd.f32 %v1014, %v1083
      %v1092 = vadd.f32 %v1015, %v1084
      %v1093 = vadd.f32 %v1016, %v1085
      %s1094 = scalar_lea.vmem %s2, 160
      %v1095 = vld [vmem:[%s1094] sm:$0xff]
      %v1096 = vld [vmem:[%s1094 + $0x10] sm:$0xff]
      %v1097 = vld [vmem:[%s1094 + $0x20] sm:$0xff]
      %v1098 = vld [vmem:[%s1094 + $0x30] sm:$0xff]
      %v1099 = vld [vmem:[%s1094 + $0x40] sm:$0xff]
      %v1100 = vld [vmem:[%s1094 + $0x50] sm:$0xff]
      %v1101 = vld [vmem:[%s1094 + $0x60] sm:$0xff]
      %v1102 = vld [vmem:[%s1094 + $0x70] sm:$0xff]
      %v1103 = vmul.f32 %v1061, %v1095
      %v1104 = vmul.f32 %v1061, %v1096
      %v1105 = vmul.f32 %v1061, %v1097
      %v1106 = vmul.f32 %v1061, %v1098
      %v1107 = vmul.f32 %v1061, %v1099
      %v1108 = vmul.f32 %v1061, %v1100
      %v1109 = vmul.f32 %v1061, %v1101
      %v1110 = vmul.f32 %v1061, %v1102
      %v1111 = vadd.f32 %v1025, %v1103
      %v1112 = vadd.f32 %v1026, %v1104
      %v1113 = vadd.f32 %v1027, %v1105
      %v1114 = vadd.f32 %v1028, %v1106
      %v1115 = vadd.f32 %v1029, %v1107
      %v1116 = vadd.f32 %v1030, %v1108
      %v1117 = vadd.f32 %v1031, %v1109
      %v1118 = vadd.f32 %v1032, %v1110
      %s1119 = scalar_lea.vmem %s2, 736
      %v1120 = vld [vmem:[%s1119] sm:$0xff]
      %v1121 = vld [vmem:[%s1119 + $0x10] sm:$0xff]
      %v1122 = vld [vmem:[%s1119 + $0x20] sm:$0xff]
      %v1123 = vld [vmem:[%s1119 + $0x30] sm:$0xff]
      %v1124 = vld [vmem:[%s1119 + $0x40] sm:$0xff]
      %v1125 = vld [vmem:[%s1119 + $0x50] sm:$0xff]
      %v1126 = vld [vmem:[%s1119 + $0x60] sm:$0xff]
      %v1127 = vld [vmem:[%s1119 + $0x70] sm:$0xff]
      %v1128 = vmul.f32 %v1061, %v1120
      %v1129 = vmul.f32 %v1061, %v1121
      %v1130 = vmul.f32 %v1061, %v1122
      %v1131 = vmul.f32 %v1061, %v1123
      %v1132 = vmul.f32 %v1061, %v1124
      %v1133 = vmul.f32 %v1061, %v1125
      %v1134 = vmul.f32 %v1061, %v1126
      %v1135 = vmul.f32 %v1061, %v1127
      %v1136 = vadd.f32 %v1049, %v1128
      %v1137 = vadd.f32 %v1050, %v1129
      %v1138 = vadd.f32 %v1051, %v1130
      %v1139 = vadd.f32 %v1052, %v1131
      %v1140 = vadd.f32 %v1053, %v1132
      %v1141 = vadd.f32 %v1054, %v1133
      %v1142 = vadd.f32 %v1055, %v1134
      %v1143 = vadd.f32 %v1056, %v1135
      %s1144 = sadd.s32 %s1059, 1
      %s1145 = sld [smem:[#allocation2 + %s1144]]
      %v1146 = vstv %s1145
      %v1147 = vmul.f32 %v1146, %v867
      %v1148 = vmul.f32 %v1146, %v868
      %v1149 = vmul.f32 %v1146, %v869
      %v1150 = vmul.f32 %v1146, %v870
      %v1151 = vmul.f32 %v1146, %v871
      %v1152 = vmul.f32 %v1146, %v872
      %v1153 = vmul.f32 %v1146, %v873
      %v1154 = vmul.f32 %v1146, %v874
      %v1155 = vadd.f32 %v1070, %v1147
      %v1156 = vadd.f32 %v1071, %v1148
      %v1157 = vadd.f32 %v1072, %v1149
      %v1158 = vadd.f32 %v1073, %v1150
      %v1159 = vadd.f32 %v1074, %v1151
      %v1160 = vadd.f32 %v1075, %v1152
      %v1161 = vadd.f32 %v1076, %v1153
      %v1162 = vadd.f32 %v1077, %v1154
      %v1163 = vmul.f32 %v1146, %v950
      %v1164 = vmul.f32 %v1146, %v951
      %v1165 = vmul.f32 %v1146, %v952
      %v1166 = vmul.f32 %v1146, %v953
      %v1167 = vmul.f32 %v1146, %v954
      %v1168 = vmul.f32 %v1146, %v955
      %v1169 = vmul.f32 %v1146, %v956
      %v1170 = vmul.f32 %v1146, %v957
      %v1171 = vadd.f32 %v1086, %v1163
      %v1172 = vadd.f32 %v1087, %v1164
      %v1173 = vadd.f32 %v1088, %v1165
      %v1174 = vadd.f32 %v1089, %v1166
      %v1175 = vadd.f32 %v1090, %v1167
      %v1176 = vadd.f32 %v1091, %v1168
      %v1177 = vadd.f32 %v1092, %v1169
      %v1178 = vadd.f32 %v1093, %v1170
      %v1179 = vmul.f32 %v1146, %v1120
      %v1180 = vmul.f32 %v1146, %v1121
      %v1181 = vmul.f32 %v1146, %v1122
      %v1182 = vmul.f32 %v1146, %v1123
      %v1183 = vmul.f32 %v1146, %v1124
      %v1184 = vmul.f32 %v1146, %v1125
      %v1185 = vmul.f32 %v1146, %v1126
      %v1186 = vmul.f32 %v1146, %v1127
      %v1187 = vadd.f32 %v1111, %v1179
      %v1188 = vadd.f32 %v1112, %v1180
      %v1189 = vadd.f32 %v1113, %v1181
      %v1190 = vadd.f32 %v1114, %v1182
      %v1191 = vadd.f32 %v1115, %v1183
      %v1192 = vadd.f32 %v1116, %v1184
      %v1193 = vadd.f32 %v1117, %v1185
      %v1194 = vadd.f32 %v1118, %v1186
      %v1195 = vld [vmem:[%s1094 + $0x1] sm:$0xff]
      %v1196 = vld [vmem:[%s1094 + $0x11] sm:$0xff]
      %v1197 = vld [vmem:[%s1094 + $0x21] sm:$0xff]
      %v1198 = vld [vmem:[%s1094 + $0x31] sm:$0xff]
      %v1199 = vld [vmem:[%s1094 + $0x41] sm:$0xff]
      %v1200 = vld [vmem:[%s1094 + $0x51] sm:$0xff]
      %v1201 = vld [vmem:[%s1094 + $0x61] sm:$0xff]
      %v1202 = vld [vmem:[%s1094 + $0x71] sm:$0xff]
      %v1203 = vmul.f32 %v1146, %v1195
      %v1204 = vmul.f32 %v1146, %v1196
      %v1205 = vmul.f32 %v1146, %v1197
      %v1206 = vmul.f32 %v1146, %v1198
      %v1207 = vmul.f32 %v1146, %v1199
      %v1208 = vmul.f32 %v1146, %v1200
      %v1209 = vmul.f32 %v1146, %v1201
      %v1210 = vmul.f32 %v1146, %v1202
      %v1211 = vadd.f32 %v1136, %v1203
      %v1212 = vadd.f32 %v1137, %v1204
      %v1213 = vadd.f32 %v1138, %v1205
      %v1214 = vadd.f32 %v1139, %v1206
      %v1215 = vadd.f32 %v1140, %v1207
      %v1216 = vadd.f32 %v1141, %v1208
      %v1217 = vadd.f32 %v1142, %v1209
      %v1218 = vadd.f32 %v1143, %v1210
      %s1219 = sadd.s32 %s1059, 2
      %s1220 = sld [smem:[#allocation2 + %s1219]]
      %v1221 = vstv %s1220
      %v1222 = vmul.f32 %v1221, %v950
      %v1223 = vmul.f32 %v1221, %v951
      %v1224 = vmul.f32 %v1221, %v952
      %v1225 = vmul.f32 %v1221, %v953
      %v1226 = vmul.f32 %v1221, %v954
      %v1227 = vmul.f32 %v1221, %v955
      %v1228 = vmul.f32 %v1221, %v956
      %v1229 = vmul.f32 %v1221, %v957
      %v1230 = vadd.f32 %v1155, %v1222
      %v1231 = vadd.f32 %v1156, %v1223
      %v1232 = vadd.f32 %v1157, %v1224
      %v1233 = vadd.f32 %v1158, %v1225
      %v1234 = vadd.f32 %v1159, %v1226
      %v1235 = vadd.f32 %v1160, %v1227
      %v1236 = vadd.f32 %v1161, %v1228
      %v1237 = vadd.f32 %v1162, %v1229
      %v1238 = vmul.f32 %v1221, %v1033
      %v1239 = vmul.f32 %v1221, %v1034
      %v1240 = vmul.f32 %v1221, %v1035
      %v1241 = vmul.f32 %v1221, %v1036
      %v1242 = vmul.f32 %v1221, %v1037
      %v1243 = vmul.f32 %v1221, %v1038
      %v1244 = vmul.f32 %v1221, %v1039
      %v1245 = vmul.f32 %v1221, %v1040
      %v1246 = vadd.f32 %v1171, %v1238
      %v1247 = vadd.f32 %v1172, %v1239
      %v1248 = vadd.f32 %v1173, %v1240
      %v1249 = vadd.f32 %v1174, %v1241
      %v1250 = vadd.f32 %v1175, %v1242
      %v1251 = vadd.f32 %v1176, %v1243
      %v1252 = vadd.f32 %v1177, %v1244
      %v1253 = vadd.f32 %v1178, %v1245
      %v1254 = vmul.f32 %v1221, %v1195
      %v1255 = vmul.f32 %v1221, %v1196
      %v1256 = vmul.f32 %v1221, %v1197
      %v1257 = vmul.f32 %v1221, %v1198
      %v1258 = vmul.f32 %v1221, %v1199
      %v1259 = vmul.f32 %v1221, %v1200
      %v1260 = vmul.f32 %v1221, %v1201
      %v1261 = vmul.f32 %v1221, %v1202
      %v1262 = vadd.f32 %v1187, %v1254
      %v1263 = vadd.f32 %v1188, %v1255
      %v1264 = vadd.f32 %v1189, %v1256
      %v1265 = vadd.f32 %v1190, %v1257
      %v1266 = vadd.f32 %v1191, %v1258
      %v1267 = vadd.f32 %v1192, %v1259
      %v1268 = vadd.f32 %v1193, %v1260
      %v1269 = vadd.f32 %v1194, %v1261
      %v1270 = vld [vmem:[%s1119 + $0x1] sm:$0xff]
      %v1271 = vld [vmem:[%s1119 + $0x11] sm:$0xff]
      %v1272 = vld [vmem:[%s1119 + $0x21] sm:$0xff]
      %v1273 = vld [vmem:[%s1119 + $0x31] sm:$0xff]
      %v1274 = vld [vmem:[%s1119 + $0x41] sm:$0xff]
      %v1275 = vld [vmem:[%s1119 + $0x51] sm:$0xff]
      %v1276 = vld [vmem:[%s1119 + $0x61] sm:$0xff]
      %v1277 = vld [vmem:[%s1119 + $0x71] sm:$0xff]
      %v1278 = vmul.f32 %v1221, %v1270
      %v1279 = vmul.f32 %v1221, %v1271
      %v1280 = vmul.f32 %v1221, %v1272
      %v1281 = vmul.f32 %v1221, %v1273
      %v1282 = vmul.f32 %v1221, %v1274
      %v1283 = vmul.f32 %v1221, %v1275
      %v1284 = vmul.f32 %v1221, %v1276
      %v1285 = vmul.f32 %v1221, %v1277
      %v1286 = vadd.f32 %v1211, %v1278
      %v1287 = vadd.f32 %v1212, %v1279
      %v1288 = vadd.f32 %v1213, %v1280
      %v1289 = vadd.f32 %v1214, %v1281
      %v1290 = vadd.f32 %v1215, %v1282
      %v1291 = vadd.f32 %v1216, %v1283
      %v1292 = vadd.f32 %v1217, %v1284
      %v1293 = vadd.f32 %v1218, %v1285
      %s1294 = sadd.s32 %s1057, 2
      %s1295 = smul.u32 %s1294, 3
      %s1296 = sld [smem:[#allocation2 + %s1295]]
      %v1297 = vstv %s1296
      %v1298 = vmul.f32 %v1297, %v1095
      %v1299 = vmul.f32 %v1297, %v1096
      %v1300 = vmul.f32 %v1297, %v1097
      %v1301 = vmul.f32 %v1297, %v1098
      %v1302 = vmul.f32 %v1297, %v1099
      %v1303 = vmul.f32 %v1297, %v1100
      %v1304 = vmul.f32 %v1297, %v1101
      %v1305 = vmul.f32 %v1297, %v1102
      %v1306 = vadd.f32 %v1230, %v1298
      %v1307 = vadd.f32 %v1231, %v1299
      %v1308 = vadd.f32 %v1232, %v1300
      %v1309 = vadd.f32 %v1233, %v1301
      %v1310 = vadd.f32 %v1234, %v1302
      %v1311 = vadd.f32 %v1235, %v1303
      %v1312 = vadd.f32 %v1236, %v1304
      %v1313 = vadd.f32 %v1237, %v1305
      %v1314 = vmul.f32 %v1297, %v1120
      %v1315 = vmul.f32 %v1297, %v1121
      %v1316 = vmul.f32 %v1297, %v1122
      %v1317 = vmul.f32 %v1297, %v1123
      %v1318 = vmul.f32 %v1297, %v1124
      %v1319 = vmul.f32 %v1297, %v1125
      %v1320 = vmul.f32 %v1297, %v1126
      %v1321 = vmul.f32 %v1297, %v1127
      %v1322 = vadd.f32 %v1246, %v1314
      %v1323 = vadd.f32 %v1247, %v1315
      %v1324 = vadd.f32 %v1248, %v1316
      %v1325 = vadd.f32 %v1249, %v1317
      %v1326 = vadd.f32 %v1250, %v1318
      %v1327 = vadd.f32 %v1251, %v1319
      %v1328 = vadd.f32 %v1252, %v1320
      %v1329 = vadd.f32 %v1253, %v1321
      %s1330 = scalar_lea.vmem %s2, 1312
      %v1331 = vld [vmem:[%s1330] sm:$0xff]
      %v1332 = vld [vmem:[%s1330 + $0x10] sm:$0xff]
      %v1333 = vld [vmem:[%s1330 + $0x20] sm:$0xff]
      %v1334 = vld [vmem:[%s1330 + $0x30] sm:$0xff]
      %v1335 = vld [vmem:[%s1330 + $0x40] sm:$0xff]
      %v1336 = vld [vmem:[%s1330 + $0x50] sm:$0xff]
      %v1337 = vld [vmem:[%s1330 + $0x60] sm:$0xff]
      %v1338 = vld [vmem:[%s1330 + $0x70] sm:$0xff]
      %v1339 = vmul.f32 %v1297, %v1331
      %v1340 = vmul.f32 %v1297, %v1332
      %v1341 = vmul.f32 %v1297, %v1333
      %v1342 = vmul.f32 %v1297, %v1334
      %v1343 = vmul.f32 %v1297, %v1335
      %v1344 = vmul.f32 %v1297, %v1336
      %v1345 = vmul.f32 %v1297, %v1337
      %v1346 = vmul.f32 %v1297, %v1338
      %v1347 = vadd.f32 %v1262, %v1339
      %v1348 = vadd.f32 %v1263, %v1340
      %v1349 = vadd.f32 %v1264, %v1341
      %v1350 = vadd.f32 %v1265, %v1342
      %v1351 = vadd.f32 %v1266, %v1343
      %v1352 = vadd.f32 %v1267, %v1344
      %v1353 = vadd.f32 %v1268, %v1345
      %v1354 = vadd.f32 %v1269, %v1346
      %s1355 = scalar_lea.vmem %s2, 1888
      %v1356 = vld [vmem:[%s1355] sm:$0xff]
      %v1357 = vld [vmem:[%s1355 + $0x10] sm:$0xff]
      %v1358 = vld [vmem:[%s1355 + $0x20] sm:$0xff]
      %v1359 = vld [vmem:[%s1355 + $0x30] sm:$0xff]
      %v1360 = vld [vmem:[%s1355 + $0x40] sm:$0xff]
      %v1361 = vld [vmem:[%s1355 + $0x50] sm:$0xff]
      %v1362 = vld [vmem:[%s1355 + $0x60] sm:$0xff]
      %v1363 = vld [vmem:[%s1355 + $0x70] sm:$0xff]
      %v1364 = vmul.f32 %v1297, %v1356
      %v1365 = vmul.f32 %v1297, %v1357
      %v1366 = vmul.f32 %v1297, %v1358
      %v1367 = vmul.f32 %v1297, %v1359
      %v1368 = vmul.f32 %v1297, %v1360
      %v1369 = vmul.f32 %v1297, %v1361
      %v1370 = vmul.f32 %v1297, %v1362
      %v1371 = vmul.f32 %v1297, %v1363
      %v1372 = vadd.f32 %v1286, %v1364
      %v1373 = vadd.f32 %v1287, %v1365
      %v1374 = vadd.f32 %v1288, %v1366
      %v1375 = vadd.f32 %v1289, %v1367
      %v1376 = vadd.f32 %v1290, %v1368
      %v1377 = vadd.f32 %v1291, %v1369
      %v1378 = vadd.f32 %v1292, %v1370
      %v1379 = vadd.f32 %v1293, %v1371
      %s1380 = sadd.s32 %s1295, 1
      %s1381 = sld [smem:[#allocation2 + %s1380]]
      %v1382 = vstv %s1381
      %v1383 = vmul.f32 %v1382, %v1120
      %v1384 = vmul.f32 %v1382, %v1121
      %v1385 = vmul.f32 %v1382, %v1122
      %v1386 = vmul.f32 %v1382, %v1123
      %v1387 = vmul.f32 %v1382, %v1124
      %v1388 = vmul.f32 %v1382, %v1125
      %v1389 = vmul.f32 %v1382, %v1126
      %v1390 = vmul.f32 %v1382, %v1127
      %v1391 = vadd.f32 %v1306, %v1383
      %v1392 = vadd.f32 %v1307, %v1384
      %v1393 = vadd.f32 %v1308, %v1385
      %v1394 = vadd.f32 %v1309, %v1386
      %v1395 = vadd.f32 %v1310, %v1387
      %v1396 = vadd.f32 %v1311, %v1388
      %v1397 = vadd.f32 %v1312, %v1389
      %v1398 = vadd.f32 %v1313, %v1390
      %v1399 = vmul.f32 %v1382, %v1195
      %v1400 = vmul.f32 %v1382, %v1196
      %v1401 = vmul.f32 %v1382, %v1197
      %v1402 = vmul.f32 %v1382, %v1198
      %v1403 = vmul.f32 %v1382, %v1199
      %v1404 = vmul.f32 %v1382, %v1200
      %v1405 = vmul.f32 %v1382, %v1201
      %v1406 = vmul.f32 %v1382, %v1202
      %v1407 = vadd.f32 %v1322, %v1399
      %v1408 = vadd.f32 %v1323, %v1400
      %v1409 = vadd.f32 %v1324, %v1401
      %v1410 = vadd.f32 %v1325, %v1402
      %v1411 = vadd.f32 %v1326, %v1403
      %v1412 = vadd.f32 %v1327, %v1404
      %v1413 = vadd.f32 %v1328, %v1405
      %v1414 = vadd.f32 %v1329, %v1406
      %v1415 = vmul.f32 %v1382, %v1356
      %v1416 = vmul.f32 %v1382, %v1357
      %v1417 = vmul.f32 %v1382, %v1358
      %v1418 = vmul.f32 %v1382, %v1359
      %v1419 = vmul.f32 %v1382, %v1360
      %v1420 = vmul.f32 %v1382, %v1361
      %v1421 = vmul.f32 %v1382, %v1362
      %v1422 = vmul.f32 %v1382, %v1363
      %v1423 = vadd.f32 %v1347, %v1415
      %v1424 = vadd.f32 %v1348, %v1416
      %v1425 = vadd.f32 %v1349, %v1417
      %v1426 = vadd.f32 %v1350, %v1418
      %v1427 = vadd.f32 %v1351, %v1419
      %v1428 = vadd.f32 %v1352, %v1420
      %v1429 = vadd.f32 %v1353, %v1421
      %v1430 = vadd.f32 %v1354, %v1422
      %v1431 = vld [vmem:[%s1330 + $0x1] sm:$0xff]
      %v1432 = vld [vmem:[%s1330 + $0x11] sm:$0xff]
      %v1433 = vld [vmem:[%s1330 + $0x21] sm:$0xff]
      %v1434 = vld [vmem:[%s1330 + $0x31] sm:$0xff]
      %v1435 = vld [vmem:[%s1330 + $0x41] sm:$0xff]
      %v1436 = vld [vmem:[%s1330 + $0x51] sm:$0xff]
      %v1437 = vld [vmem:[%s1330 + $0x61] sm:$0xff]
      %v1438 = vld [vmem:[%s1330 + $0x71] sm:$0xff]
      %v1439 = vmul.f32 %v1382, %v1431
      %v1440 = vmul.f32 %v1382, %v1432
      %v1441 = vmul.f32 %v1382, %v1433
      %v1442 = vmul.f32 %v1382, %v1434
      %v1443 = vmul.f32 %v1382, %v1435
      %v1444 = vmul.f32 %v1382, %v1436
      %v1445 = vmul.f32 %v1382, %v1437
      %v1446 = vmul.f32 %v1382, %v1438
      %v1447 = vadd.f32 %v1372, %v1439
      %v1448 = vadd.f32 %v1373, %v1440
      %v1449 = vadd.f32 %v1374, %v1441
      %v1450 = vadd.f32 %v1375, %v1442
      %v1451 = vadd.f32 %v1376, %v1443
      %v1452 = vadd.f32 %v1377, %v1444
      %v1453 = vadd.f32 %v1378, %v1445
      %v1454 = vadd.f32 %v1379, %v1446
      %s1455 = sadd.s32 %s1295, 2
      %s1456 = sld [smem:[#allocation2 + %s1455]]
      %v1457 = vstv %s1456
      %v1458 = vmul.f32 %v1457, %v1195
      %v1459 = vmul.f32 %v1457, %v1196
      %v1460 = vmul.f32 %v1457, %v1197
      %v1461 = vmul.f32 %v1457, %v1198
      %v1462 = vmul.f32 %v1457, %v1199
      %v1463 = vmul.f32 %v1457, %v1200
      %v1464 = vmul.f32 %v1457, %v1201
      %v1465 = vmul.f32 %v1457, %v1202
      %v1466 = vadd.f32 %v1391, %v1458
      %v1467 = vadd.f32 %v1392, %v1459
      %v1468 = vadd.f32 %v1393, %v1460
      %v1469 = vadd.f32 %v1394, %v1461
      %v1470 = vadd.f32 %v1395, %v1462
      %v1471 = vadd.f32 %v1396, %v1463
      %v1472 = vadd.f32 %v1397, %v1464
      %v1473 = vadd.f32 %v1398, %v1465
      %v1474 = vmul.f32 %v1457, %v1270
      %v1475 = vmul.f32 %v1457, %v1271
      %v1476 = vmul.f32 %v1457, %v1272
      %v1477 = vmul.f32 %v1457, %v1273
      %v1478 = vmul.f32 %v1457, %v1274
      %v1479 = vmul.f32 %v1457, %v1275
      %v1480 = vmul.f32 %v1457, %v1276
      %v1481 = vmul.f32 %v1457, %v1277
      %v1482 = vadd.f32 %v1407, %v1474
      %v1483 = vadd.f32 %v1408, %v1475
      %v1484 = vadd.f32 %v1409, %v1476
      %v1485 = vadd.f32 %v1410, %v1477
      %v1486 = vadd.f32 %v1411, %v1478
      %v1487 = vadd.f32 %v1412, %v1479
      %v1488 = vadd.f32 %v1413, %v1480
      %v1489 = vadd.f32 %v1414, %v1481
      %v1490 = vmul.f32 %v1457, %v1431
      %v1491 = vmul.f32 %v1457, %v1432
      %v1492 = vmul.f32 %v1457, %v1433
      %v1493 = vmul.f32 %v1457, %v1434
      %v1494 = vmul.f32 %v1457, %v1435
      %v1495 = vmul.f32 %v1457, %v1436
      %v1496 = vmul.f32 %v1457, %v1437
      %v1497 = vmul.f32 %v1457, %v1438
      %v1498 = vadd.f32 %v1423, %v1490
      %v1499 = vadd.f32 %v1424, %v1491
      %v1500 = vadd.f32 %v1425, %v1492
      %v1501 = vadd.f32 %v1426, %v1493
      %v1502 = vadd.f32 %v1427, %v1494
      %v1503 = vadd.f32 %v1428, %v1495
      %v1504 = vadd.f32 %v1429, %v1496
      %v1505 = vadd.f32 %v1430, %v1497
      %v1506 = vld [vmem:[%s1355 + $0x1] sm:$0xff]
      %v1507 = vld [vmem:[%s1355 + $0x11] sm:$0xff]
      %v1508 = vld [vmem:[%s1355 + $0x21] sm:$0xff]
      %v1509 = vld [vmem:[%s1355 + $0x31] sm:$0xff]
      %v1510 = vld [vmem:[%s1355 + $0x41] sm:$0xff]
      %v1511 = vld [vmem:[%s1355 + $0x51] sm:$0xff]
      %v1512 = vld [vmem:[%s1355 + $0x61] sm:$0xff]
      %v1513 = vld [vmem:[%s1355 + $0x71] sm:$0xff]
      %v1514 = vmul.f32 %v1457, %v1506
      %v1515 = vmul.f32 %v1457, %v1507
      %v1516 = vmul.f32 %v1457, %v1508
      %v1517 = vmul.f32 %v1457, %v1509
      %v1518 = vmul.f32 %v1457, %v1510
      %v1519 = vmul.f32 %v1457, %v1511
      %v1520 = vmul.f32 %v1457, %v1512
      %v1521 = vmul.f32 %v1457, %v1513
      %v1522 = vadd.f32 %v1447, %v1514
      %v1523 = vadd.f32 %v1448, %v1515
      %v1524 = vadd.f32 %v1449, %v1516
      %v1525 = vadd.f32 %v1450, %v1517
      %v1526 = vadd.f32 %v1451, %v1518
      %v1527 = vadd.f32 %v1452, %v1519
      %v1528 = vadd.f32 %v1453, %v1520
      %v1529 = vadd.f32 %v1454, %v1521
      %s1530 = sadd.s32 %s786, 2
      %s1531 = smul.u32 %s1530, 9
      %s1532 = sld [smem:[#allocation2 + %s1531]]
      %s1533 = scalar_lea.vmem %s2, 288
      %v1534 = vld [vmem:[%s1533] sm:$0xff]
      %v1535 = vld [vmem:[%s1533 + $0x10] sm:$0xff]
      %v1536 = vld [vmem:[%s1533 + $0x20] sm:$0xff]
      %v1537 = vld [vmem:[%s1533 + $0x30] sm:$0xff]
      %v1538 = vld [vmem:[%s1533 + $0x40] sm:$0xff]
      %v1539 = vld [vmem:[%s1533 + $0x50] sm:$0xff]
      %v1540 = vld [vmem:[%s1533 + $0x60] sm:$0xff]
      %v1541 = vld [vmem:[%s1533 + $0x70] sm:$0xff]
      %v1542 = vstv %s1532
      %v1543 = vmul.f32 %v1542, %v1534
      %v1544 = vmul.f32 %v1542, %v1535
      %v1545 = vmul.f32 %v1542, %v1536
      %v1546 = vmul.f32 %v1542, %v1537
      %v1547 = vmul.f32 %v1542, %v1538
      %v1548 = vmul.f32 %v1542, %v1539
      %v1549 = vmul.f32 %v1542, %v1540
      %v1550 = vmul.f32 %v1542, %v1541
      %v1551 = vadd.f32 %v1466, %v1543
      %v1552 = vadd.f32 %v1467, %v1544
      %v1553 = vadd.f32 %v1468, %v1545
      %v1554 = vadd.f32 %v1469, %v1546
      %v1555 = vadd.f32 %v1470, %v1547
      %v1556 = vadd.f32 %v1471, %v1548
      %v1557 = vadd.f32 %v1472, %v1549
      %v1558 = vadd.f32 %v1473, %v1550
      %s1559 = scalar_lea.vmem %s2, 864
      %v1560 = vld [vmem:[%s1559] sm:$0xff]
      %v1561 = vld [vmem:[%s1559 + $0x10] sm:$0xff]
      %v1562 = vld [vmem:[%s1559 + $0x20] sm:$0xff]
      %v1563 = vld [vmem:[%s1559 + $0x30] sm:$0xff]
      %v1564 = vld [vmem:[%s1559 + $0x40] sm:$0xff]
      %v1565 = vld [vmem:[%s1559 + $0x50] sm:$0xff]
      %v1566 = vld [vmem:[%s1559 + $0x60] sm:$0xff]
      %v1567 = vld [vmem:[%s1559 + $0x70] sm:$0xff]
      %v1568 = vmul.f32 %v1542, %v1560
      %v1569 = vmul.f32 %v1542, %v1561
      %v1570 = vmul.f32 %v1542, %v1562
      %v1571 = vmul.f32 %v1542, %v1563
      %v1572 = vmul.f32 %v1542, %v1564
      %v1573 = vmul.f32 %v1542, %v1565
      %v1574 = vmul.f32 %v1542, %v1566
      %v1575 = vmul.f32 %v1542, %v1567
      %v1576 = vadd.f32 %v1482, %v1568
      %v1577 = vadd.f32 %v1483, %v1569
      %v1578 = vadd.f32 %v1484, %v1570
      %v1579 = vadd.f32 %v1485, %v1571
      %v1580 = vadd.f32 %v1486, %v1572
      %v1581 = vadd.f32 %v1487, %v1573
      %v1582 = vadd.f32 %v1488, %v1574
      %v1583 = vadd.f32 %v1489, %v1575
      %s1584 = scalar_lea.vmem %s2, 1440
      %v1585 = vld [vmem:[%s1584] sm:$0xff]
      %v1586 = vld [vmem:[%s1584 + $0x10] sm:$0xff]
      %v1587 = vld [vmem:[%s1584 + $0x20] sm:$0xff]
      %v1588 = vld [vmem:[%s1584 + $0x30] sm:$0xff]
      %v1589 = vld [vmem:[%s1584 + $0x40] sm:$0xff]
      %v1590 = vld [vmem:[%s1584 + $0x50] sm:$0xff]
      %v1591 = vld [vmem:[%s1584 + $0x60] sm:$0xff]
      %v1592 = vld [vmem:[%s1584 + $0x70] sm:$0xff]
      %v1593 = vmul.f32 %v1542, %v1585
      %v1594 = vmul.f32 %v1542, %v1586
      %v1595 = vmul.f32 %v1542, %v1587
      %v1596 = vmul.f32 %v1542, %v1588
      %v1597 = vmul.f32 %v1542, %v1589
      %v1598 = vmul.f32 %v1542, %v1590
      %v1599 = vmul.f32 %v1542, %v1591
      %v1600 = vmul.f32 %v1542, %v1592
      %v1601 = vadd.f32 %v1498, %v1593
      %v1602 = vadd.f32 %v1499, %v1594
      %v1603 = vadd.f32 %v1500, %v1595
      %v1604 = vadd.f32 %v1501, %v1596
      %v1605 = vadd.f32 %v1502, %v1597
      %v1606 = vadd.f32 %v1503, %v1598
      %v1607 = vadd.f32 %v1504, %v1599
      %v1608 = vadd.f32 %v1505, %v1600
      %s1609 = scalar_lea.vmem %s2, 2016
      %v1610 = vld [vmem:[%s1609] sm:$0xff]
      %v1611 = vld [vmem:[%s1609 + $0x10] sm:$0xff]
      %v1612 = vld [vmem:[%s1609 + $0x20] sm:$0xff]
      %v1613 = vld [vmem:[%s1609 + $0x30] sm:$0xff]
      %v1614 = vld [vmem:[%s1609 + $0x40] sm:$0xff]
      %v1615 = vld [vmem:[%s1609 + $0x50] sm:$0xff]
      %v1616 = vld [vmem:[%s1609 + $0x60] sm:$0xff]
      %v1617 = vld [vmem:[%s1609 + $0x70] sm:$0xff]
      %v1618 = vmul.f32 %v1542, %v1610
      %v1619 = vmul.f32 %v1542, %v1611
      %v1620 = vmul.f32 %v1542, %v1612
      %v1621 = vmul.f32 %v1542, %v1613
      %v1622 = vmul.f32 %v1542, %v1614
      %v1623 = vmul.f32 %v1542, %v1615
      %v1624 = vmul.f32 %v1542, %v1616
      %v1625 = vmul.f32 %v1542, %v1617
      %v1626 = vadd.f32 %v1522, %v1618
      %v1627 = vadd.f32 %v1523, %v1619
      %v1628 = vadd.f32 %v1524, %v1620
      %v1629 = vadd.f32 %v1525, %v1621
      %v1630 = vadd.f32 %v1526, %v1622
      %v1631 = vadd.f32 %v1527, %v1623
      %v1632 = vadd.f32 %v1528, %v1624
      %v1633 = vadd.f32 %v1529, %v1625
      %s1634 = sadd.s32 %s1531, 1
      %s1635 = sld [smem:[#allocation2 + %s1634]]
      %v1636 = vstv %s1635
      %v1637 = vmul.f32 %v1636, %v1560
      %v1638 = vmul.f32 %v1636, %v1561
      %v1639 = vmul.f32 %v1636, %v1562
      %v1640 = vmul.f32 %v1636, %v1563
      %v1641 = vmul.f32 %v1636, %v1564
      %v1642 = vmul.f32 %v1636, %v1565
      %v1643 = vmul.f32 %v1636, %v1566
      %v1644 = vmul.f32 %v1636, %v1567
      %v1645 = vadd.f32 %v1551, %v1637
      %v1646 = vadd.f32 %v1552, %v1638
      %v1647 = vadd.f32 %v1553, %v1639
      %v1648 = vadd.f32 %v1554, %v1640
      %v1649 = vadd.f32 %v1555, %v1641
      %v1650 = vadd.f32 %v1556, %v1642
      %v1651 = vadd.f32 %v1557, %v1643
      %v1652 = vadd.f32 %v1558, %v1644
      %v1653 = vld [vmem:[%s1533 + $0x1] sm:$0xff]
      %v1654 = vld [vmem:[%s1533 + $0x11] sm:$0xff]
      %v1655 = vld [vmem:[%s1533 + $0x21] sm:$0xff]
      %v1656 = vld [vmem:[%s1533 + $0x31] sm:$0xff]
      %v1657 = vld [vmem:[%s1533 + $0x41] sm:$0xff]
      %v1658 = vld [vmem:[%s1533 + $0x51] sm:$0xff]
      %v1659 = vld [vmem:[%s1533 + $0x61] sm:$0xff]
      %v1660 = vld [vmem:[%s1533 + $0x71] sm:$0xff]
      %v1661 = vmul.f32 %v1636, %v1653
      %v1662 = vmul.f32 %v1636, %v1654
      %v1663 = vmul.f32 %v1636, %v1655
      %v1664 = vmul.f32 %v1636, %v1656
      %v1665 = vmul.f32 %v1636, %v1657
      %v1666 = vmul.f32 %v1636, %v1658
      %v1667 = vmul.f32 %v1636, %v1659
      %v1668 = vmul.f32 %v1636, %v1660
      %v1669 = vadd.f32 %v1576, %v1661
      %v1670 = vadd.f32 %v1577, %v1662
      %v1671 = vadd.f32 %v1578, %v1663
      %v1672 = vadd.f32 %v1579, %v1664
      %v1673 = vadd.f32 %v1580, %v1665
      %v1674 = vadd.f32 %v1581, %v1666
      %v1675 = vadd.f32 %v1582, %v1667
      %v1676 = vadd.f32 %v1583, %v1668
      %v1677 = vmul.f32 %v1636, %v1610
      %v1678 = vmul.f32 %v1636, %v1611
      %v1679 = vmul.f32 %v1636, %v1612
      %v1680 = vmul.f32 %v1636, %v1613
      %v1681 = vmul.f32 %v1636, %v1614
      %v1682 = vmul.f32 %v1636, %v1615
      %v1683 = vmul.f32 %v1636, %v1616
      %v1684 = vmul.f32 %v1636, %v1617
      %v1685 = vadd.f32 %v1601, %v1677
      %v1686 = vadd.f32 %v1602, %v1678
      %v1687 = vadd.f32 %v1603, %v1679
      %v1688 = vadd.f32 %v1604, %v1680
      %v1689 = vadd.f32 %v1605, %v1681
      %v1690 = vadd.f32 %v1606, %v1682
      %v1691 = vadd.f32 %v1607, %v1683
      %v1692 = vadd.f32 %v1608, %v1684
      %v1693 = vld [vmem:[%s1584 + $0x1] sm:$0xff]
      %v1694 = vld [vmem:[%s1584 + $0x11] sm:$0xff]
      %v1695 = vld [vmem:[%s1584 + $0x21] sm:$0xff]
      %v1696 = vld [vmem:[%s1584 + $0x31] sm:$0xff]
      %v1697 = vld [vmem:[%s1584 + $0x41] sm:$0xff]
      %v1698 = vld [vmem:[%s1584 + $0x51] sm:$0xff]
      %v1699 = vld [vmem:[%s1584 + $0x61] sm:$0xff]
      %v1700 = vld [vmem:[%s1584 + $0x71] sm:$0xff]
      %v1701 = vmul.f32 %v1636, %v1693
      %v1702 = vmul.f32 %v1636, %v1694
      %v1703 = vmul.f32 %v1636, %v1695
      %v1704 = vmul.f32 %v1636, %v1696
      %v1705 = vmul.f32 %v1636, %v1697
      %v1706 = vmul.f32 %v1636, %v1698
      %v1707 = vmul.f32 %v1636, %v1699
      %v1708 = vmul.f32 %v1636, %v1700
      %v1709 = vadd.f32 %v1626, %v1701
      %v1710 = vadd.f32 %v1627, %v1702
      %v1711 = vadd.f32 %v1628, %v1703
      %v1712 = vadd.f32 %v1629, %v1704
      %v1713 = vadd.f32 %v1630, %v1705
      %v1714 = vadd.f32 %v1631, %v1706
      %v1715 = vadd.f32 %v1632, %v1707
      %v1716 = vadd.f32 %v1633, %v1708
      %s1717 = sadd.s32 %s1531, 2
      %s1718 = sld [smem:[#allocation2 + %s1717]]
      %v1719 = vstv %s1718
      %v1720 = vmul.f32 %v1719, %v1653
      %v1721 = vmul.f32 %v1719, %v1654
      %v1722 = vmul.f32 %v1719, %v1655
      %v1723 = vmul.f32 %v1719, %v1656
      %v1724 = vmul.f32 %v1719, %v1657
      %v1725 = vmul.f32 %v1719, %v1658
      %v1726 = vmul.f32 %v1719, %v1659
      %v1727 = vmul.f32 %v1719, %v1660
      %v1728 = vadd.f32 %v1645, %v1720
      %v1729 = vadd.f32 %v1646, %v1721
      %v1730 = vadd.f32 %v1647, %v1722
      %v1731 = vadd.f32 %v1648, %v1723
      %v1732 = vadd.f32 %v1649, %v1724
      %v1733 = vadd.f32 %v1650, %v1725
      %v1734 = vadd.f32 %v1651, %v1726
      %v1735 = vadd.f32 %v1652, %v1727
      %v1736 = vld [vmem:[%s1559 + $0x1] sm:$0xff]
      %v1737 = vld [vmem:[%s1559 + $0x11] sm:$0xff]
      %v1738 = vld [vmem:[%s1559 + $0x21] sm:$0xff]
      %v1739 = vld [vmem:[%s1559 + $0x31] sm:$0xff]
      %v1740 = vld [vmem:[%s1559 + $0x41] sm:$0xff]
      %v1741 = vld [vmem:[%s1559 + $0x51] sm:$0xff]
      %v1742 = vld [vmem:[%s1559 + $0x61] sm:$0xff]
      %v1743 = vld [vmem:[%s1559 + $0x71] sm:$0xff]
      %v1744 = vmul.f32 %v1719, %v1736
      %v1745 = vmul.f32 %v1719, %v1737
      %v1746 = vmul.f32 %v1719, %v1738
      %v1747 = vmul.f32 %v1719, %v1739
      %v1748 = vmul.f32 %v1719, %v1740
      %v1749 = vmul.f32 %v1719, %v1741
      %v1750 = vmul.f32 %v1719, %v1742
      %v1751 = vmul.f32 %v1719, %v1743
      %v1752 = vadd.f32 %v1669, %v1744
      %v1753 = vadd.f32 %v1670, %v1745
      %v1754 = vadd.f32 %v1671, %v1746
      %v1755 = vadd.f32 %v1672, %v1747
      %v1756 = vadd.f32 %v1673, %v1748
      %v1757 = vadd.f32 %v1674, %v1749
      %v1758 = vadd.f32 %v1675, %v1750
      %v1759 = vadd.f32 %v1676, %v1751
      %v1760 = vmul.f32 %v1719, %v1693
      %v1761 = vmul.f32 %v1719, %v1694
      %v1762 = vmul.f32 %v1719, %v1695
      %v1763 = vmul.f32 %v1719, %v1696
      %v1764 = vmul.f32 %v1719, %v1697
      %v1765 = vmul.f32 %v1719, %v1698
      %v1766 = vmul.f32 %v1719, %v1699
      %v1767 = vmul.f32 %v1719, %v1700
      %v1768 = vadd.f32 %v1685, %v1760
      %v1769 = vadd.f32 %v1686, %v1761
      %v1770 = vadd.f32 %v1687, %v1762
      %v1771 = vadd.f32 %v1688, %v1763
      %v1772 = vadd.f32 %v1689, %v1764
      %v1773 = vadd.f32 %v1690, %v1765
      %v1774 = vadd.f32 %v1691, %v1766
      %v1775 = vadd.f32 %v1692, %v1767
      %v1776 = vld [vmem:[%s1609 + $0x1] sm:$0xff]
      %v1777 = vld [vmem:[%s1609 + $0x11] sm:$0xff]
      %v1778 = vld [vmem:[%s1609 + $0x21] sm:$0xff]
      %v1779 = vld [vmem:[%s1609 + $0x31] sm:$0xff]
      %v1780 = vld [vmem:[%s1609 + $0x41] sm:$0xff]
      %v1781 = vld [vmem:[%s1609 + $0x51] sm:$0xff]
      %v1782 = vld [vmem:[%s1609 + $0x61] sm:$0xff]
      %v1783 = vld [vmem:[%s1609 + $0x71] sm:$0xff]
      %v1784 = vmul.f32 %v1719, %v1776
      %v1785 = vmul.f32 %v1719, %v1777
      %v1786 = vmul.f32 %v1719, %v1778
      %v1787 = vmul.f32 %v1719, %v1779
      %v1788 = vmul.f32 %v1719, %v1780
      %v1789 = vmul.f32 %v1719, %v1781
      %v1790 = vmul.f32 %v1719, %v1782
      %v1791 = vmul.f32 %v1719, %v1783
      %v1792 = vadd.f32 %v1709, %v1784
      %v1793 = vadd.f32 %v1710, %v1785
      %v1794 = vadd.f32 %v1711, %v1786
      %v1795 = vadd.f32 %v1712, %v1787
      %v1796 = vadd.f32 %v1713, %v1788
      %v1797 = vadd.f32 %v1714, %v1789
      %v1798 = vadd.f32 %v1715, %v1790
      %v1799 = vadd.f32 %v1716, %v1791
      %s1800 = smul.u32 %s1530, 3
      %s1801 = sadd.s32 %s1800, 1
      %s1802 = smul.u32 %s1801, 3
      %s1803 = sld [smem:[#allocation2 + %s1802]]
      %v1804 = vstv %s1803
      %v1805 = vmul.f32 %v1804, %v1585
      %v1806 = vmul.f32 %v1804, %v1586
      %v1807 = vmul.f32 %v1804, %v1587
      %v1808 = vmul.f32 %v1804, %v1588
      %v1809 = vmul.f32 %v1804, %v1589
      %v1810 = vmul.f32 %v1804, %v1590
      %v1811 = vmul.f32 %v1804, %v1591
      %v1812 = vmul.f32 %v1804, %v1592
      %v1813 = vadd.f32 %v1728, %v1805
      %v1814 = vadd.f32 %v1729, %v1806
      %v1815 = vadd.f32 %v1730, %v1807
      %v1816 = vadd.f32 %v1731, %v1808
      %v1817 = vadd.f32 %v1732, %v1809
      %v1818 = vadd.f32 %v1733, %v1810
      %v1819 = vadd.f32 %v1734, %v1811
      %v1820 = vadd.f32 %v1735, %v1812
      %v1821 = vmul.f32 %v1804, %v1610
      %v1822 = vmul.f32 %v1804, %v1611
      %v1823 = vmul.f32 %v1804, %v1612
      %v1824 = vmul.f32 %v1804, %v1613
      %v1825 = vmul.f32 %v1804, %v1614
      %v1826 = vmul.f32 %v1804, %v1615
      %v1827 = vmul.f32 %v1804, %v1616
      %v1828 = vmul.f32 %v1804, %v1617
      %v1829 = vadd.f32 %v1752, %v1821
      %v1830 = vadd.f32 %v1753, %v1822
      %v1831 = vadd.f32 %v1754, %v1823
      %v1832 = vadd.f32 %v1755, %v1824
      %v1833 = vadd.f32 %v1756, %v1825
      %v1834 = vadd.f32 %v1757, %v1826
      %v1835 = vadd.f32 %v1758, %v1827
      %v1836 = vadd.f32 %v1759, %v1828
      %s1837 = scalar_lea.vmem %s2, 304
      %v1838 = vld [vmem:[%s1837] sm:$0xff]
      %v1839 = vld [vmem:[%s1837 + $0x10] sm:$0xff]
      %v1840 = vld [vmem:[%s1837 + $0x20] sm:$0xff]
      %v1841 = vld [vmem:[%s1837 + $0x30] sm:$0xff]
      %v1842 = vld [vmem:[%s1837 + $0x40] sm:$0xff]
      %v1843 = vld [vmem:[%s1837 + $0x50] sm:$0xff]
      %v1844 = vld [vmem:[%s1837 + $0x60] sm:$0xff]
      %v1845 = vld [vmem:[%s1837 + $0x70] sm:$0xff]
      %v1846 = vmul.f32 %v1804, %v1838
      %v1847 = vmul.f32 %v1804, %v1839
      %v1848 = vmul.f32 %v1804, %v1840
      %v1849 = vmul.f32 %v1804, %v1841
      %v1850 = vmul.f32 %v1804, %v1842
      %v1851 = vmul.f32 %v1804, %v1843
      %v1852 = vmul.f32 %v1804, %v1844
      %v1853 = vmul.f32 %v1804, %v1845
      %v1854 = vadd.f32 %v1768, %v1846
      %v1855 = vadd.f32 %v1769, %v1847
      %v1856 = vadd.f32 %v1770, %v1848
      %v1857 = vadd.f32 %v1771, %v1849
      %v1858 = vadd.f32 %v1772, %v1850
      %v1859 = vadd.f32 %v1773, %v1851
      %v1860 = vadd.f32 %v1774, %v1852
      %v1861 = vadd.f32 %v1775, %v1853
      %s1862 = scalar_lea.vmem %s2, 880
      %v1863 = vld [vmem:[%s1862] sm:$0xff]
      %v1864 = vld [vmem:[%s1862 + $0x10] sm:$0xff]
      %v1865 = vld [vmem:[%s1862 + $0x20] sm:$0xff]
      %v1866 = vld [vmem:[%s1862 + $0x30] sm:$0xff]
      %v1867 = vld [vmem:[%s1862 + $0x40] sm:$0xff]
      %v1868 = vld [vmem:[%s1862 + $0x50] sm:$0xff]
      %v1869 = vld [vmem:[%s1862 + $0x60] sm:$0xff]
      %v1870 = vld [vmem:[%s1862 + $0x70] sm:$0xff]
      %v1871 = vmul.f32 %v1804, %v1863
      %v1872 = vmul.f32 %v1804, %v1864
      %v1873 = vmul.f32 %v1804, %v1865
      %v1874 = vmul.f32 %v1804, %v1866
      %v1875 = vmul.f32 %v1804, %v1867
      %v1876 = vmul.f32 %v1804, %v1868
      %v1877 = vmul.f32 %v1804, %v1869
      %v1878 = vmul.f32 %v1804, %v1870
      %v1879 = vadd.f32 %v1792, %v1871
      %v1880 = vadd.f32 %v1793, %v1872
      %v1881 = vadd.f32 %v1794, %v1873
      %v1882 = vadd.f32 %v1795, %v1874
      %v1883 = vadd.f32 %v1796, %v1875
      %v1884 = vadd.f32 %v1797, %v1876
      %v1885 = vadd.f32 %v1798, %v1877
      %v1886 = vadd.f32 %v1799, %v1878
      %s1887 = sadd.s32 %s1802, 1
      %s1888 = sld [smem:[#allocation2 + %s1887]]
      %v1889 = vstv %s1888
      %v1890 = vmul.f32 %v1889, %v1610
      %v1891 = vmul.f32 %v1889, %v1611
      %v1892 = vmul.f32 %v1889, %v1612
      %v1893 = vmul.f32 %v1889, %v1613
      %v1894 = vmul.f32 %v1889, %v1614
      %v1895 = vmul.f32 %v1889, %v1615
      %v1896 = vmul.f32 %v1889, %v1616
      %v1897 = vmul.f32 %v1889, %v1617
      %v1898 = vadd.f32 %v1813, %v1890
      %v1899 = vadd.f32 %v1814, %v1891
      %v1900 = vadd.f32 %v1815, %v1892
      %v1901 = vadd.f32 %v1816, %v1893
      %v1902 = vadd.f32 %v1817, %v1894
      %v1903 = vadd.f32 %v1818, %v1895
      %v1904 = vadd.f32 %v1819, %v1896
      %v1905 = vadd.f32 %v1820, %v1897
      %v1906 = vmul.f32 %v1889, %v1693
      %v1907 = vmul.f32 %v1889, %v1694
      %v1908 = vmul.f32 %v1889, %v1695
      %v1909 = vmul.f32 %v1889, %v1696
      %v1910 = vmul.f32 %v1889, %v1697
      %v1911 = vmul.f32 %v1889, %v1698
      %v1912 = vmul.f32 %v1889, %v1699
      %v1913 = vmul.f32 %v1889, %v1700
      %v1914 = vadd.f32 %v1829, %v1906
      %v1915 = vadd.f32 %v1830, %v1907
      %v1916 = vadd.f32 %v1831, %v1908
      %v1917 = vadd.f32 %v1832, %v1909
      %v1918 = vadd.f32 %v1833, %v1910
      %v1919 = vadd.f32 %v1834, %v1911
      %v1920 = vadd.f32 %v1835, %v1912
      %v1921 = vadd.f32 %v1836, %v1913
      %v1922 = vmul.f32 %v1889, %v1863
      %v1923 = vmul.f32 %v1889, %v1864
      %v1924 = vmul.f32 %v1889, %v1865
      %v1925 = vmul.f32 %v1889, %v1866
      %v1926 = vmul.f32 %v1889, %v1867
      %v1927 = vmul.f32 %v1889, %v1868
      %v1928 = vmul.f32 %v1889, %v1869
      %v1929 = vmul.f32 %v1889, %v1870
      %v1930 = vadd.f32 %v1854, %v1922
      %v1931 = vadd.f32 %v1855, %v1923
      %v1932 = vadd.f32 %v1856, %v1924
      %v1933 = vadd.f32 %v1857, %v1925
      %v1934 = vadd.f32 %v1858, %v1926
      %v1935 = vadd.f32 %v1859, %v1927
      %v1936 = vadd.f32 %v1860, %v1928
      %v1937 = vadd.f32 %v1861, %v1929
      %v1938 = vld [vmem:[%s1837 + $0x1] sm:$0xff]
      %v1939 = vld [vmem:[%s1837 + $0x11] sm:$0xff]
      %v1940 = vld [vmem:[%s1837 + $0x21] sm:$0xff]
      %v1941 = vld [vmem:[%s1837 + $0x31] sm:$0xff]
      %v1942 = vld [vmem:[%s1837 + $0x41] sm:$0xff]
      %v1943 = vld [vmem:[%s1837 + $0x51] sm:$0xff]
      %v1944 = vld [vmem:[%s1837 + $0x61] sm:$0xff]
      %v1945 = vld [vmem:[%s1837 + $0x71] sm:$0xff]
      %v1946 = vmul.f32 %v1889, %v1938
      %v1947 = vmul.f32 %v1889, %v1939
      %v1948 = vmul.f32 %v1889, %v1940
      %v1949 = vmul.f32 %v1889, %v1941
      %v1950 = vmul.f32 %v1889, %v1942
      %v1951 = vmul.f32 %v1889, %v1943
      %v1952 = vmul.f32 %v1889, %v1944
      %v1953 = vmul.f32 %v1889, %v1945
      %v1954 = vadd.f32 %v1879, %v1946
      %v1955 = vadd.f32 %v1880, %v1947
      %v1956 = vadd.f32 %v1881, %v1948
      %v1957 = vadd.f32 %v1882, %v1949
      %v1958 = vadd.f32 %v1883, %v1950
      %v1959 = vadd.f32 %v1884, %v1951
      %v1960 = vadd.f32 %v1885, %v1952
      %v1961 = vadd.f32 %v1886, %v1953
      %s1962 = sadd.s32 %s1802, 2
      %s1963 = sld [smem:[#allocation2 + %s1962]]
      %v1964 = vstv %s1963
      %v1965 = vmul.f32 %v1964, %v1693
      %v1966 = vmul.f32 %v1964, %v1694
      %v1967 = vmul.f32 %v1964, %v1695
      %v1968 = vmul.f32 %v1964, %v1696
      %v1969 = vmul.f32 %v1964, %v1697
      %v1970 = vmul.f32 %v1964, %v1698
      %v1971 = vmul.f32 %v1964, %v1699
      %v1972 = vmul.f32 %v1964, %v1700
      %v1973 = vadd.f32 %v1898, %v1965
      %v1974 = vadd.f32 %v1899, %v1966
      %v1975 = vadd.f32 %v1900, %v1967
      %v1976 = vadd.f32 %v1901, %v1968
      %v1977 = vadd.f32 %v1902, %v1969
      %v1978 = vadd.f32 %v1903, %v1970
      %v1979 = vadd.f32 %v1904, %v1971
      %v1980 = vadd.f32 %v1905, %v1972
      %v1981 = vmul.f32 %v1964, %v1776
      %v1982 = vmul.f32 %v1964, %v1777
      %v1983 = vmul.f32 %v1964, %v1778
      %v1984 = vmul.f32 %v1964, %v1779
      %v1985 = vmul.f32 %v1964, %v1780
      %v1986 = vmul.f32 %v1964, %v1781
      %v1987 = vmul.f32 %v1964, %v1782
      %v1988 = vmul.f32 %v1964, %v1783
      %v1989 = vadd.f32 %v1914, %v1981
      %v1990 = vadd.f32 %v1915, %v1982
      %v1991 = vadd.f32 %v1916, %v1983
      %v1992 = vadd.f32 %v1917, %v1984
      %v1993 = vadd.f32 %v1918, %v1985
      %v1994 = vadd.f32 %v1919, %v1986
      %v1995 = vadd.f32 %v1920, %v1987
      %v1996 = vadd.f32 %v1921, %v1988
      %v1997 = vmul.f32 %v1964, %v1938
      %v1998 = vmul.f32 %v1964, %v1939
      %v1999 = vmul.f32 %v1964, %v1940
      %v2000 = vmul.f32 %v1964, %v1941
      %v2001 = vmul.f32 %v1964, %v1942
      %v2002 = vmul.f32 %v1964, %v1943
      %v2003 = vmul.f32 %v1964, %v1944
      %v2004 = vmul.f32 %v1964, %v1945
      %v2005 = vadd.f32 %v1930, %v1997
      %v2006 = vadd.f32 %v1931, %v1998
      %v2007 = vadd.f32 %v1932, %v1999
      %v2008 = vadd.f32 %v1933, %v2000
      %v2009 = vadd.f32 %v1934, %v2001
      %v2010 = vadd.f32 %v1935, %v2002
      %v2011 = vadd.f32 %v1936, %v2003
      %v2012 = vadd.f32 %v1937, %v2004
      %v2013 = vld [vmem:[%s1862 + $0x1] sm:$0xff]
      %v2014 = vld [vmem:[%s1862 + $0x11] sm:$0xff]
      %v2015 = vld [vmem:[%s1862 + $0x21] sm:$0xff]
      %v2016 = vld [vmem:[%s1862 + $0x31] sm:$0xff]
      %v2017 = vld [vmem:[%s1862 + $0x41] sm:$0xff]
      %v2018 = vld [vmem:[%s1862 + $0x51] sm:$0xff]
      %v2019 = vld [vmem:[%s1862 + $0x61] sm:$0xff]
      %v2020 = vld [vmem:[%s1862 + $0x71] sm:$0xff]
      %v2021 = vmul.f32 %v1964, %v2013
      %v2022 = vmul.f32 %v1964, %v2014
      %v2023 = vmul.f32 %v1964, %v2015
      %v2024 = vmul.f32 %v1964, %v2016
      %v2025 = vmul.f32 %v1964, %v2017
      %v2026 = vmul.f32 %v1964, %v2018
      %v2027 = vmul.f32 %v1964, %v2019
      %v2028 = vmul.f32 %v1964, %v2020
      %v2029 = vadd.f32 %v1954, %v2021
      %v2030 = vadd.f32 %v1955, %v2022
      %v2031 = vadd.f32 %v1956, %v2023
      %v2032 = vadd.f32 %v1957, %v2024
      %v2033 = vadd.f32 %v1958, %v2025
      %v2034 = vadd.f32 %v1959, %v2026
      %v2035 = vadd.f32 %v1960, %v2027
      %v2036 = vadd.f32 %v1961, %v2028
      %s2037 = sadd.s32 %s1800, 2
      %s2038 = smul.u32 %s2037, 3
      %s2039 = sld [smem:[#allocation2 + %s2038]]
      %v2040 = vstv %s2039
      %v2041 = vmul.f32 %v2040, %v1838
      %v2042 = vmul.f32 %v2040, %v1839
      %v2043 = vmul.f32 %v2040, %v1840
      %v2044 = vmul.f32 %v2040, %v1841
      %v2045 = vmul.f32 %v2040, %v1842
      %v2046 = vmul.f32 %v2040, %v1843
      %v2047 = vmul.f32 %v2040, %v1844
      %v2048 = vmul.f32 %v2040, %v1845
      %v2049 = vadd.f32 %v1973, %v2041
      %v2050 = vadd.f32 %v1974, %v2042
      %v2051 = vadd.f32 %v1975, %v2043
      %v2052 = vadd.f32 %v1976, %v2044
      %v2053 = vadd.f32 %v1977, %v2045
      %v2054 = vadd.f32 %v1978, %v2046
      %v2055 = vadd.f32 %v1979, %v2047
      %v2056 = vadd.f32 %v1980, %v2048
      %v2057 = vmul.f32 %v2040, %v1863
      %v2058 = vmul.f32 %v2040, %v1864
      %v2059 = vmul.f32 %v2040, %v1865
      %v2060 = vmul.f32 %v2040, %v1866
      %v2061 = vmul.f32 %v2040, %v1867
      %v2062 = vmul.f32 %v2040, %v1868
      %v2063 = vmul.f32 %v2040, %v1869
      %v2064 = vmul.f32 %v2040, %v1870
      %v2065 = vadd.f32 %v1989, %v2057
      %v2066 = vadd.f32 %v1990, %v2058
      %v2067 = vadd.f32 %v1991, %v2059
      %v2068 = vadd.f32 %v1992, %v2060
      %v2069 = vadd.f32 %v1993, %v2061
      %v2070 = vadd.f32 %v1994, %v2062
      %v2071 = vadd.f32 %v1995, %v2063
      %v2072 = vadd.f32 %v1996, %v2064
      %s2073 = scalar_lea.vmem %s2, 1456
      %v2074 = vld [vmem:[%s2073] sm:$0xff]
      %v2075 = vld [vmem:[%s2073 + $0x10] sm:$0xff]
      %v2076 = vld [vmem:[%s2073 + $0x20] sm:$0xff]
      %v2077 = vld [vmem:[%s2073 + $0x30] sm:$0xff]
      %v2078 = vld [vmem:[%s2073 + $0x40] sm:$0xff]
      %v2079 = vld [vmem:[%s2073 + $0x50] sm:$0xff]
      %v2080 = vld [vmem:[%s2073 + $0x60] sm:$0xff]
      %v2081 = vld [vmem:[%s2073 + $0x70] sm:$0xff]
      %v2082 = vmul.f32 %v2040, %v2074
      %v2083 = vmul.f32 %v2040, %v2075
      %v2084 = vmul.f32 %v2040, %v2076
      %v2085 = vmul.f32 %v2040, %v2077
      %v2086 = vmul.f32 %v2040, %v2078
      %v2087 = vmul.f32 %v2040, %v2079
      %v2088 = vmul.f32 %v2040, %v2080
      %v2089 = vmul.f32 %v2040, %v2081
      %v2090 = vadd.f32 %v2005, %v2082
      %v2091 = vadd.f32 %v2006, %v2083
      %v2092 = vadd.f32 %v2007, %v2084
      %v2093 = vadd.f32 %v2008, %v2085
      %v2094 = vadd.f32 %v2009, %v2086
      %v2095 = vadd.f32 %v2010, %v2087
      %v2096 = vadd.f32 %v2011, %v2088
      %v2097 = vadd.f32 %v2012, %v2089
      %s2098 = scalar_lea.vmem %s2, 2032
      %v2099 = vld [vmem:[%s2098] sm:$0xff]
      %v2100 = vld [vmem:[%s2098 + $0x10] sm:$0xff]
      %v2101 = vld [vmem:[%s2098 + $0x20] sm:$0xff]
      %v2102 = vld [vmem:[%s2098 + $0x30] sm:$0xff]
      %v2103 = vld [vmem:[%s2098 + $0x40] sm:$0xff]
      %v2104 = vld [vmem:[%s2098 + $0x50] sm:$0xff]
      %v2105 = vld [vmem:[%s2098 + $0x60] sm:$0xff]
      %v2106 = vld [vmem:[%s2098 + $0x70] sm:$0xff]
      %v2107 = vmul.f32 %v2040, %v2099
      %v2108 = vmul.f32 %v2040, %v2100
      %v2109 = vmul.f32 %v2040, %v2101
      %v2110 = vmul.f32 %v2040, %v2102
      %v2111 = vmul.f32 %v2040, %v2103
      %v2112 = vmul.f32 %v2040, %v2104
      %v2113 = vmul.f32 %v2040, %v2105
      %v2114 = vmul.f32 %v2040, %v2106
      %v2115 = vadd.f32 %v2029, %v2107
      %v2116 = vadd.f32 %v2030, %v2108
      %v2117 = vadd.f32 %v2031, %v2109
      %v2118 = vadd.f32 %v2032, %v2110
      %v2119 = vadd.f32 %v2033, %v2111
      %v2120 = vadd.f32 %v2034, %v2112
      %v2121 = vadd.f32 %v2035, %v2113
      %v2122 = vadd.f32 %v2036, %v2114
      %s2123 = sadd.s32 %s2038, 1
      %s2124 = sld [smem:[#allocation2 + %s2123]]
      %v2125 = vstv %s2124
      %v2126 = vmul.f32 %v2125, %v1863
      %v2127 = vmul.f32 %v2125, %v1864
      %v2128 = vmul.f32 %v2125, %v1865
      %v2129 = vmul.f32 %v2125, %v1866
      %v2130 = vmul.f32 %v2125, %v1867
      %v2131 = vmul.f32 %v2125, %v1868
      %v2132 = vmul.f32 %v2125, %v1869
      %v2133 = vmul.f32 %v2125, %v1870
      %v2134 = vadd.f32 %v2049, %v2126
      %v2135 = vadd.f32 %v2050, %v2127
      %v2136 = vadd.f32 %v2051, %v2128
      %v2137 = vadd.f32 %v2052, %v2129
      %v2138 = vadd.f32 %v2053, %v2130
      %v2139 = vadd.f32 %v2054, %v2131
      %v2140 = vadd.f32 %v2055, %v2132
      %v2141 = vadd.f32 %v2056, %v2133
      %v2142 = vmul.f32 %v2125, %v1938
      %v2143 = vmul.f32 %v2125, %v1939
      %v2144 = vmul.f32 %v2125, %v1940
      %v2145 = vmul.f32 %v2125, %v1941
      %v2146 = vmul.f32 %v2125, %v1942
      %v2147 = vmul.f32 %v2125, %v1943
      %v2148 = vmul.f32 %v2125, %v1944
      %v2149 = vmul.f32 %v2125, %v1945
      %v2150 = vadd.f32 %v2065, %v2142
      %v2151 = vadd.f32 %v2066, %v2143
      %v2152 = vadd.f32 %v2067, %v2144
      %v2153 = vadd.f32 %v2068, %v2145
      %v2154 = vadd.f32 %v2069, %v2146
      %v2155 = vadd.f32 %v2070, %v2147
      %v2156 = vadd.f32 %v2071, %v2148
      %v2157 = vadd.f32 %v2072, %v2149
      %v2158 = vmul.f32 %v2125, %v2099
      %v2159 = vmul.f32 %v2125, %v2100
      %v2160 = vmul.f32 %v2125, %v2101
      %v2161 = vmul.f32 %v2125, %v2102
      %v2162 = vmul.f32 %v2125, %v2103
      %v2163 = vmul.f32 %v2125, %v2104
      %v2164 = vmul.f32 %v2125, %v2105
      %v2165 = vmul.f32 %v2125, %v2106
      %v2166 = vadd.f32 %v2090, %v2158
      %v2167 = vadd.f32 %v2091, %v2159
      %v2168 = vadd.f32 %v2092, %v2160
      %v2169 = vadd.f32 %v2093, %v2161
      %v2170 = vadd.f32 %v2094, %v2162
      %v2171 = vadd.f32 %v2095, %v2163
      %v2172 = vadd.f32 %v2096, %v2164
      %v2173 = vadd.f32 %v2097, %v2165
      %v2174 = vld [vmem:[%s2073 + $0x1] sm:$0xff]
      %v2175 = vld [vmem:[%s2073 + $0x11] sm:$0xff]
      %v2176 = vld [vmem:[%s2073 + $0x21] sm:$0xff]
      %v2177 = vld [vmem:[%s2073 + $0x31] sm:$0xff]
      %v2178 = vld [vmem:[%s2073 + $0x41] sm:$0xff]
      %v2179 = vld [vmem:[%s2073 + $0x51] sm:$0xff]
      %v2180 = vld [vmem:[%s2073 + $0x61] sm:$0xff]
      %v2181 = vld [vmem:[%s2073 + $0x71] sm:$0xff]
      %v2182 = vmul.f32 %v2125, %v2174
      %v2183 = vmul.f32 %v2125, %v2175
      %v2184 = vmul.f32 %v2125, %v2176
      %v2185 = vmul.f32 %v2125, %v2177
      %v2186 = vmul.f32 %v2125, %v2178
      %v2187 = vmul.f32 %v2125, %v2179
      %v2188 = vmul.f32 %v2125, %v2180
      %v2189 = vmul.f32 %v2125, %v2181
      %v2190 = vadd.f32 %v2115, %v2182
      %v2191 = vadd.f32 %v2116, %v2183
      %v2192 = vadd.f32 %v2117, %v2184
      %v2193 = vadd.f32 %v2118, %v2185
      %v2194 = vadd.f32 %v2119, %v2186
      %v2195 = vadd.f32 %v2120, %v2187
      %v2196 = vadd.f32 %v2121, %v2188
      %v2197 = vadd.f32 %v2122, %v2189
      %s2198 = sadd.s32 %s2038, 2
      %s2199 = sld [smem:[#allocation2 + %s2198]]
      %v2200 = vstv %s2199
      %v2201 = vmul.f32 %v2200, %v1938
      %v2202 = vmul.f32 %v2200, %v1939
      %v2203 = vmul.f32 %v2200, %v1940
      %v2204 = vmul.f32 %v2200, %v1941
      %v2205 = vmul.f32 %v2200, %v1942
      %v2206 = vmul.f32 %v2200, %v1943
      %v2207 = vmul.f32 %v2200, %v1944
      %v2208 = vmul.f32 %v2200, %v1945
      %v2209 = vadd.f32 %v2134, %v2201
      %v2210 = vadd.f32 %v2135, %v2202
      %v2211 = vadd.f32 %v2136, %v2203
      %v2212 = vadd.f32 %v2137, %v2204
      %v2213 = vadd.f32 %v2138, %v2205
      %v2214 = vadd.f32 %v2139, %v2206
      %v2215 = vadd.f32 %v2140, %v2207
      %v2216 = vadd.f32 %v2141, %v2208
      %v2217 = vmul.f32 %v2200, %v2013
      %v2218 = vmul.f32 %v2200, %v2014
      %v2219 = vmul.f32 %v2200, %v2015
      %v2220 = vmul.f32 %v2200, %v2016
      %v2221 = vmul.f32 %v2200, %v2017
      %v2222 = vmul.f32 %v2200, %v2018
      %v2223 = vmul.f32 %v2200, %v2019
      %v2224 = vmul.f32 %v2200, %v2020
      %v2225 = vadd.f32 %v2150, %v2217
      %v2226 = vadd.f32 %v2151, %v2218
      %v2227 = vadd.f32 %v2152, %v2219
      %v2228 = vadd.f32 %v2153, %v2220
      %v2229 = vadd.f32 %v2154, %v2221
      %v2230 = vadd.f32 %v2155, %v2222
      %v2231 = vadd.f32 %v2156, %v2223
      %v2232 = vadd.f32 %v2157, %v2224
      %v2233 = vmul.f32 %v2200, %v2174
      %v2234 = vmul.f32 %v2200, %v2175
      %v2235 = vmul.f32 %v2200, %v2176
      %v2236 = vmul.f32 %v2200, %v2177
      %v2237 = vmul.f32 %v2200, %v2178
      %v2238 = vmul.f32 %v2200, %v2179
      %v2239 = vmul.f32 %v2200, %v2180
      %v2240 = vmul.f32 %v2200, %v2181
      %v2241 = vadd.f32 %v2166, %v2233
      %v2242 = vadd.f32 %v2167, %v2234
      %v2243 = vadd.f32 %v2168, %v2235
      %v2244 = vadd.f32 %v2169, %v2236
      %v2245 = vadd.f32 %v2170, %v2237
      %v2246 = vadd.f32 %v2171, %v2238
      %v2247 = vadd.f32 %v2172, %v2239
      %v2248 = vadd.f32 %v2173, %v2240
      %v2249 = vld [vmem:[%s2098 + $0x1] sm:$0xff]
      %v2250 = vld [vmem:[%s2098 + $0x11] sm:$0xff]
      %v2251 = vld [vmem:[%s2098 + $0x21] sm:$0xff]
      %v2252 = vld [vmem:[%s2098 + $0x31] sm:$0xff]
      %v2253 = vld [vmem:[%s2098 + $0x41] sm:$0xff]
      %v2254 = vld [vmem:[%s2098 + $0x51] sm:$0xff]
      %v2255 = vld [vmem:[%s2098 + $0x61] sm:$0xff]
      %v2256 = vld [vmem:[%s2098 + $0x71] sm:$0xff]
      %v2257 = vmul.f32 %v2200, %v2249
      %v2258 = vmul.f32 %v2200, %v2250
      %v2259 = vmul.f32 %v2200, %v2251
      %v2260 = vmul.f32 %v2200, %v2252
      %v2261 = vmul.f32 %v2200, %v2253
      %v2262 = vmul.f32 %v2200, %v2254
      %v2263 = vmul.f32 %v2200, %v2255
      %v2264 = vmul.f32 %v2200, %v2256
      %v2265 = vadd.f32 %v2190, %v2257
      %v2266 = vadd.f32 %v2191, %v2258
      %v2267 = vadd.f32 %v2192, %v2259
      %v2268 = vadd.f32 %v2193, %v2260
      %v2269 = vadd.f32 %v2194, %v2261
      %v2270 = vadd.f32 %v2195, %v2262
      %v2271 = vadd.f32 %v2196, %v2263
      %v2272 = vadd.f32 %v2197, %v2264
      %s2273 = sadd.s32 %s786, 3
      %s2274 = smul.u32 %s2273, 9
      %s2275 = sld [smem:[#allocation2 + %s2274]]
      %s2276 = scalar_lea.vmem %s2, 432
      %v2277 = vld [vmem:[%s2276] sm:$0xff]
      %v2278 = vld [vmem:[%s2276 + $0x10] sm:$0xff]
      %v2279 = vld [vmem:[%s2276 + $0x20] sm:$0xff]
      %v2280 = vld [vmem:[%s2276 + $0x30] sm:$0xff]
      %v2281 = vld [vmem:[%s2276 + $0x40] sm:$0xff]
      %v2282 = vld [vmem:[%s2276 + $0x50] sm:$0xff]
      %v2283 = vld [vmem:[%s2276 + $0x60] sm:$0xff]
      %v2284 = vld [vmem:[%s2276 + $0x70] sm:$0xff]
      %v2285 = vstv %s2275
      %v2286 = vmul.f32 %v2285, %v2277
      %v2287 = vmul.f32 %v2285, %v2278
      %v2288 = vmul.f32 %v2285, %v2279
      %v2289 = vmul.f32 %v2285, %v2280
      %v2290 = vmul.f32 %v2285, %v2281
      %v2291 = vmul.f32 %v2285, %v2282
      %v2292 = vmul.f32 %v2285, %v2283
      %v2293 = vmul.f32 %v2285, %v2284
      %v2294 = vadd.f32 %v2209, %v2286
      %v2295 = vadd.f32 %v2210, %v2287
      %v2296 = vadd.f32 %v2211, %v2288
      %v2297 = vadd.f32 %v2212, %v2289
      %v2298 = vadd.f32 %v2213, %v2290
      %v2299 = vadd.f32 %v2214, %v2291
      %v2300 = vadd.f32 %v2215, %v2292
      %v2301 = vadd.f32 %v2216, %v2293
      %s2302 = scalar_lea.vmem %s2, 1008
      %v2303 = vld [vmem:[%s2302] sm:$0xff]
      %v2304 = vld [vmem:[%s2302 + $0x10] sm:$0xff]
      %v2305 = vld [vmem:[%s2302 + $0x20] sm:$0xff]
      %v2306 = vld [vmem:[%s2302 + $0x30] sm:$0xff]
      %v2307 = vld [vmem:[%s2302 + $0x40] sm:$0xff]
      %v2308 = vld [vmem:[%s2302 + $0x50] sm:$0xff]
      %v2309 = vld [vmem:[%s2302 + $0x60] sm:$0xff]
      %v2310 = vld [vmem:[%s2302 + $0x70] sm:$0xff]
      %v2311 = vmul.f32 %v2285, %v2303
      %v2312 = vmul.f32 %v2285, %v2304
      %v2313 = vmul.f32 %v2285, %v2305
      %v2314 = vmul.f32 %v2285, %v2306
      %v2315 = vmul.f32 %v2285, %v2307
      %v2316 = vmul.f32 %v2285, %v2308
      %v2317 = vmul.f32 %v2285, %v2309
      %v2318 = vmul.f32 %v2285, %v2310
      %v2319 = vadd.f32 %v2225, %v2311
      %v2320 = vadd.f32 %v2226, %v2312
      %v2321 = vadd.f32 %v2227, %v2313
      %v2322 = vadd.f32 %v2228, %v2314
      %v2323 = vadd.f32 %v2229, %v2315
      %v2324 = vadd.f32 %v2230, %v2316
      %v2325 = vadd.f32 %v2231, %v2317
      %v2326 = vadd.f32 %v2232, %v2318
      %s2327 = scalar_lea.vmem %s2, 1584
      %v2328 = vld [vmem:[%s2327] sm:$0xff]
      %v2329 = vld [vmem:[%s2327 + $0x10] sm:$0xff]
      %v2330 = vld [vmem:[%s2327 + $0x20] sm:$0xff]
      %v2331 = vld [vmem:[%s2327 + $0x30] sm:$0xff]
      %v2332 = vld [vmem:[%s2327 + $0x40] sm:$0xff]
      %v2333 = vld [vmem:[%s2327 + $0x50] sm:$0xff]
      %v2334 = vld [vmem:[%s2327 + $0x60] sm:$0xff]
      %v2335 = vld [vmem:[%s2327 + $0x70] sm:$0xff]
      %v2336 = vmul.f32 %v2285, %v2328
      %v2337 = vmul.f32 %v2285, %v2329
      %v2338 = vmul.f32 %v2285, %v2330
      %v2339 = vmul.f32 %v2285, %v2331
      %v2340 = vmul.f32 %v2285, %v2332
      %v2341 = vmul.f32 %v2285, %v2333
      %v2342 = vmul.f32 %v2285, %v2334
      %v2343 = vmul.f32 %v2285, %v2335
      %v2344 = vadd.f32 %v2241, %v2336
      %v2345 = vadd.f32 %v2242, %v2337
      %v2346 = vadd.f32 %v2243, %v2338
      %v2347 = vadd.f32 %v2244, %v2339
      %v2348 = vadd.f32 %v2245, %v2340
      %v2349 = vadd.f32 %v2246, %v2341
      %v2350 = vadd.f32 %v2247, %v2342
      %v2351 = vadd.f32 %v2248, %v2343
      %s2352 = scalar_lea.vmem %s2, 2160
      %v2353 = vld [vmem:[%s2352] sm:$0xff]
      %v2354 = vld [vmem:[%s2352 + $0x10] sm:$0xff]
      %v2355 = vld [vmem:[%s2352 + $0x20] sm:$0xff]
      %v2356 = vld [vmem:[%s2352 + $0x30] sm:$0xff]
      %v2357 = vld [vmem:[%s2352 + $0x40] sm:$0xff]
      %v2358 = vld [vmem:[%s2352 + $0x50] sm:$0xff]
      %v2359 = vld [vmem:[%s2352 + $0x60] sm:$0xff]
      %v2360 = vld [vmem:[%s2352 + $0x70] sm:$0xff]
      %v2361 = vmul.f32 %v2285, %v2353
      %v2362 = vmul.f32 %v2285, %v2354
      %v2363 = vmul.f32 %v2285, %v2355
      %v2364 = vmul.f32 %v2285, %v2356
      %v2365 = vmul.f32 %v2285, %v2357
      %v2366 = vmul.f32 %v2285, %v2358
      %v2367 = vmul.f32 %v2285, %v2359
      %v2368 = vmul.f32 %v2285, %v2360
      %v2369 = vadd.f32 %v2265, %v2361
      %v2370 = vadd.f32 %v2266, %v2362
      %v2371 = vadd.f32 %v2267, %v2363
      %v2372 = vadd.f32 %v2268, %v2364
      %v2373 = vadd.f32 %v2269, %v2365
      %v2374 = vadd.f32 %v2270, %v2366
      %v2375 = vadd.f32 %v2271, %v2367
      %v2376 = vadd.f32 %v2272, %v2368
      %s2377 = sadd.s32 %s2274, 1
      %s2378 = sld [smem:[#allocation2 + %s2377]]
      %v2379 = vstv %s2378
      %v2380 = vmul.f32 %v2379, %v2303
      %v2381 = vmul.f32 %v2379, %v2304
      %v2382 = vmul.f32 %v2379, %v2305
      %v2383 = vmul.f32 %v2379, %v2306
      %v2384 = vmul.f32 %v2379, %v2307
      %v2385 = vmul.f32 %v2379, %v2308
      %v2386 = vmul.f32 %v2379, %v2309
      %v2387 = vmul.f32 %v2379, %v2310
      %v2388 = vadd.f32 %v2294, %v2380
      %v2389 = vadd.f32 %v2295, %v2381
      %v2390 = vadd.f32 %v2296, %v2382
      %v2391 = vadd.f32 %v2297, %v2383
      %v2392 = vadd.f32 %v2298, %v2384
      %v2393 = vadd.f32 %v2299, %v2385
      %v2394 = vadd.f32 %v2300, %v2386
      %v2395 = vadd.f32 %v2301, %v2387
      %v2396 = vld [vmem:[%s2276 + $0x1] sm:$0xff]
      %v2397 = vld [vmem:[%s2276 + $0x11] sm:$0xff]
      %v2398 = vld [vmem:[%s2276 + $0x21] sm:$0xff]
      %v2399 = vld [vmem:[%s2276 + $0x31] sm:$0xff]
      %v2400 = vld [vmem:[%s2276 + $0x41] sm:$0xff]
      %v2401 = vld [vmem:[%s2276 + $0x51] sm:$0xff]
      %v2402 = vld [vmem:[%s2276 + $0x61] sm:$0xff]
      %v2403 = vld [vmem:[%s2276 + $0x71] sm:$0xff]
      %v2404 = vmul.f32 %v2379, %v2396
      %v2405 = vmul.f32 %v2379, %v2397
      %v2406 = vmul.f32 %v2379, %v2398
      %v2407 = vmul.f32 %v2379, %v2399
      %v2408 = vmul.f32 %v2379, %v2400
      %v2409 = vmul.f32 %v2379, %v2401
      %v2410 = vmul.f32 %v2379, %v2402
      %v2411 = vmul.f32 %v2379, %v2403
      %v2412 = vadd.f32 %v2319, %v2404
      %v2413 = vadd.f32 %v2320, %v2405
      %v2414 = vadd.f32 %v2321, %v2406
      %v2415 = vadd.f32 %v2322, %v2407
      %v2416 = vadd.f32 %v2323, %v2408
      %v2417 = vadd.f32 %v2324, %v2409
      %v2418 = vadd.f32 %v2325, %v2410
      %v2419 = vadd.f32 %v2326, %v2411
      %v2420 = vmul.f32 %v2379, %v2353
      %v2421 = vmul.f32 %v2379, %v2354
      %v2422 = vmul.f32 %v2379, %v2355
      %v2423 = vmul.f32 %v2379, %v2356
      %v2424 = vmul.f32 %v2379, %v2357
      %v2425 = vmul.f32 %v2379, %v2358
      %v2426 = vmul.f32 %v2379, %v2359
      %v2427 = vmul.f32 %v2379, %v2360
      %v2428 = vadd.f32 %v2344, %v2420
      %v2429 = vadd.f32 %v2345, %v2421
      %v2430 = vadd.f32 %v2346, %v2422
      %v2431 = vadd.f32 %v2347, %v2423
      %v2432 = vadd.f32 %v2348, %v2424
      %v2433 = vadd.f32 %v2349, %v2425
      %v2434 = vadd.f32 %v2350, %v2426
      %v2435 = vadd.f32 %v2351, %v2427
      %v2436 = vld [vmem:[%s2327 + $0x1] sm:$0xff]
      %v2437 = vld [vmem:[%s2327 + $0x11] sm:$0xff]
      %v2438 = vld [vmem:[%s2327 + $0x21] sm:$0xff]
      %v2439 = vld [vmem:[%s2327 + $0x31] sm:$0xff]
      %v2440 = vld [vmem:[%s2327 + $0x41] sm:$0xff]
      %v2441 = vld [vmem:[%s2327 + $0x51] sm:$0xff]
      %v2442 = vld [vmem:[%s2327 + $0x61] sm:$0xff]
      %v2443 = vld [vmem:[%s2327 + $0x71] sm:$0xff]
      %v2444 = vmul.f32 %v2379, %v2436
      %v2445 = vmul.f32 %v2379, %v2437
      %v2446 = vmul.f32 %v2379, %v2438
      %v2447 = vmul.f32 %v2379, %v2439
      %v2448 = vmul.f32 %v2379, %v2440
      %v2449 = vmul.f32 %v2379, %v2441
      %v2450 = vmul.f32 %v2379, %v2442
      %v2451 = vmul.f32 %v2379, %v2443
      %v2452 = vadd.f32 %v2369, %v2444
      %v2453 = vadd.f32 %v2370, %v2445
      %v2454 = vadd.f32 %v2371, %v2446
      %v2455 = vadd.f32 %v2372, %v2447
      %v2456 = vadd.f32 %v2373, %v2448
      %v2457 = vadd.f32 %v2374, %v2449
      %v2458 = vadd.f32 %v2375, %v2450
      %v2459 = vadd.f32 %v2376, %v2451
      %s2460 = sadd.s32 %s2274, 2
      %s2461 = sld [smem:[#allocation2 + %s2460]]
      %v2462 = vstv %s2461
      %v2463 = vmul.f32 %v2462, %v2396
      %v2464 = vmul.f32 %v2462, %v2397
      %v2465 = vmul.f32 %v2462, %v2398
      %v2466 = vmul.f32 %v2462, %v2399
      %v2467 = vmul.f32 %v2462, %v2400
      %v2468 = vmul.f32 %v2462, %v2401
      %v2469 = vmul.f32 %v2462, %v2402
      %v2470 = vmul.f32 %v2462, %v2403
      %v2471 = vadd.f32 %v2388, %v2463
      %v2472 = vadd.f32 %v2389, %v2464
      %v2473 = vadd.f32 %v2390, %v2465
      %v2474 = vadd.f32 %v2391, %v2466
      %v2475 = vadd.f32 %v2392, %v2467
      %v2476 = vadd.f32 %v2393, %v2468
      %v2477 = vadd.f32 %v2394, %v2469
      %v2478 = vadd.f32 %v2395, %v2470
      %v2479 = vld [vmem:[%s2302 + $0x1] sm:$0xff]
      %v2480 = vld [vmem:[%s2302 + $0x11] sm:$0xff]
      %v2481 = vld [vmem:[%s2302 + $0x21] sm:$0xff]
      %v2482 = vld [vmem:[%s2302 + $0x31] sm:$0xff]
      %v2483 = vld [vmem:[%s2302 + $0x41] sm:$0xff]
      %v2484 = vld [vmem:[%s2302 + $0x51] sm:$0xff]
      %v2485 = vld [vmem:[%s2302 + $0x61] sm:$0xff]
      %v2486 = vld [vmem:[%s2302 + $0x71] sm:$0xff]
      %v2487 = vmul.f32 %v2462, %v2479
      %v2488 = vmul.f32 %v2462, %v2480
      %v2489 = vmul.f32 %v2462, %v2481
      %v2490 = vmul.f32 %v2462, %v2482
      %v2491 = vmul.f32 %v2462, %v2483
      %v2492 = vmul.f32 %v2462, %v2484
      %v2493 = vmul.f32 %v2462, %v2485
      %v2494 = vmul.f32 %v2462, %v2486
      %v2495 = vadd.f32 %v2412, %v2487
      %v2496 = vadd.f32 %v2413, %v2488
      %v2497 = vadd.f32 %v2414, %v2489
      %v2498 = vadd.f32 %v2415, %v2490
      %v2499 = vadd.f32 %v2416, %v2491
      %v2500 = vadd.f32 %v2417, %v2492
      %v2501 = vadd.f32 %v2418, %v2493
      %v2502 = vadd.f32 %v2419, %v2494
      %v2503 = vmul.f32 %v2462, %v2436
      %v2504 = vmul.f32 %v2462, %v2437
      %v2505 = vmul.f32 %v2462, %v2438
      %v2506 = vmul.f32 %v2462, %v2439
      %v2507 = vmul.f32 %v2462, %v2440
      %v2508 = vmul.f32 %v2462, %v2441
      %v2509 = vmul.f32 %v2462, %v2442
      %v2510 = vmul.f32 %v2462, %v2443
      %v2511 = vadd.f32 %v2428, %v2503
      %v2512 = vadd.f32 %v2429, %v2504
      %v2513 = vadd.f32 %v2430, %v2505
      %v2514 = vadd.f32 %v2431, %v2506
      %v2515 = vadd.f32 %v2432, %v2507
      %v2516 = vadd.f32 %v2433, %v2508
      %v2517 = vadd.f32 %v2434, %v2509
      %v2518 = vadd.f32 %v2435, %v2510
      %v2519 = vld [vmem:[%s2352 + $0x1] sm:$0xff]
      %v2520 = vld [vmem:[%s2352 + $0x11] sm:$0xff]
      %v2521 = vld [vmem:[%s2352 + $0x21] sm:$0xff]
      %v2522 = vld [vmem:[%s2352 + $0x31] sm:$0xff]
      %v2523 = vld [vmem:[%s2352 + $0x41] sm:$0xff]
      %v2524 = vld [vmem:[%s2352 + $0x51] sm:$0xff]
      %v2525 = vld [vmem:[%s2352 + $0x61] sm:$0xff]
      %v2526 = vld [vmem:[%s2352 + $0x71] sm:$0xff]
      %v2527 = vmul.f32 %v2462, %v2519
      %v2528 = vmul.f32 %v2462, %v2520
      %v2529 = vmul.f32 %v2462, %v2521
      %v2530 = vmul.f32 %v2462, %v2522
      %v2531 = vmul.f32 %v2462, %v2523
      %v2532 = vmul.f32 %v2462, %v2524
      %v2533 = vmul.f32 %v2462, %v2525
      %v2534 = vmul.f32 %v2462, %v2526
      %v2535 = vadd.f32 %v2452, %v2527
      %v2536 = vadd.f32 %v2453, %v2528
      %v2537 = vadd.f32 %v2454, %v2529
      %v2538 = vadd.f32 %v2455, %v2530
      %v2539 = vadd.f32 %v2456, %v2531
      %v2540 = vadd.f32 %v2457, %v2532
      %v2541 = vadd.f32 %v2458, %v2533
      %v2542 = vadd.f32 %v2459, %v2534
      %s2543 = smul.u32 %s2273, 3
      %s2544 = sadd.s32 %s2543, 1
      %s2545 = smul.u32 %s2544, 3
      %s2546 = sld [smem:[#allocation2 + %s2545]]
      %v2547 = vstv %s2546
      %v2548 = vmul.f32 %v2547, %v2328
      %v2549 = vmul.f32 %v2547, %v2329
      %v2550 = vmul.f32 %v2547, %v2330
      %v2551 = vmul.f32 %v2547, %v2331
      %v2552 = vmul.f32 %v2547, %v2332
      %v2553 = vmul.f32 %v2547, %v2333
      %v2554 = vmul.f32 %v2547, %v2334
      %v2555 = vmul.f32 %v2547, %v2335
      %v2556 = vadd.f32 %v2471, %v2548
      %v2557 = vadd.f32 %v2472, %v2549
      %v2558 = vadd.f32 %v2473, %v2550
      %v2559 = vadd.f32 %v2474, %v2551
      %v2560 = vadd.f32 %v2475, %v2552
      %v2561 = vadd.f32 %v2476, %v2553
      %v2562 = vadd.f32 %v2477, %v2554
      %v2563 = vadd.f32 %v2478, %v2555
      %v2564 = vmul.f32 %v2547, %v2353
      %v2565 = vmul.f32 %v2547, %v2354
      %v2566 = vmul.f32 %v2547, %v2355
      %v2567 = vmul.f32 %v2547, %v2356
      %v2568 = vmul.f32 %v2547, %v2357
      %v2569 = vmul.f32 %v2547, %v2358
      %v2570 = vmul.f32 %v2547, %v2359
      %v2571 = vmul.f32 %v2547, %v2360
      %v2572 = vadd.f32 %v2495, %v2564
      %v2573 = vadd.f32 %v2496, %v2565
      %v2574 = vadd.f32 %v2497, %v2566
      %v2575 = vadd.f32 %v2498, %v2567
      %v2576 = vadd.f32 %v2499, %v2568
      %v2577 = vadd.f32 %v2500, %v2569
      %v2578 = vadd.f32 %v2501, %v2570
      %v2579 = vadd.f32 %v2502, %v2571
      %s2580 = scalar_lea.vmem %s2, 448
      %v2581 = vld [vmem:[%s2580] sm:$0xff]
      %v2582 = vld [vmem:[%s2580 + $0x10] sm:$0xff]
      %v2583 = vld [vmem:[%s2580 + $0x20] sm:$0xff]
      %v2584 = vld [vmem:[%s2580 + $0x30] sm:$0xff]
      %v2585 = vld [vmem:[%s2580 + $0x40] sm:$0xff]
      %v2586 = vld [vmem:[%s2580 + $0x50] sm:$0xff]
      %v2587 = vld [vmem:[%s2580 + $0x60] sm:$0xff]
      %v2588 = vld [vmem:[%s2580 + $0x70] sm:$0xff]
      %v2589 = vmul.f32 %v2547, %v2581
      %v2590 = vmul.f32 %v2547, %v2582
      %v2591 = vmul.f32 %v2547, %v2583
      %v2592 = vmul.f32 %v2547, %v2584
      %v2593 = vmul.f32 %v2547, %v2585
      %v2594 = vmul.f32 %v2547, %v2586
      %v2595 = vmul.f32 %v2547, %v2587
      %v2596 = vmul.f32 %v2547, %v2588
      %v2597 = vadd.f32 %v2511, %v2589
      %v2598 = vadd.f32 %v2512, %v2590
      %v2599 = vadd.f32 %v2513, %v2591
      %v2600 = vadd.f32 %v2514, %v2592
      %v2601 = vadd.f32 %v2515, %v2593
      %v2602 = vadd.f32 %v2516, %v2594
      %v2603 = vadd.f32 %v2517, %v2595
      %v2604 = vadd.f32 %v2518, %v2596
      %s2605 = scalar_lea.vmem %s2, 1024
      %v2606 = vld [vmem:[%s2605] sm:$0xff]
      %v2607 = vld [vmem:[%s2605 + $0x10] sm:$0xff]
      %v2608 = vld [vmem:[%s2605 + $0x20] sm:$0xff]
      %v2609 = vld [vmem:[%s2605 + $0x30] sm:$0xff]
      %v2610 = vld [vmem:[%s2605 + $0x40] sm:$0xff]
      %v2611 = vld [vmem:[%s2605 + $0x50] sm:$0xff]
      %v2612 = vld [vmem:[%s2605 + $0x60] sm:$0xff]
      %v2613 = vld [vmem:[%s2605 + $0x70] sm:$0xff]
      %v2614 = vmul.f32 %v2547, %v2606
      %v2615 = vmul.f32 %v2547, %v2607
      %v2616 = vmul.f32 %v2547, %v2608
      %v2617 = vmul.f32 %v2547, %v2609
      %v2618 = vmul.f32 %v2547, %v2610
      %v2619 = vmul.f32 %v2547, %v2611
      %v2620 = vmul.f32 %v2547, %v2612
      %v2621 = vmul.f32 %v2547, %v2613
      %v2622 = vadd.f32 %v2535, %v2614
      %v2623 = vadd.f32 %v2536, %v2615
      %v2624 = vadd.f32 %v2537, %v2616
      %v2625 = vadd.f32 %v2538, %v2617
      %v2626 = vadd.f32 %v2539, %v2618
      %v2627 = vadd.f32 %v2540, %v2619
      %v2628 = vadd.f32 %v2541, %v2620
      %v2629 = vadd.f32 %v2542, %v2621
      %s2630 = sadd.s32 %s2545, 1
      %s2631 = sld [smem:[#allocation2 + %s2630]]
      %v2632 = vstv %s2631
      %v2633 = vmul.f32 %v2632, %v2353
      %v2634 = vmul.f32 %v2632, %v2354
      %v2635 = vmul.f32 %v2632, %v2355
      %v2636 = vmul.f32 %v2632, %v2356
      %v2637 = vmul.f32 %v2632, %v2357
      %v2638 = vmul.f32 %v2632, %v2358
      %v2639 = vmul.f32 %v2632, %v2359
      %v2640 = vmul.f32 %v2632, %v2360
      %v2641 = vadd.f32 %v2556, %v2633
      %v2642 = vadd.f32 %v2557, %v2634
      %v2643 = vadd.f32 %v2558, %v2635
      %v2644 = vadd.f32 %v2559, %v2636
      %v2645 = vadd.f32 %v2560, %v2637
      %v2646 = vadd.f32 %v2561, %v2638
      %v2647 = vadd.f32 %v2562, %v2639
      %v2648 = vadd.f32 %v2563, %v2640
      %v2649 = vmul.f32 %v2632, %v2436
      %v2650 = vmul.f32 %v2632, %v2437
      %v2651 = vmul.f32 %v2632, %v2438
      %v2652 = vmul.f32 %v2632, %v2439
      %v2653 = vmul.f32 %v2632, %v2440
      %v2654 = vmul.f32 %v2632, %v2441
      %v2655 = vmul.f32 %v2632, %v2442
      %v2656 = vmul.f32 %v2632, %v2443
      %v2657 = vadd.f32 %v2572, %v2649
      %v2658 = vadd.f32 %v2573, %v2650
      %v2659 = vadd.f32 %v2574, %v2651
      %v2660 = vadd.f32 %v2575, %v2652
      %v2661 = vadd.f32 %v2576, %v2653
      %v2662 = vadd.f32 %v2577, %v2654
      %v2663 = vadd.f32 %v2578, %v2655
      %v2664 = vadd.f32 %v2579, %v2656
      %v2665 = vmul.f32 %v2632, %v2606
      %v2666 = vmul.f32 %v2632, %v2607
      %v2667 = vmul.f32 %v2632, %v2608
      %v2668 = vmul.f32 %v2632, %v2609
      %v2669 = vmul.f32 %v2632, %v2610
      %v2670 = vmul.f32 %v2632, %v2611
      %v2671 = vmul.f32 %v2632, %v2612
      %v2672 = vmul.f32 %v2632, %v2613
      %v2673 = vadd.f32 %v2597, %v2665
      %v2674 = vadd.f32 %v2598, %v2666
      %v2675 = vadd.f32 %v2599, %v2667
      %v2676 = vadd.f32 %v2600, %v2668
      %v2677 = vadd.f32 %v2601, %v2669
      %v2678 = vadd.f32 %v2602, %v2670
      %v2679 = vadd.f32 %v2603, %v2671
      %v2680 = vadd.f32 %v2604, %v2672
      %v2681 = vld [vmem:[%s2580 + $0x1] sm:$0xff]
      %v2682 = vld [vmem:[%s2580 + $0x11] sm:$0xff]
      %v2683 = vld [vmem:[%s2580 + $0x21] sm:$0xff]
      %v2684 = vld [vmem:[%s2580 + $0x31] sm:$0xff]
      %v2685 = vld [vmem:[%s2580 + $0x41] sm:$0xff]
      %v2686 = vld [vmem:[%s2580 + $0x51] sm:$0xff]
      %v2687 = vld [vmem:[%s2580 + $0x61] sm:$0xff]
      %v2688 = vld [vmem:[%s2580 + $0x71] sm:$0xff]
      %v2689 = vmul.f32 %v2632, %v2681
      %v2690 = vmul.f32 %v2632, %v2682
      %v2691 = vmul.f32 %v2632, %v2683
      %v2692 = vmul.f32 %v2632, %v2684
      %v2693 = vmul.f32 %v2632, %v2685
      %v2694 = vmul.f32 %v2632, %v2686
      %v2695 = vmul.f32 %v2632, %v2687
      %v2696 = vmul.f32 %v2632, %v2688
      %v2697 = vadd.f32 %v2622, %v2689
      %v2698 = vadd.f32 %v2623, %v2690
      %v2699 = vadd.f32 %v2624, %v2691
      %v2700 = vadd.f32 %v2625, %v2692
      %v2701 = vadd.f32 %v2626, %v2693
      %v2702 = vadd.f32 %v2627, %v2694
      %v2703 = vadd.f32 %v2628, %v2695
      %v2704 = vadd.f32 %v2629, %v2696
      %s2705 = sadd.s32 %s2545, 2
      %s2706 = sld [smem:[#allocation2 + %s2705]]
      %v2707 = vstv %s2706
      %v2708 = vmul.f32 %v2707, %v2436
      %v2709 = vmul.f32 %v2707, %v2437
      %v2710 = vmul.f32 %v2707, %v2438
      %v2711 = vmul.f32 %v2707, %v2439
      %v2712 = vmul.f32 %v2707, %v2440
      %v2713 = vmul.f32 %v2707, %v2441
      %v2714 = vmul.f32 %v2707, %v2442
      %v2715 = vmul.f32 %v2707, %v2443
      %v2716 = vadd.f32 %v2641, %v2708
      %v2717 = vadd.f32 %v2642, %v2709
      %v2718 = vadd.f32 %v2643, %v2710
      %v2719 = vadd.f32 %v2644, %v2711
      %v2720 = vadd.f32 %v2645, %v2712
      %v2721 = vadd.f32 %v2646, %v2713
      %v2722 = vadd.f32 %v2647, %v2714
      %v2723 = vadd.f32 %v2648, %v2715
      %v2724 = vmul.f32 %v2707, %v2519
      %v2725 = vmul.f32 %v2707, %v2520
      %v2726 = vmul.f32 %v2707, %v2521
      %v2727 = vmul.f32 %v2707, %v2522
      %v2728 = vmul.f32 %v2707, %v2523
      %v2729 = vmul.f32 %v2707, %v2524
      %v2730 = vmul.f32 %v2707, %v2525
      %v2731 = vmul.f32 %v2707, %v2526
      %v2732 = vadd.f32 %v2657, %v2724
      %v2733 = vadd.f32 %v2658, %v2725
      %v2734 = vadd.f32 %v2659, %v2726
      %v2735 = vadd.f32 %v2660, %v2727
      %v2736 = vadd.f32 %v2661, %v2728
      %v2737 = vadd.f32 %v2662, %v2729
      %v2738 = vadd.f32 %v2663, %v2730
      %v2739 = vadd.f32 %v2664, %v2731
      %v2740 = vmul.f32 %v2707, %v2681
      %v2741 = vmul.f32 %v2707, %v2682
      %v2742 = vmul.f32 %v2707, %v2683
      %v2743 = vmul.f32 %v2707, %v2684
      %v2744 = vmul.f32 %v2707, %v2685
      %v2745 = vmul.f32 %v2707, %v2686
      %v2746 = vmul.f32 %v2707, %v2687
      %v2747 = vmul.f32 %v2707, %v2688
      %v2748 = vadd.f32 %v2673, %v2740
      %v2749 = vadd.f32 %v2674, %v2741
      %v2750 = vadd.f32 %v2675, %v2742
      %v2751 = vadd.f32 %v2676, %v2743
      %v2752 = vadd.f32 %v2677, %v2744
      %v2753 = vadd.f32 %v2678, %v2745
      %v2754 = vadd.f32 %v2679, %v2746
      %v2755 = vadd.f32 %v2680, %v2747
      %v2756 = vld [vmem:[%s2605 + $0x1] sm:$0xff]
      %v2757 = vld [vmem:[%s2605 + $0x11] sm:$0xff]
      %v2758 = vld [vmem:[%s2605 + $0x21] sm:$0xff]
      %v2759 = vld [vmem:[%s2605 + $0x31] sm:$0xff]
      %v2760 = vld [vmem:[%s2605 + $0x41] sm:$0xff]
      %v2761 = vld [vmem:[%s2605 + $0x51] sm:$0xff]
      %v2762 = vld [vmem:[%s2605 + $0x61] sm:$0xff]
      %v2763 = vld [vmem:[%s2605 + $0x71] sm:$0xff]
      %v2764 = vmul.f32 %v2707, %v2756
      %v2765 = vmul.f32 %v2707, %v2757
      %v2766 = vmul.f32 %v2707, %v2758
      %v2767 = vmul.f32 %v2707, %v2759
      %v2768 = vmul.f32 %v2707, %v2760
      %v2769 = vmul.f32 %v2707, %v2761
      %v2770 = vmul.f32 %v2707, %v2762
      %v2771 = vmul.f32 %v2707, %v2763
      %v2772 = vadd.f32 %v2697, %v2764
      %v2773 = vadd.f32 %v2698, %v2765
      %v2774 = vadd.f32 %v2699, %v2766
      %v2775 = vadd.f32 %v2700, %v2767
      %v2776 = vadd.f32 %v2701, %v2768
      %v2777 = vadd.f32 %v2702, %v2769
      %v2778 = vadd.f32 %v2703, %v2770
      %v2779 = vadd.f32 %v2704, %v2771
      %s2780 = sadd.s32 %s2543, 2
      %s2781 = smul.u32 %s2780, 3
      %s2782 = sld [smem:[#allocation2 + %s2781]]
      %v2783 = vstv %s2782
      %v2784 = vmul.f32 %v2783, %v2581
      %v2785 = vmul.f32 %v2783, %v2582
      %v2786 = vmul.f32 %v2783, %v2583
      %v2787 = vmul.f32 %v2783, %v2584
      %v2788 = vmul.f32 %v2783, %v2585
      %v2789 = vmul.f32 %v2783, %v2586
      %v2790 = vmul.f32 %v2783, %v2587
      %v2791 = vmul.f32 %v2783, %v2588
      %v2792 = vadd.f32 %v2716, %v2784
      %v2793 = vadd.f32 %v2717, %v2785
      %v2794 = vadd.f32 %v2718, %v2786
      %v2795 = vadd.f32 %v2719, %v2787
      %v2796 = vadd.f32 %v2720, %v2788
      %v2797 = vadd.f32 %v2721, %v2789
      %v2798 = vadd.f32 %v2722, %v2790
      %v2799 = vadd.f32 %v2723, %v2791
      %v2800 = vmul.f32 %v2783, %v2606
      %v2801 = vmul.f32 %v2783, %v2607
      %v2802 = vmul.f32 %v2783, %v2608
      %v2803 = vmul.f32 %v2783, %v2609
      %v2804 = vmul.f32 %v2783, %v2610
      %v2805 = vmul.f32 %v2783, %v2611
      %v2806 = vmul.f32 %v2783, %v2612
      %v2807 = vmul.f32 %v2783, %v2613
      %v2808 = vadd.f32 %v2732, %v2800
      %v2809 = vadd.f32 %v2733, %v2801
      %v2810 = vadd.f32 %v2734, %v2802
      %v2811 = vadd.f32 %v2735, %v2803
      %v2812 = vadd.f32 %v2736, %v2804
      %v2813 = vadd.f32 %v2737, %v2805
      %v2814 = vadd.f32 %v2738, %v2806
      %v2815 = vadd.f32 %v2739, %v2807
      %s2816 = scalar_lea.vmem %s2, 1600
      %v2817 = vld [vmem:[%s2816] sm:$0xff]
      %v2818 = vld [vmem:[%s2816 + $0x10] sm:$0xff]
      %v2819 = vld [vmem:[%s2816 + $0x20] sm:$0xff]
      %v2820 = vld [vmem:[%s2816 + $0x30] sm:$0xff]
      %v2821 = vld [vmem:[%s2816 + $0x40] sm:$0xff]
      %v2822 = vld [vmem:[%s2816 + $0x50] sm:$0xff]
      %v2823 = vld [vmem:[%s2816 + $0x60] sm:$0xff]
      %v2824 = vld [vmem:[%s2816 + $0x70] sm:$0xff]
      %v2825 = vmul.f32 %v2783, %v2817
      %v2826 = vmul.f32 %v2783, %v2818
      %v2827 = vmul.f32 %v2783, %v2819
      %v2828 = vmul.f32 %v2783, %v2820
      %v2829 = vmul.f32 %v2783, %v2821
      %v2830 = vmul.f32 %v2783, %v2822
      %v2831 = vmul.f32 %v2783, %v2823
      %v2832 = vmul.f32 %v2783, %v2824
      %v2833 = vadd.f32 %v2748, %v2825
      %v2834 = vadd.f32 %v2749, %v2826
      %v2835 = vadd.f32 %v2750, %v2827
      %v2836 = vadd.f32 %v2751, %v2828
      %v2837 = vadd.f32 %v2752, %v2829
      %v2838 = vadd.f32 %v2753, %v2830
      %v2839 = vadd.f32 %v2754, %v2831
      %v2840 = vadd.f32 %v2755, %v2832
      %s2841 = scalar_lea.vmem %s2, 2176
      %v2842 = vld [vmem:[%s2841] sm:$0xff]
      %v2843 = vld [vmem:[%s2841 + $0x10] sm:$0xff]
      %v2844 = vld [vmem:[%s2841 + $0x20] sm:$0xff]
      %v2845 = vld [vmem:[%s2841 + $0x30] sm:$0xff]
      %v2846 = vld [vmem:[%s2841 + $0x40] sm:$0xff]
      %v2847 = vld [vmem:[%s2841 + $0x50] sm:$0xff]
      %v2848 = vld [vmem:[%s2841 + $0x60] sm:$0xff]
      %v2849 = vld [vmem:[%s2841 + $0x70] sm:$0xff]
      %v2850 = vmul.f32 %v2783, %v2842
      %v2851 = vmul.f32 %v2783, %v2843
      %v2852 = vmul.f32 %v2783, %v2844
      %v2853 = vmul.f32 %v2783, %v2845
      %v2854 = vmul.f32 %v2783, %v2846
      %v2855 = vmul.f32 %v2783, %v2847
      %v2856 = vmul.f32 %v2783, %v2848
      %v2857 = vmul.f32 %v2783, %v2849
      %v2858 = vadd.f32 %v2772, %v2850
      %v2859 = vadd.f32 %v2773, %v2851
      %v2860 = vadd.f32 %v2774, %v2852
      %v2861 = vadd.f32 %v2775, %v2853
      %v2862 = vadd.f32 %v2776, %v2854
      %v2863 = vadd.f32 %v2777, %v2855
      %v2864 = vadd.f32 %v2778, %v2856
      %v2865 = vadd.f32 %v2779, %v2857
      %s2866 = sadd.s32 %s2781, 1
      %s2867 = sld [smem:[#allocation2 + %s2866]]
      %v2868 = vstv %s2867
      %v2869 = vmul.f32 %v2868, %v2606
      %v2870 = vmul.f32 %v2868, %v2607
      %v2871 = vmul.f32 %v2868, %v2608
      %v2872 = vmul.f32 %v2868, %v2609
      %v2873 = vmul.f32 %v2868, %v2610
      %v2874 = vmul.f32 %v2868, %v2611
      %v2875 = vmul.f32 %v2868, %v2612
      %v2876 = vmul.f32 %v2868, %v2613
      %v2877 = vadd.f32 %v2792, %v2869
      %v2878 = vadd.f32 %v2793, %v2870
      %v2879 = vadd.f32 %v2794, %v2871
      %v2880 = vadd.f32 %v2795, %v2872
      %v2881 = vadd.f32 %v2796, %v2873
      %v2882 = vadd.f32 %v2797, %v2874
      %v2883 = vadd.f32 %v2798, %v2875
      %v2884 = vadd.f32 %v2799, %v2876
      %v2885 = vmul.f32 %v2868, %v2681
      %v2886 = vmul.f32 %v2868, %v2682
      %v2887 = vmul.f32 %v2868, %v2683
      %v2888 = vmul.f32 %v2868, %v2684
      %v2889 = vmul.f32 %v2868, %v2685
      %v2890 = vmul.f32 %v2868, %v2686
      %v2891 = vmul.f32 %v2868, %v2687
      %v2892 = vmul.f32 %v2868, %v2688
      %v2893 = vadd.f32 %v2808, %v2885
      %v2894 = vadd.f32 %v2809, %v2886
      %v2895 = vadd.f32 %v2810, %v2887
      %v2896 = vadd.f32 %v2811, %v2888
      %v2897 = vadd.f32 %v2812, %v2889
      %v2898 = vadd.f32 %v2813, %v2890
      %v2899 = vadd.f32 %v2814, %v2891
      %v2900 = vadd.f32 %v2815, %v2892
      %v2901 = vmul.f32 %v2868, %v2842
      %v2902 = vmul.f32 %v2868, %v2843
      %v2903 = vmul.f32 %v2868, %v2844
      %v2904 = vmul.f32 %v2868, %v2845
      %v2905 = vmul.f32 %v2868, %v2846
      %v2906 = vmul.f32 %v2868, %v2847
      %v2907 = vmul.f32 %v2868, %v2848
      %v2908 = vmul.f32 %v2868, %v2849
      %v2909 = vadd.f32 %v2833, %v2901
      %v2910 = vadd.f32 %v2834, %v2902
      %v2911 = vadd.f32 %v2835, %v2903
      %v2912 = vadd.f32 %v2836, %v2904
      %v2913 = vadd.f32 %v2837, %v2905
      %v2914 = vadd.f32 %v2838, %v2906
      %v2915 = vadd.f32 %v2839, %v2907
      %v2916 = vadd.f32 %v2840, %v2908
      %v2917 = vld [vmem:[%s2816 + $0x1] sm:$0xff]
      %v2918 = vld [vmem:[%s2816 + $0x11] sm:$0xff]
      %v2919 = vld [vmem:[%s2816 + $0x21] sm:$0xff]
      %v2920 = vld [vmem:[%s2816 + $0x31] sm:$0xff]
      %v2921 = vld [vmem:[%s2816 + $0x41] sm:$0xff]
      %v2922 = vld [vmem:[%s2816 + $0x51] sm:$0xff]
      %v2923 = vld [vmem:[%s2816 + $0x61] sm:$0xff]
      %v2924 = vld [vmem:[%s2816 + $0x71] sm:$0xff]
      %v2925 = vmul.f32 %v2868, %v2917
      %v2926 = vmul.f32 %v2868, %v2918
      %v2927 = vmul.f32 %v2868, %v2919
      %v2928 = vmul.f32 %v2868, %v2920
      %v2929 = vmul.f32 %v2868, %v2921
      %v2930 = vmul.f32 %v2868, %v2922
      %v2931 = vmul.f32 %v2868, %v2923
      %v2932 = vmul.f32 %v2868, %v2924
      %v2933 = vadd.f32 %v2858, %v2925
      %v2934 = vadd.f32 %v2859, %v2926
      %v2935 = vadd.f32 %v2860, %v2927
      %v2936 = vadd.f32 %v2861, %v2928
      %v2937 = vadd.f32 %v2862, %v2929
      %v2938 = vadd.f32 %v2863, %v2930
      %v2939 = vadd.f32 %v2864, %v2931
      %v2940 = vadd.f32 %v2865, %v2932
      %s2941 = sadd.s32 %s2781, 2
      %s2942 = sld [smem:[#allocation2 + %s2941]]
      %v2943 = vstv %s2942
      %v2944 = vmul.f32 %v2943, %v2681
      %v2945 = vmul.f32 %v2943, %v2682
      %v2946 = vmul.f32 %v2943, %v2683
      %v2947 = vmul.f32 %v2943, %v2684
      %v2948 = vmul.f32 %v2943, %v2685
      %v2949 = vmul.f32 %v2943, %v2686
      %v2950 = vmul.f32 %v2943, %v2687
      %v2951 = vmul.f32 %v2943, %v2688
      %v2952 = vadd.f32 %v2877, %v2944
      %v2953 = vadd.f32 %v2878, %v2945
      %v2954 = vadd.f32 %v2879, %v2946
      %v2955 = vadd.f32 %v2880, %v2947
      %v2956 = vadd.f32 %v2881, %v2948
      %v2957 = vadd.f32 %v2882, %v2949
      %v2958 = vadd.f32 %v2883, %v2950
      %v2959 = vadd.f32 %v2884, %v2951
      %v2960 = vmul.f32 %v2943, %v2756
      %v2961 = vmul.f32 %v2943, %v2757
      %v2962 = vmul.f32 %v2943, %v2758
      %v2963 = vmul.f32 %v2943, %v2759
      %v2964 = vmul.f32 %v2943, %v2760
      %v2965 = vmul.f32 %v2943, %v2761
      %v2966 = vmul.f32 %v2943, %v2762
      %v2967 = vmul.f32 %v2943, %v2763
      %v2968 = vadd.f32 %v2893, %v2960
      %v2969 = vadd.f32 %v2894, %v2961
      %v2970 = vadd.f32 %v2895, %v2962
      %v2971 = vadd.f32 %v2896, %v2963
      %v2972 = vadd.f32 %v2897, %v2964
      %v2973 = vadd.f32 %v2898, %v2965
      %v2974 = vadd.f32 %v2899, %v2966
      %v2975 = vadd.f32 %v2900, %v2967
      %v2976 = vmul.f32 %v2943, %v2917
      %v2977 = vmul.f32 %v2943, %v2918
      %v2978 = vmul.f32 %v2943, %v2919
      %v2979 = vmul.f32 %v2943, %v2920
      %v2980 = vmul.f32 %v2943, %v2921
      %v2981 = vmul.f32 %v2943, %v2922
      %v2982 = vmul.f32 %v2943, %v2923
      %v2983 = vmul.f32 %v2943, %v2924
      %v2984 = vadd.f32 %v2909, %v2976
      %v2985 = vadd.f32 %v2910, %v2977
      %v2986 = vadd.f32 %v2911, %v2978
      %v2987 = vadd.f32 %v2912, %v2979
      %v2988 = vadd.f32 %v2913, %v2980
      %v2989 = vadd.f32 %v2914, %v2981
      %v2990 = vadd.f32 %v2915, %v2982
      %v2991 = vadd.f32 %v2916, %v2983
      %v2992 = vld [vmem:[%s2841 + $0x1] sm:$0xff]
      %v2993 = vld [vmem:[%s2841 + $0x11] sm:$0xff]
      %v2994 = vld [vmem:[%s2841 + $0x21] sm:$0xff]
      %v2995 = vld [vmem:[%s2841 + $0x31] sm:$0xff]
      %v2996 = vld [vmem:[%s2841 + $0x41] sm:$0xff]
      %v2997 = vld [vmem:[%s2841 + $0x51] sm:$0xff]
      %v2998 = vld [vmem:[%s2841 + $0x61] sm:$0xff]
      %v2999 = vld [vmem:[%s2841 + $0x71] sm:$0xff]
      %v3000 = vmul.f32 %v2943, %v2992
      %v3001 = vmul.f32 %v2943, %v2993
      %v3002 = vmul.f32 %v2943, %v2994
      %v3003 = vmul.f32 %v2943, %v2995
      %v3004 = vmul.f32 %v2943, %v2996
      %v3005 = vmul.f32 %v2943, %v2997
      %v3006 = vmul.f32 %v2943, %v2998
      %v3007 = vmul.f32 %v2943, %v2999
      %v3008 = vadd.f32 %v2933, %v3000
      %v3009 = vadd.f32 %v2934, %v3001
      %v3010 = vadd.f32 %v2935, %v3002
      %v3011 = vadd.f32 %v2936, %v3003
      %v3012 = vadd.f32 %v2937, %v3004
      %v3013 = vadd.f32 %v2938, %v3005
      %v3014 = vadd.f32 %v2939, %v3006
      %v3015 = vadd.f32 %v2940, %v3007
      %v3016 = vmax.f32 %v2952, %v2968
      %v3017 = vmax.f32 %v2953, %v2969
      %v3018 = vmax.f32 %v2954, %v2970
      %v3019 = vmax.f32 %v2955, %v2971
      %v3020 = vmax.f32 %v2956, %v2972
      %v3021 = vmax.f32 %v2957, %v2973
      %v3022 = vmax.f32 %v2958, %v2974
      %v3023 = vmax.f32 %v2959, %v2975
      %v3024 = vmax.f32 %v2984, %v3008
      %v3025 = vmax.f32 %v2985, %v3009
      %v3026 = vmax.f32 %v2986, %v3010
      %v3027 = vmax.f32 %v2987, %v3011
      %v3028 = vmax.f32 %v2988, %v3012
      %v3029 = vmax.f32 %v2989, %v3013
      %v3030 = vmax.f32 %v2990, %v3014
      %v3031 = vmax.f32 %v2991, %v3015
      %v3032 = vmax.f32 %v3016, %v3024
      %v3033 = vmax.f32 %v3017, %v3025
      %v3034 = vmax.f32 %v3018, %v3026
      %v3035 = vmax.f32 %v3019, %v3027
      %v3036 = vmax.f32 %v3020, %v3028
      %v3037 = vmax.f32 %v3021, %v3029
      %v3038 = vmax.f32 %v3022, %v3030
      %v3039 = vmax.f32 %v3023, %v3031
      %s3040 = sld [smem:[#allocation4 + %s40]]
      %v3041 = vstv %s3040
      %v3042 = vadd.f32 %v3032, %v3041
      %v3043 = vadd.f32 %v3033, %v3041
      %v3044 = vadd.f32 %v3034, %v3041
      %v3045 = vadd.f32 %v3035, %v3041
      %v3046 = vadd.f32 %v3036, %v3041
      %v3047 = vadd.f32 %v3037, %v3041
      %v3048 = vadd.f32 %v3038, %v3041
      %v3049 = vadd.f32 %v3039, %v3041
      %v3050 = vmax.f32 %v3042, 0.0
      %v3051 = vmax.f32 %v3043, 0.0
      %v3052 = vmax.f32 %v3044, 0.0
      %v3053 = vmax.f32 %v3045, 0.0
      %v3054 = vmax.f32 %v3046, 0.0
      %v3055 = vmax.f32 %v3047, 0.0
      %v3056 = vmax.f32 %v3048, 0.0
      %v3057 = vmax.f32 %v3049, 0.0
      %s3058 = smul.u32 %s40, 64
      %s3059 = scalar_lea.vmem %s3, %s3058
      %vm3060 = vcmask 15360
      %3061 = vst.msk [vmem:[%s3059] sm:$0xff] %vm3060, %v3050
      %3062 = vst.msk [vmem:[%s3059 + $0x8] sm:$0xff] %vm3060, %v3051
      %3063 = vst.msk [vmem:[%s3059 + $0x10] sm:$0xff] %vm3060, %v3052
      %3064 = vst.msk [vmem:[%s3059 + $0x18] sm:$0xff] %vm3060, %v3053
      %3065 = vst.msk [vmem:[%s3059 + $0x20] sm:$0xff] %vm3060, %v3054
      %3066 = vst.msk [vmem:[%s3059 + $0x28] sm:$0xff] %vm3060, %v3055
      %3067 = vst.msk [vmem:[%s3059 + $0x30] sm:$0xff] %vm3060, %v3056
      %3068 = vst.msk [vmem:[%s3059 + $0x38] sm:$0xff] %vm3060, %v3057
    $region26: #{st_extract_forward.1} parent=1 // loop_footer
      %s44 = sadd.s32 1, %s40
    $region27: #{st_extract_forward.1} parent=1 // loop_footer_branch
      %39 = sbr.rel target = $region23
    $region28: #{st_extract_forward.1} parent=1 // loop_exit
      _
    // Predicated region
    $region29: #{st_extract_forward.1} parent=1 // pred_check
      _
    $region30: #{st_extract_forward.1} parent=1 // pred_check_branch
      %3070 = sbr.rel (0) target = $region32
    $region31: #{st_extract_forward.1} parent=1 // pred_region
      _
    $region32: #{st_extract_forward.1} parent=1 // pred_fallthru
      _
    // Predicated region
    $region33: #{st_extract_forward.1} parent=1 // pred_check
      _
    $region34: #{st_extract_forward.1} parent=1 // pred_check_branch
      %3072 = sbr.rel (0) target = $region36
    $region35: #{st_extract_forward.1} parent=1 // pred_region
      _
    $region36: #{st_extract_forward.1} parent=1 // pred_fallthru
      _
    %3073 = vsyncpa [#allocation3], 1
    %3074 = vsyncpa [#allocation5], 1

</llo_original>
